<compile_context>
chip_gen: v6e
topology: v6e:2x2x1
jax: 0.10.0
libtpu: 0.0.40
codegen_flags: <defaults>
</compile_context>

<pallas_src>
import math
import jax
import jax.numpy as jnp
from jax import lax
from jax.experimental import pallas as pl
from jax.experimental.pallas import tpu as pltpu

_SQRT_2 = math.sqrt(2.0)


# ---------------------------------------------------------------------------
# in-kernel math helpers (pure jnp, traced inside the Pallas kernel body)
# ---------------------------------------------------------------------------
def _erf(x):
    # Abramowitz & Stegun 7.1.26 rational approximation (max err ~1.5e-7).
    # Only transcendental is exp (EUP slot).
    sign = jnp.where(x >= 0.0, 1.0, -1.0)
    ax = jnp.abs(x)
    t = 1.0 / (1.0 + 0.3275911 * ax)
    poly = ((((1.061405429 * t - 1.453152027) * t + 1.421413741) * t
             - 0.284496736) * t + 0.254829592) * t
    return sign * (1.0 - poly * jnp.exp(-ax * ax))


def _gelu(x):
    # exact (erf-based) GELU, matching torch.nn.GELU() default
    return 0.5 * x * (1.0 + _erf(x / _SQRT_2))


def _layer_norm(x, gamma, beta, eps):
    mean = jnp.mean(x, axis=-1, keepdims=True)
    var = jnp.mean((x - mean) ** 2, axis=-1, keepdims=True)
    return (x - mean) * lax.rsqrt(var + eps) * gamma + beta


def _mha(xq, xkv, w, b, num_heads, is_self):
    """Multi-head attention over the whole batch block.

    xq: (B, Sq, D), xkv: (B, Sk, D)
    w:  (D, 4D) columns = [Wq | Wk | Wv | Wo]     b: (1, 4D) = [bq|bk|bv|bo]
    Returns (out (B, Sq, D), probs (B, Sq, H*Sk)) with probs laid out
    head-major along the lane axis (index h*Sk + k).
    """
    bsz, sq, d = xq.shape
    sk = xkv.shape[1]
    h = num_heads
    dh = d // h
    scale = 1.0 / math.sqrt(dh)

    # leading-dim-only reshapes (last dim unchanged) -> cheap, always lowers
    xq2 = xq.reshape(bsz * sq, d)
    if is_self:
        # one fused (B*Sq, D) @ (D, 3D) matmul for Q, K, V
        proj = jnp.dot(xq2, w[:, :3 * d],
                       preferred_element_type=jnp.float32) + b[:, :3 * d]
        qp, kp, vp = proj, proj, proj
        q_off, k_off, v_off = 0, d, 2 * d
    else:
        xkv2 = xkv.reshape(bsz * sk, d)
        qp = jnp.dot(xq2, w[:, :d],
                     preferred_element_type=jnp.float32) + b[:, :d]
        kvp = jnp.dot(xkv2, w[:, d:3 * d],
                      preferred_element_type=jnp.float32) + b[:, d:3 * d]
        kp, vp = kvp, kvp
        q_off, k_off, v_off = 0, 0, d

    acc = jnp.zeros((bsz * sq, d), jnp.float32)
    probs = []
    for i in range(h):
        qh = qp[:, q_off + i * dh:q_off + (i + 1) * dh].reshape(bsz, sq, dh)
        kh = kp[:, k_off + i * dh:k_off + (i + 1) * dh].reshape(bsz, sk, dh)
        vh = vp[:, v_off + i * dh:v_off + (i + 1) * dh].reshape(bsz, sk, dh)

        s = jnp.einsum('bqd,bkd->bqk', qh, kh,
                       preferred_element_type=jnp.float32) * scale
        s = s - jnp.max(s, axis=-1, keepdims=True)
        e = jnp.exp(s)
        # exact divide: these probabilities are returned kernel outputs
        p = e / jnp.sum(e, axis=-1, keepdims=True)
        probs.append(p)

        ctx = jnp.einsum('bqk,bkd->bqd', p, vh,
                         preferred_element_type=jnp.float32)
        # fold this head straight into the output projection -> no lane concat
        acc = acc + jnp.dot(ctx.reshape(bsz * sq, dh),
                            w[i * dh:(i + 1) * dh, 3 * d:4 * d],
                            preferred_element_type=jnp.float32)

    out = (acc + b[:, 3 * d:4 * d]).reshape(bsz, sq, d)
    p_cat = jnp.concatenate(probs, axis=-1)          # (B, Sq, H*Sk): one store
    return out, p_cat


# ---------------------------------------------------------------------------
# Pallas kernel: the WHOLE decoder stack, whole batch per grid step
#   grid = (num_layers,); x is carried in the VMEM-resident output block.
# ---------------------------------------------------------------------------
def make_decoder_stack_kernel(num_heads):
    def kernel(x_ref, enc_ref,
               w_attn_ref,                      # (1, 2, D, 4D) = [self|cross]
               w_fc1_ref, w_fc2_ref,            # (1, D, dff), (1, dff, D)
               const_ref,                       # (1, 10, W) packed biases + LN
               out_ref, attn1_ref, attn2_ref):
        B, S, D = out_ref.shape
        dff = w_fc1_ref.shape[-1]

        # layer 0: seed the VMEM-resident carry with the kernel input
        @pl.when(pl.program_id(0) == 0)
        def _():
            out_ref[...] = x_ref[...]

        x = out_ref[...]                 # (B, S, D) carry
        enc = enc_ref[...]               # (B, Se, D)
        c = const_ref[0]                 # (10, W)

        b_sa = c[0:1, :4 * D]            # self-attn [bq|bk|bv|bo]
        b_ca = c[1:2, :4 * D]            # cross-attn biases
        b_f1 = c[2:3, :dff]
        b_f2 = c[3:4, :D]
        g1, be1 = c[4:5, :D], c[5:6, :D]
        g2, be2 = c[6:7, :D], c[7:8, :D]
        g3, be3 = c[8:9, :D], c[9:10, :D]

        # --- masked self-attention + add & norm (dropout p=0, eps=1e-5) ---
        sa, p1 = _mha(x, x, w_attn_ref[0, 0], b_sa, num_heads, True)
        attn1_ref[0] = p1                # single lane-dense store (B,S,H*S)
        x = _layer_norm(x + sa, g1, be1, 1e-5)

        # --- encoder-decoder cross attention + add & norm (eps=1e-12) ---
        ca, p2 = _mha(x, enc, w_attn_ref[0, 1], b_ca, num_heads, False)
        attn2_ref[0] = p2                # single store (B,S,H*Se)
        x = _layer_norm(x + ca, g2, be2, 1e-12)

        # --- position-wise feed-forward (GELU) + add & norm (eps=1e-12) ---
        x2 = x.reshape(B * S, D)
        hmid = jnp.dot(x2, w_fc1_ref[0],
                       preferred_element_type=jnp.float32) + b_f1
        hmid = _gelu(hmid)
        ffn = jnp.dot(hmid, w_fc2_ref[0],
                      preferred_element_type=jnp.float32) + b_f2
        x = _layer_norm(x + ffn.reshape(B, S, D), g3, be3, 1e-12)

        out_ref[...] = x.astype(out_ref.dtype)
    return kernel


def transformer_decoder_forward(x, enc, stacked_params, num_heads):
    """Matches TransformerDecoder.forward. x: (B,S,D), enc: (B,Se,D).

    stacked_params: 7 arrays, each with a leading num_layers axis.
    Returns (out, [attn1 per layer], [attn2 per layer]).
    """
    w_attn, b_attn, w_fc1, b_fc1, w_fc2, b_fc2, ln = stacked_params
    L = w_attn.shape[0]
    B, S, D = x.shape
    Se = enc.shape[1]
    H = num_heads
    dff = w_fc1.shape[-1]

    # pack all small per-layer constants into one lane-dense slab (L, 10, W)
    W = max(4 * D, dff)

    def row(a):                                   # (L, n) -> (L, 1, W)
        return jnp.pad(a, ((0, 0), (0, W - a.shape[-1])))[:, None, :]

    const = jnp.concatenate(
        [row(b_attn[:, 0, 0, :]), row(b_attn[:, 1, 0, :]),
         row(b_fc1[:, 0, :]), row(b_fc2[:, 0, :])]
        + [row(ln[:, i, :]) for i in range(6)], axis=1).astype(jnp.float32)

    in_specs = [
        pl.BlockSpec((B, S, D), lambda l: (0, 0, 0)),              # x (seed)
        pl.BlockSpec((B, Se, D), lambda l: (0, 0, 0)),             # enc_output
        pl.BlockSpec((1, 2, D, 4 * D), lambda l: (l, 0, 0, 0)),    # attn W slab
        pl.BlockSpec((1, D, dff), lambda l: (l, 0, 0)),            # fc1 W
        pl.BlockSpec((1, dff, D), lambda l: (l, 0, 0)),            # fc2 W
        pl.BlockSpec((1, 10, W), lambda l: (l, 0, 0)),             # const slab
    ]
    out_shape = (
        jax.ShapeDtypeStruct((B, S, D), jnp.float32),
        jax.ShapeDtypeStruct((L, B, S, H * S), jnp.float32),       # lane-dense
        jax.ShapeDtypeStruct((L, B, S, H * Se), jnp.float32),      # lane-dense
    )
    out_specs = (
        # x carry: same block across the layer axis -> VMEM resident,
        # flushed to HBM once at the end.
        pl.BlockSpec((B, S, D), lambda l: (0, 0, 0)),
        pl.BlockSpec((1, B, S, H * S), lambda l: (l, 0, 0, 0)),
        pl.BlockSpec((1, B, S, H * Se), lambda l: (l, 0, 0, 0)),
    )

    out, a1, a2 = pl.pallas_call(
        make_decoder_stack_kernel(H),
        out_shape=out_shape,
        grid=(L,),
        in_specs=in_specs,
        out_specs=out_specs,
        input_output_aliases={0: 0},       # donate x's buffer to the carry
        compiler_params=pltpu.CompilerParams(
            dimension_semantics=("arbitrary",)),
    )(x, enc, w_attn, w_fc1, w_fc2, const)

    # unpack the lane-dense prob slabs back to the reference (B, H, Sq, Sk)
    attn1 = a1.reshape(L, B, S, H, S).transpose(0, 1, 3, 2, 4)
    attn2 = a2.reshape(L, B, S, H, Se).transpose(0, 1, 3, 2, 4)
    return out, [attn1[i] for i in range(L)], [attn2[i] for i in range(L)]


# ---------------------------------------------------------------------------
# deterministic parameter construction (synthetic; mirrors module shapes)
# ---------------------------------------------------------------------------
def _init_linear(key, fan_in, fan_out):
    k1, k2 = jax.random.split(key)
    lim = 1.0 / math.sqrt(fan_in)
    w = jax.random.uniform(k1, (fan_in, fan_out), jnp.float32, -lim, lim)
    b = jax.random.uniform(k2, (1, fan_out), jnp.float32, -lim, lim)
    return w, b


def _init_attention_packed(key, D):
    ks = jax.random.split(key, 4)
    wq, bq = _init_linear(ks[0], D, D)
    wk, bk = _init_linear(ks[1], D, D)
    wv, bv = _init_linear(ks[2], D, D)
    wo, bo = _init_linear(ks[3], D, D)
    return (jnp.concatenate([wq, wk, wv, wo], axis=1),    # (D, 4D)
            jnp.concatenate([bq, bk, bv, bo], axis=1))    # (1, 4D)


def init_decoder_layer_params(key, D, dff):
    k_sa, k_ca, k_f1, k_f2 = jax.random.split(key, 4)
    w_sa, b_sa = _init_attention_packed(k_sa, D)
    w_ca, b_ca = _init_attention_packed(k_ca, D)
    w_attn = jnp.stack([w_sa, w_ca], axis=0)              # (2, D, 4D)
    b_attn = jnp.stack([b_sa, b_ca], axis=0)              # (2, 1, 4D)
    wf1, bf1 = _init_linear(k_f1, D, dff)
    wf2, bf2 = _init_linear(k_f2, dff, D)
    ln = jnp.stack([jnp.ones(D), jnp.zeros(D),            # g1, b1
                    jnp.ones(D), jnp.zeros(D),            # g2, b2
                    jnp.ones(D), jnp.zeros(D)], axis=0).astype(jnp.float32)
    return (w_attn, b_attn, wf1, bf1, wf2, bf2, ln)


def stack_layer_params(layer_params, num_layers):
    # `clones` deep-copies one initialized layer -> all layers start identical;
    # distinct trained layers would simply be stacked here instead.
    return tuple(jnp.stack([p] * num_layers, axis=0) for p in layer_params)


if __name__ == "__main__":
    # TransformerDecoder(num_layers=2, d_model=32, num_heads=4, dropout=0.0)
    num_layers = 2
    d_model = 32
    num_heads = 4
    dim_feedforward = 4 * d_model  # default in module
    B, S_dec, S_enc = 2, 8, 10

    key = jax.random.PRNGKey(0)
    k_x, k_enc, k_p = jax.random.split(key, 3)
    x = jax.random.normal(k_x, (B, S_dec, d_model), jnp.float32)
    enc_output = jax.random.normal(k_enc, (B, S_enc, d_model), jnp.float32)

    layer_params = init_decoder_layer_params(k_p, d_model, dim_feedforward)
    stacked_params = stack_layer_params(layer_params, num_layers)

    out, attn1_list, attn2_list = transformer_decoder_forward(
        x, enc_output, stacked_params, num_heads)

    out = jax.block_until_ready(out)
    for a in attn1_list + attn2_list:
        jax.block_until_ready(a)

    assert out.shape == (B, S_dec, d_model)
    assert len(attn1_list) == num_layers and len(attn2_list) == num_layers
    assert attn1_list[0].shape == (B, num_heads, S_dec, S_dec)
    assert attn2_list[0].shape == (B, num_heads, S_dec, S_enc)
    assert bool(jnp.all(jnp.isfinite(out)))
    # attention probabilities must be proper distributions (exact softmax)
    assert bool(jnp.allclose(jnp.sum(attn1_list[0], axis=-1), 1.0, atol=1e-5))
    print("KERNEL_OK")
</pallas_src>

<mosaic_0001>
module attributes {stable_mosaic.version = 11 : i64} {
  func.func @kernel(%arg0: i32, %arg1: memref<2x8x32xf32, #tpu.memory_space<vmem>>, %arg2: memref<2x10x32xf32, #tpu.memory_space<vmem>>, %arg3: memref<1x2x32x128xf32, #tpu.memory_space<vmem>>, %arg4: memref<1x32x128xf32, #tpu.memory_space<vmem>>, %arg5: memref<1x128x32xf32, #tpu.memory_space<vmem>>, %arg6: memref<1x10x128xf32, #tpu.memory_space<vmem>>, %arg7: memref<2x8x32xf32, #tpu.memory_space<vmem>>, %arg8: memref<1x2x8x32xf32, #tpu.memory_space<vmem>>, %arg9: memref<1x2x8x40xf32, #tpu.memory_space<vmem>>) attributes {dimension_semantics = [#tpu.dimension_semantics<arbitrary>], iteration_bounds = array<i64: 2>, scalar_prefetch = 0 : i64, scratch_operands = 0 : i64, tpu.core_type = #tpu.core_type<tc>, window_params = [{pipeline_mode = #tpu.pipeline_mode<synchronous>, transform_indices = @transform_0, window_bounds = array<i64: 2, 8, 32>}, {pipeline_mode = #tpu.pipeline_mode<synchronous>, transform_indices = @transform_1, window_bounds = array<i64: 2, 10, 32>}, {transform_indices = @transform_2, window_bounds = array<i64: 1, 2, 32, 128>}, {transform_indices = @transform_3, window_bounds = array<i64: 1, 32, 128>}, {transform_indices = @transform_4, window_bounds = array<i64: 1, 128, 32>}, {transform_indices = @transform_5, window_bounds = array<i64: 1, 10, 128>}, {pipeline_mode = #tpu.pipeline_mode<synchronous>, transform_indices = @transform_6, window_bounds = array<i64: 2, 8, 32>}, {transform_indices = @transform_7, window_bounds = array<i64: 1, 2, 8, 32>}, {transform_indices = @transform_8, window_bounds = array<i64: 1, 2, 8, 40>}]} {
    %c0_i32 = arith.constant 0 : i32
    %0 = arith.cmpi eq, %arg0, %c0_i32 : i32
    %1 = arith.extui %0 : i1 to i32
    %c0_i32_0 = arith.constant 0 : i32
    %2 = arith.cmpi ne, %1, %c0_i32_0 : i32
    scf.if %2 {
      %c0_118 = arith.constant 0 : index
      %c0_119 = arith.constant 0 : index
      %c0_120 = arith.constant 0 : index
      %370 = vector.load %arg1[%c0_118, %c0_119, %c0_120] : memref<2x8x32xf32, #tpu.memory_space<vmem>>, vector<2x8x32xf32>
      %c0_121 = arith.constant 0 : index
      %c0_122 = arith.constant 0 : index
      %c0_123 = arith.constant 0 : index
      %371 = vector.load %arg7[%c0_121, %c0_122, %c0_123] : memref<2x8x32xf32, #tpu.memory_space<vmem>>, vector<2x8x32xf32>
      tpu.vector_store %arg7[%c0_121, %c0_122, %c0_123], %370 {strides = array<i32>} : memref<2x8x32xf32, #tpu.memory_space<vmem>>, vector<2x8x32xf32>,
    } else {
    }
    %c0 = arith.constant 0 : index
    %c0_1 = arith.constant 0 : index
    %c0_2 = arith.constant 0 : index
    %3 = vector.load %arg7[%c0, %c0_1, %c0_2] : memref<2x8x32xf32, #tpu.memory_space<vmem>>, vector<2x8x32xf32>
    %c0_3 = arith.constant 0 : index
    %c0_4 = arith.constant 0 : index
    %c0_5 = arith.constant 0 : index
    %4 = vector.load %arg2[%c0_3, %c0_4, %c0_5] : memref<2x10x32xf32, #tpu.memory_space<vmem>>, vector<2x10x32xf32>
    %c0_6 = arith.constant 0 : index
    %c0_7 = arith.constant 0 : index
    %c0_8 = arith.constant 0 : index
    %5 = vector.load %arg6[%c0_6, %c0_7, %c0_8] : memref<1x10x128xf32, #tpu.memory_space<vmem>>, vector<1x10x128xf32>
    %6 = vector.shape_cast %5 : vector<1x10x128xf32> to vector<10x128xf32>
    %7 = vector.extract_strided_slice %6 {offsets = [0, 0], sizes = [1, 128], strides = [1, 1]} : vector<10x128xf32> to vector<1x128xf32>
    %8 = vector.extract_strided_slice %6 {offsets = [1, 0], sizes = [1, 128], strides = [1, 1]} : vector<10x128xf32> to vector<1x128xf32>
    %9 = vector.extract_strided_slice %6 {offsets = [2, 0], sizes = [1, 128], strides = [1, 1]} : vector<10x128xf32> to vector<1x128xf32>
    %10 = vector.extract_strided_slice %6 {offsets = [3, 0], sizes = [1, 32], strides = [1, 1]} : vector<10x128xf32> to vector<1x32xf32>
    %11 = vector.extract_strided_slice %6 {offsets = [4, 0], sizes = [1, 32], strides = [1, 1]} : vector<10x128xf32> to vector<1x32xf32>
    %12 = vector.extract_strided_slice %6 {offsets = [5, 0], sizes = [1, 32], strides = [1, 1]} : vector<10x128xf32> to vector<1x32xf32>
    %13 = vector.extract_strided_slice %6 {offsets = [6, 0], sizes = [1, 32], strides = [1, 1]} : vector<10x128xf32> to vector<1x32xf32>
    %14 = vector.extract_strided_slice %6 {offsets = [7, 0], sizes = [1, 32], strides = [1, 1]} : vector<10x128xf32> to vector<1x32xf32>
    %15 = vector.extract_strided_slice %6 {offsets = [8, 0], sizes = [1, 32], strides = [1, 1]} : vector<10x128xf32> to vector<1x32xf32>
    %16 = vector.extract_strided_slice %6 {offsets = [9, 0], sizes = [1, 32], strides = [1, 1]} : vector<10x128xf32> to vector<1x32xf32>
    %c0_9 = arith.constant 0 : index
    %c0_10 = arith.constant 0 : index
    %c0_11 = arith.constant 0 : index
    %c0_12 = arith.constant 0 : index
    %17 = vector.load %arg3[%c0_9, %c0_10, %c0_11, %c0_12] : memref<1x2x32x128xf32, #tpu.memory_space<vmem>>, vector<1x1x32x128xf32>
    %18 = vector.shape_cast %17 : vector<1x1x32x128xf32> to vector<32x128xf32>
    %19 = vector.shape_cast %3 : vector<2x8x32xf32> to vector<16x32xf32>
    %20 = vector.extract_strided_slice %18 {offsets = [0, 0], sizes = [32, 96], strides = [1, 1]} : vector<32x128xf32> to vector<32x96xf32>
    %cst = arith.constant dense<0.000000e+00> : vector<16x96xf32>
    %21 = tpu.matmul %19, %20, %cst {dimension_numbers = #tpu.dot_dimension_numbers<[1], [0], [0], [1], [0, 0, 1, 1], [], []>} : vector<16x32xf32>, vector<32x96xf32>, vector<16x96xf32> -> vector<16x96xf32>
    %22 = vector.extract_strided_slice %7 {offsets = [0, 0], sizes = [1, 96], strides = [1, 1]} : vector<1x128xf32> to vector<1x96xf32>
    %23 = vector.broadcast %22 : vector<1x96xf32> to vector<16x96xf32>
    %24 = arith.addf %21, %23 : vector<16x96xf32>
    %cst_13 = arith.constant 0.000000e+00 : f32
    %25 = vector.broadcast %cst_13 : f32 to vector<16x32xf32>
    %26 = vector.extract_strided_slice %24 {offsets = [0, 0], sizes = [16, 8], strides = [1, 1]} : vector<16x96xf32> to vector<16x8xf32>
    %27 = vector.shape_cast %26 : vector<16x8xf32> to vector<2x8x8xf32>
    %28 = vector.extract_strided_slice %24 {offsets = [0, 32], sizes = [16, 8], strides = [1, 1]} : vector<16x96xf32> to vector<16x8xf32>
    %29 = vector.shape_cast %28 : vector<16x8xf32> to vector<2x8x8xf32>
    %30 = vector.extract_strided_slice %24 {offsets = [0, 64], sizes = [16, 8], strides = [1, 1]} : vector<16x96xf32> to vector<16x8xf32>
    %31 = vector.shape_cast %30 : vector<16x8xf32> to vector<2x8x8xf32>
    "tpu.trace_start"() <{level = 10 : i32, message = "bqd,bkd->bqk"}> : () -> ()
    %cst_14 = arith.constant dense<0.000000e+00> : vector<2x8x8xf32>
    %32 = tpu.matmul %27, %29, %cst_14 {dimension_numbers = #tpu.dot_dimension_numbers<[2], [2], [1], [1], [0, 0, 0, 1, 1, 1], [0], [0]>} : vector<2x8x8xf32>, vector<2x8x8xf32>, vector<2x8x8xf32> -> vector<2x8x8xf32>
    "tpu.trace_stop"() : () -> ()
    %cst_15 = arith.constant 0.353553385 : f32
    %33 = vector.broadcast %cst_15 : f32 to vector<2x8x8xf32>
    %34 = arith.mulf %32, %33 : vector<2x8x8xf32>
    %cst_16 = arith.constant dense<0xFF800000> : vector<2x8xf32>
    %35 = vector.multi_reduction <maximumf>, %34, %cst_16 [2] : vector<2x8x8xf32> to vector<2x8xf32>
    %36 = vector.shape_cast %35 : vector<2x8xf32> to vector<2x8x1xf32>
    %37 = vector.broadcast %36 : vector<2x8x1xf32> to vector<2x8x8xf32>
    %38 = arith.subf %34, %37 : vector<2x8x8xf32>
    %39 = math.exp %38 : vector<2x8x8xf32>
    %cst_17 = arith.constant dense<0.000000e+00> : vector<2x8xf32>
    %40 = vector.multi_reduction <add>, %39, %cst_17 [2] : vector<2x8x8xf32> to vector<2x8xf32>
    %41 = vector.shape_cast %40 : vector<2x8xf32> to vector<2x8x1xf32>
    %42 = vector.broadcast %41 : vector<2x8x1xf32> to vector<2x8x8xf32>
    %43 = arith.divf %39, %42 : vector<2x8x8xf32>
    "tpu.trace_start"() <{level = 10 : i32, message = "bqk,bkd->bqd"}> : () -> ()
    %cst_18 = arith.constant dense<0.000000e+00> : vector<2x8x8xf32>
    %44 = tpu.matmul %43, %31, %cst_18 {dimension_numbers = #tpu.dot_dimension_numbers<[2], [1], [1], [2], [0, 0, 0, 1, 1, 2], [0], [0]>} : vector<2x8x8xf32>, vector<2x8x8xf32>, vector<2x8x8xf32> -> vector<2x8x8xf32>
    "tpu.trace_stop"() : () -> ()
    %45 = vector.shape_cast %44 : vector<2x8x8xf32> to vector<16x8xf32>
    %46 = vector.extract_strided_slice %18 {offsets = [0, 96], sizes = [8, 32], strides = [1, 1]} : vector<32x128xf32> to vector<8x32xf32>
    %cst_19 = arith.constant dense<0.000000e+00> : vector<16x32xf32>
    %47 = tpu.matmul %45, %46, %cst_19 {dimension_numbers = #tpu.dot_dimension_numbers<[1], [0], [0], [1], [0, 0, 1, 1], [], []>} : vector<16x8xf32>, vector<8x32xf32>, vector<16x32xf32> -> vector<16x32xf32>
    %48 = arith.addf %25, %47 : vector<16x32xf32>
    %49 = vector.extract_strided_slice %24 {offsets = [0, 8], sizes = [16, 8], strides = [1, 1]} : vector<16x96xf32> to vector<16x8xf32>
    %50 = vector.shape_cast %49 : vector<16x8xf32> to vector<2x8x8xf32>
    %51 = vector.extract_strided_slice %24 {offsets = [0, 40], sizes = [16, 8], strides = [1, 1]} : vector<16x96xf32> to vector<16x8xf32>
    %52 = vector.shape_cast %51 : vector<16x8xf32> to vector<2x8x8xf32>
    %53 = vector.extract_strided_slice %24 {offsets = [0, 72], sizes = [16, 8], strides = [1, 1]} : vector<16x96xf32> to vector<16x8xf32>
    %54 = vector.shape_cast %53 : vector<16x8xf32> to vector<2x8x8xf32>
    "tpu.trace_start"() <{level = 10 : i32, message = "bqd,bkd->bqk"}> : () -> ()
    %cst_20 = arith.constant dense<0.000000e+00> : vector<2x8x8xf32>
    %55 = tpu.matmul %50, %52, %cst_20 {dimension_numbers = #tpu.dot_dimension_numbers<[2], [2], [1], [1], [0, 0, 0, 1, 1, 1], [0], [0]>} : vector<2x8x8xf32>, vector<2x8x8xf32>, vector<2x8x8xf32> -> vector<2x8x8xf32>
    "tpu.trace_stop"() : () -> ()
    %cst_21 = arith.constant 0.353553385 : f32
    %56 = vector.broadcast %cst_21 : f32 to vector<2x8x8xf32>
    %57 = arith.mulf %55, %56 : vector<2x8x8xf32>
    %cst_22 = arith.constant dense<0xFF800000> : vector<2x8xf32>
    %58 = vector.multi_reduction <maximumf>, %57, %cst_22 [2] : vector<2x8x8xf32> to vector<2x8xf32>
    %59 = vector.shape_cast %58 : vector<2x8xf32> to vector<2x8x1xf32>
    %60 = vector.broadcast %59 : vector<2x8x1xf32> to vector<2x8x8xf32>
    %61 = arith.subf %57, %60 : vector<2x8x8xf32>
    %62 = math.exp %61 : vector<2x8x8xf32>
    %cst_23 = arith.constant dense<0.000000e+00> : vector<2x8xf32>
    %63 = vector.multi_reduction <add>, %62, %cst_23 [2] : vector<2x8x8xf32> to vector<2x8xf32>
    %64 = vector.shape_cast %63 : vector<2x8xf32> to vector<2x8x1xf32>
    %65 = vector.broadcast %64 : vector<2x8x1xf32> to vector<2x8x8xf32>
    %66 = arith.divf %62, %65 : vector<2x8x8xf32>
    "tpu.trace_start"() <{level = 10 : i32, message = "bqk,bkd->bqd"}> : () -> ()
    %cst_24 = arith.constant dense<0.000000e+00> : vector<2x8x8xf32>
    %67 = tpu.matmul %66, %54, %cst_24 {dimension_numbers = #tpu.dot_dimension_numbers<[2], [1], [1], [2], [0, 0, 0, 1, 1, 2], [0], [0]>} : vector<2x8x8xf32>, vector<2x8x8xf32>, vector<2x8x8xf32> -> vector<2x8x8xf32>
    "tpu.trace_stop"() : () -> ()
    %68 = vector.shape_cast %67 : vector<2x8x8xf32> to vector<16x8xf32>
    %69 = vector.extract_strided_slice %18 {offsets = [8, 96], sizes = [8, 32], strides = [1, 1]} : vector<32x128xf32> to vector<8x32xf32>
    %cst_25 = arith.constant dense<0.000000e+00> : vector<16x32xf32>
    %70 = tpu.matmul %68, %69, %cst_25 {dimension_numbers = #tpu.dot_dimension_numbers<[1], [0], [0], [1], [0, 0, 1, 1], [], []>} : vector<16x8xf32>, vector<8x32xf32>, vector<16x32xf32> -> vector<16x32xf32>
    %71 = arith.addf %48, %70 : vector<16x32xf32>
    %72 = vector.extract_strided_slice %24 {offsets = [0, 16], sizes = [16, 8], strides = [1, 1]} : vector<16x96xf32> to vector<16x8xf32>
    %73 = vector.shape_cast %72 : vector<16x8xf32> to vector<2x8x8xf32>
    %74 = vector.extract_strided_slice %24 {offsets = [0, 48], sizes = [16, 8], strides = [1, 1]} : vector<16x96xf32> to vector<16x8xf32>
    %75 = vector.shape_cast %74 : vector<16x8xf32> to vector<2x8x8xf32>
    %76 = vector.extract_strided_slice %24 {offsets = [0, 80], sizes = [16, 8], strides = [1, 1]} : vector<16x96xf32> to vector<16x8xf32>
    %77 = vector.shape_cast %76 : vector<16x8xf32> to vector<2x8x8xf32>
    "tpu.trace_start"() <{level = 10 : i32, message = "bqd,bkd->bqk"}> : () -> ()
    %cst_26 = arith.constant dense<0.000000e+00> : vector<2x8x8xf32>
    %78 = tpu.matmul %73, %75, %cst_26 {dimension_numbers = #tpu.dot_dimension_numbers<[2], [2], [1], [1], [0, 0, 0, 1, 1, 1], [0], [0]>} : vector<2x8x8xf32>, vector<2x8x8xf32>, vector<2x8x8xf32> -> vector<2x8x8xf32>
    "tpu.trace_stop"() : () -> ()
    %cst_27 = arith.constant 0.353553385 : f32
    %79 = vector.broadcast %cst_27 : f32 to vector<2x8x8xf32>
    %80 = arith.mulf %78, %79 : vector<2x8x8xf32>
    %cst_28 = arith.constant dense<0xFF800000> : vector<2x8xf32>
    %81 = vector.multi_reduction <maximumf>, %80, %cst_28 [2] : vector<2x8x8xf32> to vector<2x8xf32>
    %82 = vector.shape_cast %81 : vector<2x8xf32> to vector<2x8x1xf32>
    %83 = vector.broadcast %82 : vector<2x8x1xf32> to vector<2x8x8xf32>
    %84 = arith.subf %80, %83 : vector<2x8x8xf32>
    %85 = math.exp %84 : vector<2x8x8xf32>
    %cst_29 = arith.constant dense<0.000000e+00> : vector<2x8xf32>
    %86 = vector.multi_reduction <add>, %85, %cst_29 [2] : vector<2x8x8xf32> to vector<2x8xf32>
    %87 = vector.shape_cast %86 : vector<2x8xf32> to vector<2x8x1xf32>
    %88 = vector.broadcast %87 : vector<2x8x1xf32> to vector<2x8x8xf32>
    %89 = arith.divf %85, %88 : vector<2x8x8xf32>
    "tpu.trace_start"() <{level = 10 : i32, message = "bqk,bkd->bqd"}> : () -> ()
    %cst_30 = arith.constant dense<0.000000e+00> : vector<2x8x8xf32>
    %90 = tpu.matmul %89, %77, %cst_30 {dimension_numbers = #tpu.dot_dimension_numbers<[2], [1], [1], [2], [0, 0, 0, 1, 1, 2], [0], [0]>} : vector<2x8x8xf32>, vector<2x8x8xf32>, vector<2x8x8xf32> -> vector<2x8x8xf32>
    "tpu.trace_stop"() : () -> ()
    %91 = vector.shape_cast %90 : vector<2x8x8xf32> to vector<16x8xf32>
    %92 = vector.extract_strided_slice %18 {offsets = [16, 96], sizes = [8, 32], strides = [1, 1]} : vector<32x128xf32> to vector<8x32xf32>
    %cst_31 = arith.constant dense<0.000000e+00> : vector<16x32xf32>
    %93 = tpu.matmul %91, %92, %cst_31 {dimension_numbers = #tpu.dot_dimension_numbers<[1], [0], [0], [1], [0, 0, 1, 1], [], []>} : vector<16x8xf32>, vector<8x32xf32>, vector<16x32xf32> -> vector<16x32xf32>
    %94 = arith.addf %71, %93 : vector<16x32xf32>
    %95 = vector.extract_strided_slice %24 {offsets = [0, 24], sizes = [16, 8], strides = [1, 1]} : vector<16x96xf32> to vector<16x8xf32>
    %96 = vector.shape_cast %95 : vector<16x8xf32> to vector<2x8x8xf32>
    %97 = vector.extract_strided_slice %24 {offsets = [0, 56], sizes = [16, 8], strides = [1, 1]} : vector<16x96xf32> to vector<16x8xf32>
    %98 = vector.shape_cast %97 : vector<16x8xf32> to vector<2x8x8xf32>
    %99 = vector.extract_strided_slice %24 {offsets = [0, 88], sizes = [16, 8], strides = [1, 1]} : vector<16x96xf32> to vector<16x8xf32>
    %100 = vector.shape_cast %99 : vector<16x8xf32> to vector<2x8x8xf32>
    "tpu.trace_start"() <{level = 10 : i32, message = "bqd,bkd->bqk"}> : () -> ()
    %cst_32 = arith.constant dense<0.000000e+00> : vector<2x8x8xf32>
    %101 = tpu.matmul %96, %98, %cst_32 {dimension_numbers = #tpu.dot_dimension_numbers<[2], [2], [1], [1], [0, 0, 0, 1, 1, 1], [0], [0]>} : vector<2x8x8xf32>, vector<2x8x8xf32>, vector<2x8x8xf32> -> vector<2x8x8xf32>
    "tpu.trace_stop"() : () -> ()
    %cst_33 = arith.constant 0.353553385 : f32
    %102 = vector.broadcast %cst_33 : f32 to vector<2x8x8xf32>
    %103 = arith.mulf %101, %102 : vector<2x8x8xf32>
    %cst_34 = arith.constant dense<0xFF800000> : vector<2x8xf32>
    %104 = vector.multi_reduction <maximumf>, %103, %cst_34 [2] : vector<2x8x8xf32> to vector<2x8xf32>
    %105 = vector.shape_cast %104 : vector<2x8xf32> to vector<2x8x1xf32>
    %106 = vector.broadcast %105 : vector<2x8x1xf32> to vector<2x8x8xf32>
    %107 = arith.subf %103, %106 : vector<2x8x8xf32>
    %108 = math.exp %107 : vector<2x8x8xf32>
    %cst_35 = arith.constant dense<0.000000e+00> : vector<2x8xf32>
    %109 = vector.multi_reduction <add>, %108, %cst_35 [2] : vector<2x8x8xf32> to vector<2x8xf32>
    %110 = vector.shape_cast %109 : vector<2x8xf32> to vector<2x8x1xf32>
    %111 = vector.broadcast %110 : vector<2x8x1xf32> to vector<2x8x8xf32>
    %112 = arith.divf %108, %111 : vector<2x8x8xf32>
    "tpu.trace_start"() <{level = 10 : i32, message = "bqk,bkd->bqd"}> : () -> ()
    %cst_36 = arith.constant dense<0.000000e+00> : vector<2x8x8xf32>
    %113 = tpu.matmul %112, %100, %cst_36 {dimension_numbers = #tpu.dot_dimension_numbers<[2], [1], [1], [2], [0, 0, 0, 1, 1, 2], [0], [0]>} : vector<2x8x8xf32>, vector<2x8x8xf32>, vector<2x8x8xf32> -> vector<2x8x8xf32>
    "tpu.trace_stop"() : () -> ()
    %114 = vector.shape_cast %113 : vector<2x8x8xf32> to vector<16x8xf32>
    %115 = vector.extract_strided_slice %18 {offsets = [24, 96], sizes = [8, 32], strides = [1, 1]} : vector<32x128xf32> to vector<8x32xf32>
    %cst_37 = arith.constant dense<0.000000e+00> : vector<16x32xf32>
    %116 = tpu.matmul %114, %115, %cst_37 {dimension_numbers = #tpu.dot_dimension_numbers<[1], [0], [0], [1], [0, 0, 1, 1], [], []>} : vector<16x8xf32>, vector<8x32xf32>, vector<16x32xf32> -> vector<16x32xf32>
    %117 = arith.addf %94, %116 : vector<16x32xf32>
    %118 = vector.extract_strided_slice %7 {offsets = [0, 96], sizes = [1, 32], strides = [1, 1]} : vector<1x128xf32> to vector<1x32xf32>
    %119 = vector.broadcast %118 : vector<1x32xf32> to vector<16x32xf32>
    %120 = arith.addf %117, %119 : vector<16x32xf32>
    %121 = vector.shape_cast %120 : vector<16x32xf32> to vector<2x8x32xf32>
    %122 = tpu.concatenate %43, %66, %89, %112 in 2 : vector<2x8x8xf32>, vector<2x8x8xf32>, vector<2x8x8xf32>, vector<2x8x8xf32> -> vector<2x8x32xf32>
    %c0_38 = arith.constant 0 : index
    %c0_39 = arith.constant 0 : index
    %c0_40 = arith.constant 0 : index
    %c0_41 = arith.constant 0 : index
    %123 = vector.load %arg8[%c0_38, %c0_39, %c0_40, %c0_41] : memref<1x2x8x32xf32, #tpu.memory_space<vmem>>, vector<1x2x8x32xf32>
    %124 = vector.shape_cast %123 : vector<1x2x8x32xf32> to vector<2x8x32xf32>
    %125 = vector.shape_cast %122 : vector<2x8x32xf32> to vector<1x2x8x32xf32>
    tpu.vector_store %arg8[%c0_38, %c0_39, %c0_40, %c0_41], %125 {strides = array<i32>} : memref<1x2x8x32xf32, #tpu.memory_space<vmem>>, vector<1x2x8x32xf32>,
    %126 = arith.addf %3, %121 : vector<2x8x32xf32>
    %cst_42 = arith.constant dense<0.000000e+00> : vector<2x8xf32>
    %127 = vector.multi_reduction <add>, %126, %cst_42 [2] : vector<2x8x32xf32> to vector<2x8xf32>
    %128 = vector.shape_cast %127 : vector<2x8xf32> to vector<2x8x1xf32>
    %cst_43 = arith.constant 3.200000e+01 : f32
    %129 = vector.broadcast %cst_43 : f32 to vector<2x8x1xf32>
    %130 = arith.divf %128, %129 : vector<2x8x1xf32>
    %131 = vector.broadcast %130 : vector<2x8x1xf32> to vector<2x8x32xf32>
    %132 = arith.subf %126, %131 : vector<2x8x32xf32>
    %133 = arith.mulf %132, %132 : vector<2x8x32xf32>
    %cst_44 = arith.constant dense<0.000000e+00> : vector<2x8xf32>
    %134 = vector.multi_reduction <add>, %133, %cst_44 [2] : vector<2x8x32xf32> to vector<2x8xf32>
    %135 = vector.shape_cast %134 : vector<2x8xf32> to vector<2x8x1xf32>
    %cst_45 = arith.constant 3.200000e+01 : f32
    %136 = vector.broadcast %cst_45 : f32 to vector<2x8x1xf32>
    %137 = arith.divf %135, %136 : vector<2x8x1xf32>
    %138 = vector.broadcast %130 : vector<2x8x1xf32> to vector<2x8x32xf32>
    %139 = arith.subf %126, %138 : vector<2x8x32xf32>
    %cst_46 = arith.constant 9.99999974E-6 : f32
    %140 = vector.broadcast %cst_46 : f32 to vector<2x8x1xf32>
    %141 = arith.addf %137, %140 : vector<2x8x1xf32>
    %142 = math.rsqrt %141 : vector<2x8x1xf32>
    %143 = vector.broadcast %142 : vector<2x8x1xf32> to vector<2x8x32xf32>
    %144 = arith.mulf %139, %143 : vector<2x8x32xf32>
    %145 = vector.shape_cast %11 : vector<1x32xf32> to vector<1x1x32xf32>
    %146 = vector.broadcast %145 : vector<1x1x32xf32> to vector<2x8x32xf32>
    %147 = arith.mulf %144, %146 : vector<2x8x32xf32>
    %148 = vector.shape_cast %12 : vector<1x32xf32> to vector<1x1x32xf32>
    %149 = vector.broadcast %148 : vector<1x1x32xf32> to vector<2x8x32xf32>
    %150 = arith.addf %147, %149 : vector<2x8x32xf32>
    %c0_47 = arith.constant 0 : index
    %c1 = arith.constant 1 : index
    %c0_48 = arith.constant 0 : index
    %c0_49 = arith.constant 0 : index
    %151 = vector.load %arg3[%c0_47, %c1, %c0_48, %c0_49] : memref<1x2x32x128xf32, #tpu.memory_space<vmem>>, vector<1x1x32x128xf32>
    %152 = vector.shape_cast %151 : vector<1x1x32x128xf32> to vector<32x128xf32>
    %153 = vector.shape_cast %150 : vector<2x8x32xf32> to vector<16x32xf32>
    %154 = vector.shape_cast %4 : vector<2x10x32xf32> to vector<20x32xf32>
    %155 = vector.extract_strided_slice %152 {offsets = [0, 0], sizes = [32, 32], strides = [1, 1]} : vector<32x128xf32> to vector<32x32xf32>
    %cst_50 = arith.constant dense<0.000000e+00> : vector<16x32xf32>
    %156 = tpu.matmul %153, %155, %cst_50 {dimension_numbers = #tpu.dot_dimension_numbers<[1], [0], [0], [1], [0, 0, 1, 1], [], []>} : vector<16x32xf32>, vector<32x32xf32>, vector<16x32xf32> -> vector<16x32xf32>
    %157 = vector.extract_strided_slice %8 {offsets = [0, 0], sizes = [1, 32], strides = [1, 1]} : vector<1x128xf32> to vector<1x32xf32>
    %158 = vector.broadcast %157 : vector<1x32xf32> to vector<16x32xf32>
    %159 = arith.addf %156, %158 : vector<16x32xf32>
    %160 = vector.extract_strided_slice %152 {offsets = [0, 32], sizes = [32, 64], strides = [1, 1]} : vector<32x128xf32> to vector<32x64xf32>
    %cst_51 = arith.constant dense<0.000000e+00> : vector<20x64xf32>
    %161 = tpu.matmul %154, %160, %cst_51 {dimension_numbers = #tpu.dot_dimension_numbers<[1], [0], [0], [1], [0, 0, 1, 1], [], []>} : vector<20x32xf32>, vector<32x64xf32>, vector<20x64xf32> -> vector<20x64xf32>
    %162 = vector.extract_strided_slice %8 {offsets = [0, 32], sizes = [1, 64], strides = [1, 1]} : vector<1x128xf32> to vector<1x64xf32>
    %163 = vector.broadcast %162 : vector<1x64xf32> to vector<20x64xf32>
    %164 = arith.addf %161, %163 : vector<20x64xf32>
    %cst_52 = arith.constant 0.000000e+00 : f32
    %165 = vector.broadcast %cst_52 : f32 to vector<16x32xf32>
    %166 = vector.extract_strided_slice %159 {offsets = [0, 0], sizes = [16, 8], strides = [1, 1]} : vector<16x32xf32> to vector<16x8xf32>
    %167 = vector.shape_cast %166 : vector<16x8xf32> to vector<2x8x8xf32>
    %168 = vector.extract_strided_slice %164 {offsets = [0, 0], sizes = [20, 8], strides = [1, 1]} : vector<20x64xf32> to vector<20x8xf32>
    %169 = vector.shape_cast %168 : vector<20x8xf32> to vector<2x10x8xf32>
    %170 = vector.extract_strided_slice %164 {offsets = [0, 32], sizes = [20, 8], strides = [1, 1]} : vector<20x64xf32> to vector<20x8xf32>
    %171 = vector.shape_cast %170 : vector<20x8xf32> to vector<2x10x8xf32>
    "tpu.trace_start"() <{level = 10 : i32, message = "bqd,bkd->bqk"}> : () -> ()
    %cst_53 = arith.constant dense<0.000000e+00> : vector<2x8x10xf32>
    %172 = tpu.matmul %167, %169, %cst_53 {dimension_numbers = #tpu.dot_dimension_numbers<[2], [2], [1], [1], [0, 0, 0, 1, 1, 1], [0], [0]>} : vector<2x8x8xf32>, vector<2x10x8xf32>, vector<2x8x10xf32> -> vector<2x8x10xf32>
    "tpu.trace_stop"() : () -> ()
    %cst_54 = arith.constant 0.353553385 : f32
    %173 = vector.broadcast %cst_54 : f32 to vector<2x8x10xf32>
    %174 = arith.mulf %172, %173 : vector<2x8x10xf32>
    %cst_55 = arith.constant dense<0xFF800000> : vector<2x8xf32>
    %175 = vector.multi_reduction <maximumf>, %174, %cst_55 [2] : vector<2x8x10xf32> to vector<2x8xf32>
    %176 = vector.shape_cast %175 : vector<2x8xf32> to vector<2x8x1xf32>
    %177 = vector.broadcast %176 : vector<2x8x1xf32> to vector<2x8x10xf32>
    %178 = arith.subf %174, %177 : vector<2x8x10xf32>
    %179 = math.exp %178 : vector<2x8x10xf32>
    %cst_56 = arith.constant dense<0.000000e+00> : vector<2x8xf32>
    %180 = vector.multi_reduction <add>, %179, %cst_56 [2] : vector<2x8x10xf32> to vector<2x8xf32>
    %181 = vector.shape_cast %180 : vector<2x8xf32> to vector<2x8x1xf32>
    %182 = vector.broadcast %181 : vector<2x8x1xf32> to vector<2x8x10xf32>
    %183 = arith.divf %179, %182 : vector<2x8x10xf32>
    "tpu.trace_start"() <{level = 10 : i32, message = "bqk,bkd->bqd"}> : () -> ()
    %cst_57 = arith.constant dense<0.000000e+00> : vector<2x8x8xf32>
    %184 = tpu.matmul %183, %171, %cst_57 {dimension_numbers = #tpu.dot_dimension_numbers<[2], [1], [1], [2], [0, 0, 0, 1, 1, 2], [0], [0]>} : vector<2x8x10xf32>, vector<2x10x8xf32>, vector<2x8x8xf32> -> vector<2x8x8xf32>
    "tpu.trace_stop"() : () -> ()
    %185 = vector.shape_cast %184 : vector<2x8x8xf32> to vector<16x8xf32>
    %186 = vector.extract_strided_slice %152 {offsets = [0, 96], sizes = [8, 32], strides = [1, 1]} : vector<32x128xf32> to vector<8x32xf32>
    %cst_58 = arith.constant dense<0.000000e+00> : vector<16x32xf32>
    %187 = tpu.matmul %185, %186, %cst_58 {dimension_numbers = #tpu.dot_dimension_numbers<[1], [0], [0], [1], [0, 0, 1, 1], [], []>} : vector<16x8xf32>, vector<8x32xf32>, vector<16x32xf32> -> vector<16x32xf32>
    %188 = arith.addf %165, %187 : vector<16x32xf32>
    %189 = vector.extract_strided_slice %159 {offsets = [0, 8], sizes = [16, 8], strides = [1, 1]} : vector<16x32xf32> to vector<16x8xf32>
    %190 = vector.shape_cast %189 : vector<16x8xf32> to vector<2x8x8xf32>
    %191 = vector.extract_strided_slice %164 {offsets = [0, 8], sizes = [20, 8], strides = [1, 1]} : vector<20x64xf32> to vector<20x8xf32>
    %192 = vector.shape_cast %191 : vector<20x8xf32> to vector<2x10x8xf32>
    %193 = vector.extract_strided_slice %164 {offsets = [0, 40], sizes = [20, 8], strides = [1, 1]} : vector<20x64xf32> to vector<20x8xf32>
    %194 = vector.shape_cast %193 : vector<20x8xf32> to vector<2x10x8xf32>
    "tpu.trace_start"() <{level = 10 : i32, message = "bqd,bkd->bqk"}> : () -> ()
    %cst_59 = arith.constant dense<0.000000e+00> : vector<2x8x10xf32>
    %195 = tpu.matmul %190, %192, %cst_59 {dimension_numbers = #tpu.dot_dimension_numbers<[2], [2], [1], [1], [0, 0, 0, 1, 1, 1], [0], [0]>} : vector<2x8x8xf32>, vector<2x10x8xf32>, vector<2x8x10xf32> -> vector<2x8x10xf32>
    "tpu.trace_stop"() : () -> ()
    %cst_60 = arith.constant 0.353553385 : f32
    %196 = vector.broadcast %cst_60 : f32 to vector<2x8x10xf32>
    %197 = arith.mulf %195, %196 : vector<2x8x10xf32>
    %cst_61 = arith.constant dense<0xFF800000> : vector<2x8xf32>
    %198 = vector.multi_reduction <maximumf>, %197, %cst_61 [2] : vector<2x8x10xf32> to vector<2x8xf32>
    %199 = vector.shape_cast %198 : vector<2x8xf32> to vector<2x8x1xf32>
    %200 = vector.broadcast %199 : vector<2x8x1xf32> to vector<2x8x10xf32>
    %201 = arith.subf %197, %200 : vector<2x8x10xf32>
    %202 = math.exp %201 : vector<2x8x10xf32>
    %cst_62 = arith.constant dense<0.000000e+00> : vector<2x8xf32>
    %203 = vector.multi_reduction <add>, %202, %cst_62 [2] : vector<2x8x10xf32> to vector<2x8xf32>
    %204 = vector.shape_cast %203 : vector<2x8xf32> to vector<2x8x1xf32>
    %205 = vector.broadcast %204 : vector<2x8x1xf32> to vector<2x8x10xf32>
    %206 = arith.divf %202, %205 : vector<2x8x10xf32>
    "tpu.trace_start"() <{level = 10 : i32, message = "bqk,bkd->bqd"}> : () -> ()
    %cst_63 = arith.constant dense<0.000000e+00> : vector<2x8x8xf32>
    %207 = tpu.matmul %206, %194, %cst_63 {dimension_numbers = #tpu.dot_dimension_numbers<[2], [1], [1], [2], [0, 0, 0, 1, 1, 2], [0], [0]>} : vector<2x8x10xf32>, vector<2x10x8xf32>, vector<2x8x8xf32> -> vector<2x8x8xf32>
    "tpu.trace_stop"() : () -> ()
    %208 = vector.shape_cast %207 : vector<2x8x8xf32> to vector<16x8xf32>
    %209 = vector.extract_strided_slice %152 {offsets = [8, 96], sizes = [8, 32], strides = [1, 1]} : vector<32x128xf32> to vector<8x32xf32>
    %cst_64 = arith.constant dense<0.000000e+00> : vector<16x32xf32>
    %210 = tpu.matmul %208, %209, %cst_64 {dimension_numbers = #tpu.dot_dimension_numbers<[1], [0], [0], [1], [0, 0, 1, 1], [], []>} : vector<16x8xf32>, vector<8x32xf32>, vector<16x32xf32> -> vector<16x32xf32>
    %211 = arith.addf %188, %210 : vector<16x32xf32>
    %212 = vector.extract_strided_slice %159 {offsets = [0, 16], sizes = [16, 8], strides = [1, 1]} : vector<16x32xf32> to vector<16x8xf32>
    %213 = vector.shape_cast %212 : vector<16x8xf32> to vector<2x8x8xf32>
    %214 = vector.extract_strided_slice %164 {offsets = [0, 16], sizes = [20, 8], strides = [1, 1]} : vector<20x64xf32> to vector<20x8xf32>
    %215 = vector.shape_cast %214 : vector<20x8xf32> to vector<2x10x8xf32>
    %216 = vector.extract_strided_slice %164 {offsets = [0, 48], sizes = [20, 8], strides = [1, 1]} : vector<20x64xf32> to vector<20x8xf32>
    %217 = vector.shape_cast %216 : vector<20x8xf32> to vector<2x10x8xf32>
    "tpu.trace_start"() <{level = 10 : i32, message = "bqd,bkd->bqk"}> : () -> ()
    %cst_65 = arith.constant dense<0.000000e+00> : vector<2x8x10xf32>
    %218 = tpu.matmul %213, %215, %cst_65 {dimension_numbers = #tpu.dot_dimension_numbers<[2], [2], [1], [1], [0, 0, 0, 1, 1, 1], [0], [0]>} : vector<2x8x8xf32>, vector<2x10x8xf32>, vector<2x8x10xf32> -> vector<2x8x10xf32>
    "tpu.trace_stop"() : () -> ()
    %cst_66 = arith.constant 0.353553385 : f32
    %219 = vector.broadcast %cst_66 : f32 to vector<2x8x10xf32>
    %220 = arith.mulf %218, %219 : vector<2x8x10xf32>
    %cst_67 = arith.constant dense<0xFF800000> : vector<2x8xf32>
    %221 = vector.multi_reduction <maximumf>, %220, %cst_67 [2] : vector<2x8x10xf32> to vector<2x8xf32>
    %222 = vector.shape_cast %221 : vector<2x8xf32> to vector<2x8x1xf32>
    %223 = vector.broadcast %222 : vector<2x8x1xf32> to vector<2x8x10xf32>
    %224 = arith.subf %220, %223 : vector<2x8x10xf32>
    %225 = math.exp %224 : vector<2x8x10xf32>
    %cst_68 = arith.constant dense<0.000000e+00> : vector<2x8xf32>
    %226 = vector.multi_reduction <add>, %225, %cst_68 [2] : vector<2x8x10xf32> to vector<2x8xf32>
    %227 = vector.shape_cast %226 : vector<2x8xf32> to vector<2x8x1xf32>
    %228 = vector.broadcast %227 : vector<2x8x1xf32> to vector<2x8x10xf32>
    %229 = arith.divf %225, %228 : vector<2x8x10xf32>
    "tpu.trace_start"() <{level = 10 : i32, message = "bqk,bkd->bqd"}> : () -> ()
    %cst_69 = arith.constant dense<0.000000e+00> : vector<2x8x8xf32>
    %230 = tpu.matmul %229, %217, %cst_69 {dimension_numbers = #tpu.dot_dimension_numbers<[2], [1], [1], [2], [0, 0, 0, 1, 1, 2], [0], [0]>} : vector<2x8x10xf32>, vector<2x10x8xf32>, vector<2x8x8xf32> -> vector<2x8x8xf32>
    "tpu.trace_stop"() : () -> ()
    %231 = vector.shape_cast %230 : vector<2x8x8xf32> to vector<16x8xf32>
    %232 = vector.extract_strided_slice %152 {offsets = [16, 96], sizes = [8, 32], strides = [1, 1]} : vector<32x128xf32> to vector<8x32xf32>
    %cst_70 = arith.constant dense<0.000000e+00> : vector<16x32xf32>
    %233 = tpu.matmul %231, %232, %cst_70 {dimension_numbers = #tpu.dot_dimension_numbers<[1], [0], [0], [1], [0, 0, 1, 1], [], []>} : vector<16x8xf32>, vector<8x32xf32>, vector<16x32xf32> -> vector<16x32xf32>
    %234 = arith.addf %211, %233 : vector<16x32xf32>
    %235 = vector.extract_strided_slice %159 {offsets = [0, 24], sizes = [16, 8], strides = [1, 1]} : vector<16x32xf32> to vector<16x8xf32>
    %236 = vector.shape_cast %235 : vector<16x8xf32> to vector<2x8x8xf32>
    %237 = vector.extract_strided_slice %164 {offsets = [0, 24], sizes = [20, 8], strides = [1, 1]} : vector<20x64xf32> to vector<20x8xf32>
    %238 = vector.shape_cast %237 : vector<20x8xf32> to vector<2x10x8xf32>
    %239 = vector.extract_strided_slice %164 {offsets = [0, 56], sizes = [20, 8], strides = [1, 1]} : vector<20x64xf32> to vector<20x8xf32>
    %240 = vector.shape_cast %239 : vector<20x8xf32> to vector<2x10x8xf32>
    "tpu.trace_start"() <{level = 10 : i32, message = "bqd,bkd->bqk"}> : () -> ()
    %cst_71 = arith.constant dense<0.000000e+00> : vector<2x8x10xf32>
    %241 = tpu.matmul %236, %238, %cst_71 {dimension_numbers = #tpu.dot_dimension_numbers<[2], [2], [1], [1], [0, 0, 0, 1, 1, 1], [0], [0]>} : vector<2x8x8xf32>, vector<2x10x8xf32>, vector<2x8x10xf32> -> vector<2x8x10xf32>
    "tpu.trace_stop"() : () -> ()
    %cst_72 = arith.constant 0.353553385 : f32
    %242 = vector.broadcast %cst_72 : f32 to vector<2x8x10xf32>
    %243 = arith.mulf %241, %242 : vector<2x8x10xf32>
    %cst_73 = arith.constant dense<0xFF800000> : vector<2x8xf32>
    %244 = vector.multi_reduction <maximumf>, %243, %cst_73 [2] : vector<2x8x10xf32> to vector<2x8xf32>
    %245 = vector.shape_cast %244 : vector<2x8xf32> to vector<2x8x1xf32>
    %246 = vector.broadcast %245 : vector<2x8x1xf32> to vector<2x8x10xf32>
    %247 = arith.subf %243, %246 : vector<2x8x10xf32>
    %248 = math.exp %247 : vector<2x8x10xf32>
    %cst_74 = arith.constant dense<0.000000e+00> : vector<2x8xf32>
    %249 = vector.multi_reduction <add>, %248, %cst_74 [2] : vector<2x8x10xf32> to vector<2x8xf32>
    %250 = vector.shape_cast %249 : vector<2x8xf32> to vector<2x8x1xf32>
    %251 = vector.broadcast %250 : vector<2x8x1xf32> to vector<2x8x10xf32>
    %252 = arith.divf %248, %251 : vector<2x8x10xf32>
    "tpu.trace_start"() <{level = 10 : i32, message = "bqk,bkd->bqd"}> : () -> ()
    %cst_75 = arith.constant dense<0.000000e+00> : vector<2x8x8xf32>
    %253 = tpu.matmul %252, %240, %cst_75 {dimension_numbers = #tpu.dot_dimension_numbers<[2], [1], [1], [2], [0, 0, 0, 1, 1, 2], [0], [0]>} : vector<2x8x10xf32>, vector<2x10x8xf32>, vector<2x8x8xf32> -> vector<2x8x8xf32>
    "tpu.trace_stop"() : () -> ()
    %254 = vector.shape_cast %253 : vector<2x8x8xf32> to vector<16x8xf32>
    %255 = vector.extract_strided_slice %152 {offsets = [24, 96], sizes = [8, 32], strides = [1, 1]} : vector<32x128xf32> to vector<8x32xf32>
    %cst_76 = arith.constant dense<0.000000e+00> : vector<16x32xf32>
    %256 = tpu.matmul %254, %255, %cst_76 {dimension_numbers = #tpu.dot_dimension_numbers<[1], [0], [0], [1], [0, 0, 1, 1], [], []>} : vector<16x8xf32>, vector<8x32xf32>, vector<16x32xf32> -> vector<16x32xf32>
    %257 = arith.addf %234, %256 : vector<16x32xf32>
    %258 = vector.extract_strided_slice %8 {offsets = [0, 96], sizes = [1, 32], strides = [1, 1]} : vector<1x128xf32> to vector<1x32xf32>
    %259 = vector.broadcast %258 : vector<1x32xf32> to vector<16x32xf32>
    %260 = arith.addf %257, %259 : vector<16x32xf32>
    %261 = vector.shape_cast %260 : vector<16x32xf32> to vector<2x8x32xf32>
    %262 = tpu.concatenate %183, %206, %229, %252 in 2 : vector<2x8x10xf32>, vector<2x8x10xf32>, vector<2x8x10xf32>, vector<2x8x10xf32> -> vector<2x8x40xf32>
    %c0_77 = arith.constant 0 : index
    %c0_78 = arith.constant 0 : index
    %c0_79 = arith.constant 0 : index
    %c0_80 = arith.constant 0 : index
    %263 = vector.load %arg9[%c0_77, %c0_78, %c0_79, %c0_80] : memref<1x2x8x40xf32, #tpu.memory_space<vmem>>, vector<1x2x8x40xf32>
    %264 = vector.shape_cast %263 : vector<1x2x8x40xf32> to vector<2x8x40xf32>
    %265 = vector.shape_cast %262 : vector<2x8x40xf32> to vector<1x2x8x40xf32>
    tpu.vector_store %arg9[%c0_77, %c0_78, %c0_79, %c0_80], %265 {strides = array<i32>} : memref<1x2x8x40xf32, #tpu.memory_space<vmem>>, vector<1x2x8x40xf32>,
    %266 = arith.addf %150, %261 : vector<2x8x32xf32>
    %cst_81 = arith.constant dense<0.000000e+00> : vector<2x8xf32>
    %267 = vector.multi_reduction <add>, %266, %cst_81 [2] : vector<2x8x32xf32> to vector<2x8xf32>
    %268 = vector.shape_cast %267 : vector<2x8xf32> to vector<2x8x1xf32>
    %cst_82 = arith.constant 3.200000e+01 : f32
    %269 = vector.broadcast %cst_82 : f32 to vector<2x8x1xf32>
    %270 = arith.divf %268, %269 : vector<2x8x1xf32>
    %271 = vector.broadcast %270 : vector<2x8x1xf32> to vector<2x8x32xf32>
    %272 = arith.subf %266, %271 : vector<2x8x32xf32>
    %273 = arith.mulf %272, %272 : vector<2x8x32xf32>
    %cst_83 = arith.constant dense<0.000000e+00> : vector<2x8xf32>
    %274 = vector.multi_reduction <add>, %273, %cst_83 [2] : vector<2x8x32xf32> to vector<2x8xf32>
    %275 = vector.shape_cast %274 : vector<2x8xf32> to vector<2x8x1xf32>
    %cst_84 = arith.constant 3.200000e+01 : f32
    %276 = vector.broadcast %cst_84 : f32 to vector<2x8x1xf32>
    %277 = arith.divf %275, %276 : vector<2x8x1xf32>
    %278 = vector.broadcast %270 : vector<2x8x1xf32> to vector<2x8x32xf32>
    %279 = arith.subf %266, %278 : vector<2x8x32xf32>
    %cst_85 = arith.constant 9.99999996E-13 : f32
    %280 = vector.broadcast %cst_85 : f32 to vector<2x8x1xf32>
    %281 = arith.addf %277, %280 : vector<2x8x1xf32>
    %282 = math.rsqrt %281 : vector<2x8x1xf32>
    %283 = vector.broadcast %282 : vector<2x8x1xf32> to vector<2x8x32xf32>
    %284 = arith.mulf %279, %283 : vector<2x8x32xf32>
    %285 = vector.shape_cast %13 : vector<1x32xf32> to vector<1x1x32xf32>
    %286 = vector.broadcast %285 : vector<1x1x32xf32> to vector<2x8x32xf32>
    %287 = arith.mulf %284, %286 : vector<2x8x32xf32>
    %288 = vector.shape_cast %14 : vector<1x32xf32> to vector<1x1x32xf32>
    %289 = vector.broadcast %288 : vector<1x1x32xf32> to vector<2x8x32xf32>
    %290 = arith.addf %287, %289 : vector<2x8x32xf32>
    %291 = vector.shape_cast %290 : vector<2x8x32xf32> to vector<16x32xf32>
    %c0_86 = arith.constant 0 : index
    %c0_87 = arith.constant 0 : index
    %c0_88 = arith.constant 0 : index
    %292 = vector.load %arg4[%c0_86, %c0_87, %c0_88] : memref<1x32x128xf32, #tpu.memory_space<vmem>>, vector<1x32x128xf32>
    %293 = vector.shape_cast %292 : vector<1x32x128xf32> to vector<32x128xf32>
    %cst_89 = arith.constant dense<0.000000e+00> : vector<16x128xf32>
    %294 = tpu.matmul %291, %293, %cst_89 {dimension_numbers = #tpu.dot_dimension_numbers<[1], [0], [0], [1], [0, 0, 1, 1], [], []>} : vector<16x32xf32>, vector<32x128xf32>, vector<16x128xf32> -> vector<16x128xf32>
    %295 = vector.broadcast %9 : vector<1x128xf32> to vector<16x128xf32>
    %296 = arith.addf %294, %295 : vector<16x128xf32>
    %cst_90 = arith.constant 5.000000e-01 : f32
    %297 = vector.broadcast %cst_90 : f32 to vector<16x128xf32>
    %298 = arith.mulf %297, %296 : vector<16x128xf32>
    %cst_91 = arith.constant 1.41421354 : f32
    %299 = vector.broadcast %cst_91 : f32 to vector<16x128xf32>
    %300 = arith.divf %296, %299 : vector<16x128xf32>
    %cst_92 = arith.constant 0.000000e+00 : f32
    %301 = vector.broadcast %cst_92 : f32 to vector<16x128xf32>
    %302 = arith.cmpf oge, %300, %301 : vector<16x128xf32>
    %cst_93 = arith.constant 1.000000e+00 : f32
    %cst_94 = arith.constant -1.000000e+00 : f32
    %303 = vector.broadcast %cst_93 : f32 to vector<16x128xf32>
    %304 = vector.broadcast %cst_94 : f32 to vector<16x128xf32>
    %305 = arith.select %302, %303, %304 : vector<16x128xi1>, vector<16x128xf32>
    %306 = math.absf %300 : vector<16x128xf32>
    %cst_95 = arith.constant 0.327591091 : f32
    %307 = vector.broadcast %cst_95 : f32 to vector<16x128xf32>
    %308 = arith.mulf %307, %306 : vector<16x128xf32>
    %cst_96 = arith.constant 1.000000e+00 : f32
    %309 = vector.broadcast %cst_96 : f32 to vector<16x128xf32>
    %310 = arith.addf %309, %308 : vector<16x128xf32>
    %cst_97 = arith.constant 1.000000e+00 : f32
    %311 = vector.broadcast %cst_97 : f32 to vector<16x128xf32>
    %312 = arith.divf %311, %310 : vector<16x128xf32>
    %cst_98 = arith.constant 1.06140542 : f32
    %313 = vector.broadcast %cst_98 : f32 to vector<16x128xf32>
    %314 = arith.mulf %313, %312 : vector<16x128xf32>
    %cst_99 = arith.constant 1.45315206 : f32
    %315 = vector.broadcast %cst_99 : f32 to vector<16x128xf32>
    %316 = arith.subf %314, %315 : vector<16x128xf32>
    %317 = arith.mulf %316, %312 : vector<16x128xf32>
    %cst_100 = arith.constant 1.42141378 : f32
    %318 = vector.broadcast %cst_100 : f32 to vector<16x128xf32>
    %319 = arith.addf %317, %318 : vector<16x128xf32>
    %320 = arith.mulf %319, %312 : vector<16x128xf32>
    %cst_101 = arith.constant 0.284496725 : f32
    %321 = vector.broadcast %cst_101 : f32 to vector<16x128xf32>
    %322 = arith.subf %320, %321 : vector<16x128xf32>
    %323 = arith.mulf %322, %312 : vector<16x128xf32>
    %cst_102 = arith.constant 0.254829586 : f32
    %324 = vector.broadcast %cst_102 : f32 to vector<16x128xf32>
    %325 = arith.addf %323, %324 : vector<16x128xf32>
    %326 = arith.mulf %325, %312 : vector<16x128xf32>
    %cst_103 = arith.constant 0.000000e+00 : f32
    %327 = vector.broadcast %cst_103 : f32 to vector<16x128xf32>
    %328 = arith.subf %327, %306 : vector<16x128xf32>
    %329 = arith.mulf %328, %306 : vector<16x128xf32>
    %330 = math.exp %329 : vector<16x128xf32>
    %331 = arith.mulf %326, %330 : vector<16x128xf32>
    %cst_104 = arith.constant 1.000000e+00 : f32
    %332 = vector.broadcast %cst_104 : f32 to vector<16x128xf32>
    %333 = arith.subf %332, %331 : vector<16x128xf32>
    %334 = arith.mulf %305, %333 : vector<16x128xf32>
    %cst_105 = arith.constant 1.000000e+00 : f32
    %335 = vector.broadcast %cst_105 : f32 to vector<16x128xf32>
    %336 = arith.addf %335, %334 : vector<16x128xf32>
    %337 = arith.mulf %298, %336 : vector<16x128xf32>
    %c0_106 = arith.constant 0 : index
    %c0_107 = arith.constant 0 : index
    %c0_108 = arith.constant 0 : index
    %338 = vector.load %arg5[%c0_106, %c0_107, %c0_108] : memref<1x128x32xf32, #tpu.memory_space<vmem>>, vector<1x128x32xf32>
    %339 = vector.shape_cast %338 : vector<1x128x32xf32> to vector<128x32xf32>
    %cst_109 = arith.constant dense<0.000000e+00> : vector<16x32xf32>
    %340 = tpu.matmul %337, %339, %cst_109 {dimension_numbers = #tpu.dot_dimension_numbers<[1], [0], [0], [1], [0, 0, 1, 1], [], []>} : vector<16x128xf32>, vector<128x32xf32>, vector<16x32xf32> -> vector<16x32xf32>
    %341 = vector.broadcast %10 : vector<1x32xf32> to vector<16x32xf32>
    %342 = arith.addf %340, %341 : vector<16x32xf32>
    %343 = vector.shape_cast %342 : vector<16x32xf32> to vector<2x8x32xf32>
    %344 = arith.addf %290, %343 : vector<2x8x32xf32>
    %cst_110 = arith.constant dense<0.000000e+00> : vector<2x8xf32>
    %345 = vector.multi_reduction <add>, %344, %cst_110 [2] : vector<2x8x32xf32> to vector<2x8xf32>
    %346 = vector.shape_cast %345 : vector<2x8xf32> to vector<2x8x1xf32>
    %cst_111 = arith.constant 3.200000e+01 : f32
    %347 = vector.broadcast %cst_111 : f32 to vector<2x8x1xf32>
    %348 = arith.divf %346, %347 : vector<2x8x1xf32>
    %349 = vector.broadcast %348 : vector<2x8x1xf32> to vector<2x8x32xf32>
    %350 = arith.subf %344, %349 : vector<2x8x32xf32>
    %351 = arith.mulf %350, %350 : vector<2x8x32xf32>
    %cst_112 = arith.constant dense<0.000000e+00> : vector<2x8xf32>
    %352 = vector.multi_reduction <add>, %351, %cst_112 [2] : vector<2x8x32xf32> to vector<2x8xf32>
    %353 = vector.shape_cast %352 : vector<2x8xf32> to vector<2x8x1xf32>
    %cst_113 = arith.constant 3.200000e+01 : f32
    %354 = vector.broadcast %cst_113 : f32 to vector<2x8x1xf32>
    %355 = arith.divf %353, %354 : vector<2x8x1xf32>
    %356 = vector.broadcast %348 : vector<2x8x1xf32> to vector<2x8x32xf32>
    %357 = arith.subf %344, %356 : vector<2x8x32xf32>
    %cst_114 = arith.constant 9.99999996E-13 : f32
    %358 = vector.broadcast %cst_114 : f32 to vector<2x8x1xf32>
    %359 = arith.addf %355, %358 : vector<2x8x1xf32>
    %360 = math.rsqrt %359 : vector<2x8x1xf32>
    %361 = vector.broadcast %360 : vector<2x8x1xf32> to vector<2x8x32xf32>
    %362 = arith.mulf %357, %361 : vector<2x8x32xf32>
    %363 = vector.shape_cast %15 : vector<1x32xf32> to vector<1x1x32xf32>
    %364 = vector.broadcast %363 : vector<1x1x32xf32> to vector<2x8x32xf32>
    %365 = arith.mulf %362, %364 : vector<2x8x32xf32>
    %366 = vector.shape_cast %16 : vector<1x32xf32> to vector<1x1x32xf32>
    %367 = vector.broadcast %366 : vector<1x1x32xf32> to vector<2x8x32xf32>
    %368 = arith.addf %365, %367 : vector<2x8x32xf32>
    %c0_115 = arith.constant 0 : index
    %c0_116 = arith.constant 0 : index
    %c0_117 = arith.constant 0 : index
    %369 = vector.load %arg7[%c0_115, %c0_116, %c0_117] : memref<2x8x32xf32, #tpu.memory_space<vmem>>, vector<2x8x32xf32>
    tpu.vector_store %arg7[%c0_115, %c0_116, %c0_117], %368 {strides = array<i32>} : memref<2x8x32xf32, #tpu.memory_space<vmem>>, vector<2x8x32xf32>,
    return
  }
  func.func @transform_0(%arg0: i32) -> (i32, i32, i32) {
    %c0_i32 = arith.constant 0 : i32
    %c0_i32_0 = arith.constant 0 : i32
    %c0_i32_1 = arith.constant 0 : i32
    %c0_i32_2 = arith.constant 0 : i32
    return %c0_i32, %c0_i32_0, %c0_i32_1 : i32, i32, i32
  }
  func.func @transform_1(%arg0: i32) -> (i32, i32, i32) {
    %c0_i32 = arith.constant 0 : i32
    %c0_i32_0 = arith.constant 0 : i32
    %c0_i32_1 = arith.constant 0 : i32
    %c0_i32_2 = arith.constant 0 : i32
    return %c0_i32, %c0_i32_0, %c0_i32_1 : i32, i32, i32
  }
  func.func @transform_2(%arg0: i32) -> (i32, i32, i32, i32) {
    %c0_i32 = arith.constant 0 : i32
    %c0_i32_0 = arith.constant 0 : i32
    %c0_i32_1 = arith.constant 0 : i32
    %c0_i32_2 = arith.constant 0 : i32
    return %arg0, %c0_i32, %c0_i32_0, %c0_i32_1 : i32, i32, i32, i32
  }
  func.func @transform_3(%arg0: i32) -> (i32, i32, i32) {
    %c0_i32 = arith.constant 0 : i32
    %c0_i32_0 = arith.constant 0 : i32
    %c0_i32_1 = arith.constant 0 : i32
    return %arg0, %c0_i32, %c0_i32_0 : i32, i32, i32
  }
  func.func @transform_4(%arg0: i32) -> (i32, i32, i32) {
    %c0_i32 = arith.constant 0 : i32
    %c0_i32_0 = arith.constant 0 : i32
    %c0_i32_1 = arith.constant 0 : i32
    return %arg0, %c0_i32, %c0_i32_0 : i32, i32, i32
  }
  func.func @transform_5(%arg0: i32) -> (i32, i32, i32) {
    %c0_i32 = arith.constant 0 : i32
    %c0_i32_0 = arith.constant 0 : i32
    %c0_i32_1 = arith.constant 0 : i32
    return %arg0, %c0_i32, %c0_i32_0 : i32, i32, i32
  }
  func.func @transform_6(%arg0: i32) -> (i32, i32, i32) {
    %c0_i32 = arith.constant 0 : i32
    %c0_i32_0 = arith.constant 0 : i32
    %c0_i32_1 = arith.constant 0 : i32
    %c0_i32_2 = arith.constant 0 : i32
    return %c0_i32, %c0_i32_0, %c0_i32_1 : i32, i32, i32
  }
  func.func @transform_7(%arg0: i32) -> (i32, i32, i32, i32) {
    %c0_i32 = arith.constant 0 : i32
    %c0_i32_0 = arith.constant 0 : i32
    %c0_i32_1 = arith.constant 0 : i32
    %c0_i32_2 = arith.constant 0 : i32
    return %arg0, %c0_i32, %c0_i32_0, %c0_i32_1 : i32, i32, i32, i32
  }
  func.func @transform_8(%arg0: i32) -> (i32, i32, i32, i32) {
    %c0_i32 = arith.constant 0 : i32
    %c0_i32_0 = arith.constant 0 : i32
    %c0_i32_1 = arith.constant 0 : i32
    %c0_i32_2 = arith.constant 0 : i32
    return %arg0, %c0_i32, %c0_i32_0, %c0_i32_1 : i32, i32, i32, i32
  }
}

</mosaic_0001>

<llo_original>
// kernel: tpu_custom_call.1
$region0: #{tpu_custom_call.1}
  #allocation0 [shape = 'u32[]', space=smem, size = 0x4, offset = 0x4, fixed_abs, tag = 'smem constant byte address 0x4 - core index']
  #allocation1 [shape = 'u32[144,128]{1,0:T(1,128)}', space=vmem, size = 0x12000, scoped, tag = 'internal scratch']
  %s0 = inlined_call_operand.hbm [shape: f32[2,8,32], index: 0, kind: input, shape index: {}, may-alias: {0,6}]
  %s1 = inlined_call_operand.vmem [shape: f32[2,10,32], index: 1, kind: input, shape index: {}]
  %s2 = inlined_call_operand.vmem [shape: f32[2,2,32,128], index: 2, kind: input, shape index: {}]
  %s3 = inlined_call_operand.vmem [shape: f32[2,32,128], index: 3, kind: input, shape index: {}]
  %s4 = inlined_call_operand.vmem [shape: f32[2,128,32], index: 4, kind: input, shape index: {}]
  %s5 = inlined_call_operand.vmem [shape: f32[2,10,128], index: 5, kind: input, shape index: {}]
  %s6 = inlined_call_operand.hbm [shape: f32[2,8,32], index: 6, kind: output, shape index: {0}, may-alias: {0,6}]
  %s7 = inlined_call_operand.hbm [shape: f32[2,2,8,32], index: 7, kind: output, shape index: {1}]
  %s8 = inlined_call_operand.hbm [shape: f32[2,2,8,40], index: 8, kind: output, shape index: {2}]
  %9 = xla_tuple %s6, %s7, %s8
  %s10 = sld [smem:[#allocation0]]
  $region81: #{tpu_custom_call.1} parent=0
    _
  %s12 = ssub.s32 1, %s10
  %s13 = scalar_select 0, %s12, %s10
  $region1: #{tpu_custom_call.1} parent=0
    #allocation2 [shape = 'u8[8192]{0}', space=vmem, size = 0x2000, scoped, tag = 'input window, operand 0, single buffered']
    #allocation3 [shape = 's32[2]{0}', space=sflag, size = 0x8, scoped, tag = 'scoped memory for tpu_custom_call.1']
    #allocation4 [shape = 's32[2]{0}', space=sflag, size = 0x8, scoped, tag = 'scoped memory for tpu_custom_call.1']
    #allocation5 [shape = 'u8[8192]{0}', space=vmem, size = 0x2000, scoped, tag = 'output window, operand 0, single buffered']
    #allocation6 [shape = 'u8[16384]{0}', space=vmem, size = 0x4000, scoped, tag = 'output window, operand 1']
    #allocation7 [shape = 's32[2]{0}', space=sflag, size = 0x8, scoped, tag = 'scoped memory for tpu_custom_call.1']
    #allocation8 [shape = 'u8[16384]{0}', space=vmem, size = 0x4000, scoped, tag = 'output window, operand 2']
    %14 = vsyncpa [#allocation3], 0
    %15 = vsyncpa [#allocation4], 0
    %16 = vsyncpa [#allocation7], 0
    %s17 = scalar_lea.sflag [#allocation7], 1
    %18 = vsyncpa %s17, 0
    loop: start=0, step=1, limit=4
    $region2: #{tpu_custom_call.1} parent=1 // loop_pre_header
      _
    $region3: #{tpu_custom_call.1} parent=1 // loop_header
      %s20 = sphi 0, %s24
      %p21 = scmp.ge.s32.totalorder %s20, 4
      %s28 = sphi 0, %s28
      %s30 = sphi 0, %s28
      %s31 = sphi 0, %s30
      %s45 = sphi 0, %s31
      %s49 = sphi 0, %s49
      %s51 = sphi 0, %s49
      %s52 = sphi 0, %s51
      %s66 = sphi 0, %s52
      %s72 = sphi 0, %s74
      %s75 = sphi 0, %s72
      %s76 = sphi 0, %s75
      %s92 = sphi 0, %s76
      %s98 = sphi 0, %s100
      %s101 = sphi 0, %s98
      %s102 = sphi 0, %s101
      %s118 = sphi 0, %s102
      %s124 = sphi 0, %s126
      %s127 = sphi 0, %s124
      %s128 = sphi 0, %s127
      %s144 = sphi 0, %s128
      %s150 = sphi 0, %s152
      %s153 = sphi 0, %s150
      %s154 = sphi 0, %s153
      %s170 = sphi 0, %s154
      %s174 = sphi 0, %s174
      %s176 = sphi 0, %s174
      %s177 = sphi 0, %s176
      %s191 = sphi 0, %s177
      %s197 = sphi 0, %s199
      %s200 = sphi 0, %s197
      %s201 = sphi 0, %s200
      %s217 = sphi 0, %s201
      %s223 = sphi 0, %s225
      %s226 = sphi 0, %s223
      %s227 = sphi 0, %s226
      %s243 = sphi 0, %s227
    $region4: #{tpu_custom_call.1} parent=1 // loop_header_branch
      %23 = sbr.rel (%p21) target = $region8
    $region5: #{tpu_custom_call.1} parent=1 // loop_body
      %s25 = ssub.s32 %s20, 1
      %s26 = ssub.s32 %s20, 2
      %s27 = sadd.s32 %s20, 1
      %s29 = sadd.s32 %s28, 1
      %p32 = scmp.eq.s32.totalorder %s20, 1
      %p33 = scmp.ne.s32.totalorder %s28, %s30
      %p34 = scmp.eq.s32.totalorder %s20, 0
      %p35 = por %p33, %p34
      %p36 = scmp.ne.s32.totalorder %s28, %s30
      %p37 = scmp.eq.s32.totalorder %s25, 1
      %p38 = por %p36, %p37
      %p39 = scmp.ne.s32.totalorder %s30, %s31
      %p40 = scmp.eq.s32.totalorder %s25, 0
      %p41 = por %p39, %p40
      %p42 = scmp.ne.s32.totalorder %s30, %s31
      %p43 = scmp.eq.s32.totalorder %s26, 1
      %p44 = por %p42, %p43
      %p46 = scmp.ne.s32.totalorder %s31, %s45
      %p47 = scmp.eq.s32.totalorder %s26, 0
      %p48 = por %p46, %p47
      %s50 = sadd.s32 %s49, 1
      %p53 = scmp.eq.s32.totalorder %s20, 1
      %p54 = scmp.ne.s32.totalorder %s49, %s51
      %p55 = scmp.eq.s32.totalorder %s20, 0
      %p56 = por %p54, %p55
      %p57 = scmp.ne.s32.totalorder %s49, %s51
      %p58 = scmp.eq.s32.totalorder %s25, 1
      %p59 = por %p57, %p58
      %p60 = scmp.ne.s32.totalorder %s51, %s52
      %p61 = scmp.eq.s32.totalorder %s25, 0
      %p62 = por %p60, %p61
      %p63 = scmp.ne.s32.totalorder %s51, %s52
      %p64 = scmp.eq.s32.totalorder %s26, 1
      %p65 = por %p63, %p64
      %p67 = scmp.ne.s32.totalorder %s52, %s66
      %p68 = scmp.eq.s32.totalorder %s26, 0
      %p69 = por %p67, %p68
      %s70 = ssub.s32 %s20, %s27
      %p71 = scmp.eq.s32.totalorder %s70, 0
      %s73 = sadd.s32 %s72, 1
      %s74 = scalar_select %p71, %s72, %s73
      %p77 = pneg %p71
      %p78 = scmp.eq.s32.totalorder %s20, 1
      %p79 = por %p77, %p78
      %p80 = scmp.ne.s32.totalorder %s72, %s75
      %p81 = scmp.eq.s32.totalorder %s20, 0
      %p82 = por %p80, %p81
      %p83 = scmp.ne.s32.totalorder %s72, %s75
      %p84 = scmp.eq.s32.totalorder %s25, 1
      %p85 = por %p83, %p84
      %p86 = scmp.ne.s32.totalorder %s75, %s76
      %p87 = scmp.eq.s32.totalorder %s25, 0
      %p88 = por %p86, %p87
      %p89 = scmp.ne.s32.totalorder %s75, %s76
      %p90 = scmp.eq.s32.totalorder %s26, 1
      %p91 = por %p89, %p90
      %p93 = scmp.ne.s32.totalorder %s76, %s92
      %p94 = scmp.eq.s32.totalorder %s26, 0
      %p95 = por %p93, %p94
      %s96 = ssub.s32 %s20, %s27
      %p97 = scmp.eq.s32.totalorder %s96, 0
      %s99 = sadd.s32 %s98, 1
      %s100 = scalar_select %p97, %s98, %s99
      %p103 = pneg %p97
      %p104 = scmp.eq.s32.totalorder %s20, 1
      %p105 = por %p103, %p104
      %p106 = scmp.ne.s32.totalorder %s98, %s101
      %p107 = scmp.eq.s32.totalorder %s20, 0
      %p108 = por %p106, %p107
      %p109 = scmp.ne.s32.totalorder %s98, %s101
      %p110 = scmp.eq.s32.totalorder %s25, 1
      %p111 = por %p109, %p110
      %p112 = scmp.ne.s32.totalorder %s101, %s102
      %p113 = scmp.eq.s32.totalorder %s25, 0
      %p114 = por %p112, %p113
      %p115 = scmp.ne.s32.totalorder %s101, %s102
      %p116 = scmp.eq.s32.totalorder %s26, 1
      %p117 = por %p115, %p116
      %p119 = scmp.ne.s32.totalorder %s102, %s118
      %p120 = scmp.eq.s32.totalorder %s26, 0
      %p121 = por %p119, %p120
      %s122 = ssub.s32 %s20, %s27
      %p123 = scmp.eq.s32.totalorder %s122, 0
      %s125 = sadd.s32 %s124, 1
      %s126 = scalar_select %p123, %s124, %s125
      %p129 = pneg %p123
      %p130 = scmp.eq.s32.totalorder %s20, 1
      %p131 = por %p129, %p130
      %p132 = scmp.ne.s32.totalorder %s124, %s127
      %p133 = scmp.eq.s32.totalorder %s20, 0
      %p134 = por %p132, %p133
      %p135 = scmp.ne.s32.totalorder %s124, %s127
      %p136 = scmp.eq.s32.totalorder %s25, 1
      %p137 = por %p135, %p136
      %p138 = scmp.ne.s32.totalorder %s127, %s128
      %p139 = scmp.eq.s32.totalorder %s25, 0
      %p140 = por %p138, %p139
      %p141 = scmp.ne.s32.totalorder %s127, %s128
      %p142 = scmp.eq.s32.totalorder %s26, 1
      %p143 = por %p141, %p142
      %p145 = scmp.ne.s32.totalorder %s128, %s144
      %p146 = scmp.eq.s32.totalorder %s26, 0
      %p147 = por %p145, %p146
      %s148 = ssub.s32 %s20, %s27
      %p149 = scmp.eq.s32.totalorder %s148, 0
      %s151 = sadd.s32 %s150, 1
      %s152 = scalar_select %p149, %s150, %s151
      %p155 = pneg %p149
      %p156 = scmp.eq.s32.totalorder %s20, 1
      %p157 = por %p155, %p156
      %p158 = scmp.ne.s32.totalorder %s150, %s153
      %p159 = scmp.eq.s32.totalorder %s20, 0
      %p160 = por %p158, %p159
      %p161 = scmp.ne.s32.totalorder %s150, %s153
      %p162 = scmp.eq.s32.totalorder %s25, 1
      %p163 = por %p161, %p162
      %p164 = scmp.ne.s32.totalorder %s153, %s154
      %p165 = scmp.eq.s32.totalorder %s25, 0
      %p166 = por %p164, %p165
      %p167 = scmp.ne.s32.totalorder %s153, %s154
      %p168 = scmp.eq.s32.totalorder %s26, 1
      %p169 = por %p167, %p168
      %p171 = scmp.ne.s32.totalorder %s154, %s170
      %p172 = scmp.eq.s32.totalorder %s26, 0
      %p173 = por %p171, %p172
      %s175 = sadd.s32 %s174, 1
      %p178 = scmp.eq.s32.totalorder %s20, 1
      %p179 = scmp.ne.s32.totalorder %s174, %s176
      %p180 = scmp.eq.s32.totalorder %s20, 0
      %p181 = por %p179, %p180
      %p182 = scmp.ne.s32.totalorder %s174, %s176
      %p183 = scmp.eq.s32.totalorder %s25, 1
      %p184 = por %p182, %p183
      %p185 = scmp.ne.s32.totalorder %s176, %s177
      %p186 = scmp.eq.s32.totalorder %s25, 0
      %p187 = por %p185, %p186
      %p188 = scmp.ne.s32.totalorder %s176, %s177
      %p189 = scmp.eq.s32.totalorder %s26, 1
      %p190 = por %p188, %p189
      %p192 = scmp.ne.s32.totalorder %s177, %s191
      %p193 = scmp.eq.s32.totalorder %s26, 0
      %p194 = por %p192, %p193
      %s195 = ssub.s32 %s20, %s27
      %p196 = scmp.eq.s32.totalorder %s195, 0
      %s198 = sadd.s32 %s197, 1
      %s199 = scalar_select %p196, %s197, %s198
      %p202 = pneg %p196
      %p203 = scmp.eq.s32.totalorder %s20, 1
      %p204 = por %p202, %p203
      %p205 = scmp.ne.s32.totalorder %s197, %s200
      %p206 = scmp.eq.s32.totalorder %s20, 0
      %p207 = por %p205, %p206
      %p208 = scmp.ne.s32.totalorder %s197, %s200
      %p209 = scmp.eq.s32.totalorder %s25, 1
      %p210 = por %p208, %p209
      %p211 = scmp.ne.s32.totalorder %s200, %s201
      %p212 = scmp.eq.s32.totalorder %s25, 0
      %p213 = por %p211, %p212
      %p214 = scmp.ne.s32.totalorder %s200, %s201
      %p215 = scmp.eq.s32.totalorder %s26, 1
      %p216 = por %p214, %p215
      %p218 = scmp.ne.s32.totalorder %s201, %s217
      %p219 = scmp.eq.s32.totalorder %s26, 0
      %p220 = por %p218, %p219
      %s221 = ssub.s32 %s20, %s27
      %p222 = scmp.eq.s32.totalorder %s221, 0
      %s224 = sadd.s32 %s223, 1
      %s225 = scalar_select %p222, %s223, %s224
      %p228 = pneg %p222
      %p229 = scmp.eq.s32.totalorder %s20, 1
      %p230 = por %p228, %p229
      %p231 = scmp.ne.s32.totalorder %s223, %s226
      %p232 = scmp.eq.s32.totalorder %s20, 0
      %p233 = por %p231, %p232
      %p234 = scmp.ne.s32.totalorder %s223, %s226
      %p235 = scmp.eq.s32.totalorder %s25, 1
      %p236 = por %p234, %p235
      %p237 = scmp.ne.s32.totalorder %s226, %s227
      %p238 = scmp.eq.s32.totalorder %s25, 0
      %p239 = por %p237, %p238
      %p240 = scmp.ne.s32.totalorder %s226, %s227
      %p241 = scmp.eq.s32.totalorder %s26, 1
      %p242 = por %p240, %p241
      %p244 = scmp.ne.s32.totalorder %s227, %s243
      %p245 = scmp.eq.s32.totalorder %s26, 0
      %p246 = por %p244, %p245
      %p247 = scmp.le.s32.totalorder 1, %s20
      %p248 = scmp.lt.s32.totalorder %s20, 3
      %p249 = pnand %p247, %p248
      %p250 = pneg %p249
      // Predicated region
      $region9: #{tpu_custom_call.1} parent=5 // pred_check
        _
      $region10: #{tpu_custom_call.1} parent=5 // pred_check_branch
        %252 = sbr.rel (%p249) target = $region12
      $region11: #{tpu_custom_call.1} parent=5 // pred_region
        %s253 = ssub.s32 %s20, 1
        // Predicated region
        $region13: #{tpu_custom_call.1} parent=11 // pred_check
          %p254 = pneg %p41
        $region14: #{tpu_custom_call.1} parent=11 // pred_check_branch
          %256 = sbr.rel (%p254) target = $region16
        $region15: #{tpu_custom_call.1} parent=11 // pred_region
          %s258 = ssub.s32 256, 256
          %259 = vsyncadd [#allocation3], %s258
          %s260 = sshll.u32 [#allocation2], 4
          %s261 = int_to_ptr.vmem [resolvable:$true] %s260
          %266 = dma.hbm_to_vmem [thread:$0]  %s0, 256, %s261, [#allocation3], 128, 128, 8
        $region16: #{tpu_custom_call.1} parent=11 // pred_fallthru
          _
        // Predicated region
        $region17: #{tpu_custom_call.1} parent=11 // pred_check
          %p267 = pneg %p62
        $region18: #{tpu_custom_call.1} parent=11 // pred_check_branch
          %269 = sbr.rel (%p267) target = $region20
        $region19: #{tpu_custom_call.1} parent=11 // pred_region
          _
        $region20: #{tpu_custom_call.1} parent=11 // pred_fallthru
          _
      $region12: #{tpu_custom_call.1} parent=5 // pred_fallthru
        _
      %p270 = scmp.lt.s32.totalorder %s20, 2
      // Predicated region
      $region21: #{tpu_custom_call.1} parent=5 // pred_check
        %p271 = pneg %p270
      $region22: #{tpu_custom_call.1} parent=5 // pred_check_branch
        %273 = sbr.rel (%p271) target = $region24
      $region23: #{tpu_custom_call.1} parent=5 // pred_region
        // Predicated region
        $region25: #{tpu_custom_call.1} parent=23 // pred_check
          %p274 = pneg %p82
        $region26: #{tpu_custom_call.1} parent=23 // pred_check_branch
          %276 = sbr.rel (%p274) target = $region28
        $region27: #{tpu_custom_call.1} parent=23 // pred_region
          %p277 = scmp.lt.s32.totalorder %s20, 1
          %s278 = scalar_select %p277, %s20, 1
          %s279 = smul.addr %s278, 8
          %s280 = smul.addr %s279, 8
          %s281 = scalar_lea.vmem %s2, %s280
        $region28: #{tpu_custom_call.1} parent=23 // pred_fallthru
          _
        // Predicated region
        $region29: #{tpu_custom_call.1} parent=23 // pred_check
          %p282 = pneg %p108
        $region30: #{tpu_custom_call.1} parent=23 // pred_check_branch
          %284 = sbr.rel (%p282) target = $region32
        $region31: #{tpu_custom_call.1} parent=23 // pred_region
          %p285 = scmp.lt.s32.totalorder %s20, 1
          %s286 = scalar_select %p285, %s20, 1
          %s287 = smul.addr %s286, 4
          %s288 = smul.addr %s287, 8
          %s289 = scalar_lea.vmem %s3, %s288
        $region32: #{tpu_custom_call.1} parent=23 // pred_fallthru
          _
        // Predicated region
        $region33: #{tpu_custom_call.1} parent=23 // pred_check
          %p290 = pneg %p134
        $region34: #{tpu_custom_call.1} parent=23 // pred_check_branch
          %292 = sbr.rel (%p290) target = $region36
        $region35: #{tpu_custom_call.1} parent=23 // pred_region
          %p293 = scmp.lt.s32.totalorder %s20, 1
          %s294 = scalar_select %p293, %s20, 1
          %s295 = smul.addr %s294, 16
          %s296 = smul.addr %s295, 8
          %s297 = scalar_lea.vmem %s4, %s296
        $region36: #{tpu_custom_call.1} parent=23 // pred_fallthru
          _
        // Predicated region
        $region37: #{tpu_custom_call.1} parent=23 // pred_check
          %p298 = pneg %p160
        $region38: #{tpu_custom_call.1} parent=23 // pred_check_branch
          %300 = sbr.rel (%p298) target = $region40
        $region39: #{tpu_custom_call.1} parent=23 // pred_region
          %p301 = scmp.lt.s32.totalorder %s20, 1
          %s302 = scalar_select %p301, %s20, 1
          %s303 = smul.addr %s302, 2
          %s304 = smul.addr %s303, 8
          %s305 = scalar_lea.vmem %s5, %s304
        $region40: #{tpu_custom_call.1} parent=23 // pred_fallthru
          _
      $region24: #{tpu_custom_call.1} parent=5 // pred_fallthru
        _
      %p306 = scmp.le.s32.totalorder 1, %s20
      %p307 = scmp.lt.s32.totalorder %s20, 3
      %p308 = pnand %p306, %p307
      %p309 = pneg %p308
      // Predicated region
      $region41: #{tpu_custom_call.1} parent=5 // pred_check
        _
      $region42: #{tpu_custom_call.1} parent=5 // pred_check_branch
        %311 = sbr.rel (%p308) target = $region44
      $region43: #{tpu_custom_call.1} parent=5 // pred_region
        %s312 = ssub.s32 %s20, 1
        // Predicated region
        $region45: #{tpu_custom_call.1} parent=43 // pred_check
          %p313 = pneg %p41
        $region46: #{tpu_custom_call.1} parent=43 // pred_check_branch
          %315 = sbr.rel (%p313) target = $region48
        $region47: #{tpu_custom_call.1} parent=43 // pred_region
          %316 = dma.done [#allocation3], 256
        $region48: #{tpu_custom_call.1} parent=43 // pred_fallthru
          _
        %p317 = pneg %p41
        %p318 = pneg %p38
        %p319 = pneg %p62
        %p320 = pneg %p59
        %p321 = scmp.lt.s32.totalorder %s25, 1
        %s322 = scalar_select %p321, %s25, 1
        %s323 = smul.addr %s322, 8
        %s324 = smul.addr %s323, 8
        %s325 = scalar_lea.vmem %s2, %s324
        %p326 = pneg %p88
        %p327 = pneg %p85
        %p328 = scmp.lt.s32.totalorder %s25, 1
        %s329 = scalar_select %p328, %s25, 1
        %s330 = smul.addr %s329, 4
        %s331 = smul.addr %s330, 8
        %s332 = scalar_lea.vmem %s3, %s331
        %p333 = pneg %p114
        %p334 = pneg %p111
        %p335 = scmp.lt.s32.totalorder %s25, 1
        %s336 = scalar_select %p335, %s25, 1
        %s337 = smul.addr %s336, 16
        %s338 = smul.addr %s337, 8
        %s339 = scalar_lea.vmem %s4, %s338
        %p340 = pneg %p140
        %p341 = pneg %p137
        %p342 = scmp.lt.s32.totalorder %s25, 1
        %s343 = scalar_select %p342, %s25, 1
        %s344 = smul.addr %s343, 2
        %s345 = smul.addr %s344, 8
        %s346 = scalar_lea.vmem %s5, %s345
        %p347 = pneg %p166
        %p348 = pneg %p163
        %p349 = pneg %p187
        %p350 = pneg %p184
        %p351 = pneg %p213
        %p352 = pneg %p210
        %s353 = sand.u32 %s25, 1
        %s354 = scalar_lea.sflag [#allocation7], %s353
        %s355 = sand.u32 %s200, 1
        %s356 = smul.addr %s355, 16
        %s357 = scalar_lea.vmem [#allocation6], %s356
        %p358 = pneg %p239
        %p359 = pneg %p236
        %s360 = sand.u32 %s25, 1
        %s361 = scalar_lea.sflag [#allocation7], %s360
        %s362 = sand.u32 %s226, 1
        %s363 = smul.addr %s362, 16
        %s364 = scalar_lea.vmem [#allocation8], %s363
        %p365 = scmp.lt.s32.totalorder %s25, 1
        %s366 = scalar_select %p365, %s25, 1
        %s367 = smul.addr %s366, 8
        %s368 = smul.addr %s367, 8
        %s369 = scalar_lea.vmem %s2, %s368
        %p370 = scmp.lt.s32.totalorder %s25, 1
        %s371 = scalar_select %p370, %s25, 1
        %s372 = smul.addr %s371, 4
        %s373 = smul.addr %s372, 8
        %s374 = scalar_lea.vmem %s3, %s373
        %p375 = scmp.lt.s32.totalorder %s25, 1
        %s376 = scalar_select %p375, %s25, 1
        %s377 = smul.addr %s376, 16
        %s378 = smul.addr %s377, 8
        %s379 = scalar_lea.vmem %s4, %s378
        %p380 = scmp.lt.s32.totalorder %s25, 1
        %s381 = scalar_select %p380, %s25, 1
        %s382 = smul.addr %s381, 2
        %s383 = smul.addr %s382, 8
        %s384 = scalar_lea.vmem %s5, %s383
        %p385 = scmp.eq.s32.totalorder %s25, 0
        // Predicated region
        $region49: #{tpu_custom_call.1} parent=43 // pred_check
          %p386 = pneg %p385
        $region50: #{tpu_custom_call.1} parent=43 // pred_check_branch
          %388 = sbr.rel (%p386) target = $region52
        $region51: #{tpu_custom_call.1} parent=43 // pred_region
          %v389 = vld [vmem:[#allocation2] sm:$0xff]
          %v390 = vld [vmem:[#allocation2 + $0x8] sm:$0xff]
          %vm391 = vcmask 261120
          %392 = vst.msk [vmem:[#allocation5] sm:$0xff] %vm391, %v389
          %393 = vst.msk [vmem:[#allocation5 + $0x8] sm:$0xff] %vm391, %v390
        $region52: #{tpu_custom_call.1} parent=43 // pred_fallthru
          _
        %v394 = vld [vmem:[#allocation5] sm:$0xff]
        %v395 = vld [vmem:[#allocation5 + $0x8] sm:$0xff]
        %v396 = vld [vmem:[%s1] sm:$0xff]
        %v397 = vld [vmem:[%s1 + $0x8] sm:$0x3]
        %v398 = vld [vmem:[%s1 + $0x10] sm:$0xff]
        %v399 = vld [vmem:[%s1 + $0x18] sm:$0x3]
        %v400 = vld [vmem:[%s384] sm:$0xff]
        %v401 = vld [vmem:[%s384 + $0x8] sm:$0x3]
        %v402 = vld [vmem:[%s369] sm:$0xff]
        %v403 = vld [vmem:[%s369 + $0x8] sm:$0xff]
        %v404 = vld [vmem:[%s369 + $0x10] sm:$0xff]
        %v405 = vld [vmem:[%s369 + $0x18] sm:$0xff]
        %v406 = vlaneseq
        %v407 = vshrl.u32 %v406, 7
        %v408 = vsub.s32 0, %v407
        %v409 = vrot.slane %v400, %v408
        %vm410 = vcmask 261120
        %v412 = vsel %vm410, %v394, 0
        %v415 = vsel %vm410, %v395, 0
        %417 = vmatprep.subr.mxu0 0.0
        %418 = vmatpush1.msra.mxu0 0.0
        %419 = vmatprep.subr.mxu0 0.0
        %420 = vmatpush1.msra.mxu0 0.0
        %421 = vmatprep.subr.mxu0 0.0
        %422 = vmatpush1.msra.mxu0 0.0
        %423 = vmatprep.subr.mxu0 0.0
        %424 = vmatpush1.msra.mxu0 0.0
        %425 = vmatprep.subr.mxu0 0.0
        %426 = vmatpush1.msra.mxu0 0.0
        %427 = vmatprep.subr.mxu0 0.0
        %428 = vmatpush1.msra.mxu0 0.0
        %429 = vmatprep.subr.mxu0 0.0
        %430 = vmatpush1.msra.mxu0 0.0
        %431 = vmatprep.subr.mxu0 0.0
        %432 = vmatpush1.msra.mxu0 0.0
        %433 = vmatprep.subr.mxu0 0.0
        %434 = vmatpush1.msra.mxu0 0.0
        %435 = vmatprep.subr.mxu0 0.0
        %436 = vmatpush1.msra.mxu0 0.0
        %437 = vmatprep.subr.mxu0 0.0
        %438 = vmatpush1.msra.mxu0 0.0
        %439 = vmatprep.subr.mxu0 0.0
        %440 = vmatpush1.msra.mxu0 0.0
        %441 = vmatprep.subr.mxu0 0.0
        %442 = vmatpush1.msra.mxu0 %v405
        %443 = vmatprep.subr.mxu0 0.0
        %444 = vmatpush1.msra.mxu0 %v404
        %445 = vmatprep.subr.mxu0 0.0
        %446 = vmatpush1.msra.mxu0 %v403
        %447 = vmatprep.subr.mxu0 0.0
        %448 = vmatpush1.msra.mxu0 %v402
        %449 = vmatprep.subr.mxu0 0.0
        %450 = vmatpush2.msra.mxu0 0.0
        %451 = vmatprep.subr.mxu0 0.0
        %452 = vmatpush2.msra.mxu0 0.0
        %453 = vmatprep.subr.mxu0 0.0
        %454 = vmatpush2.msra.mxu0 0.0
        %455 = vmatprep.subr.mxu0 0.0
        %456 = vmatpush2.msra.mxu0 0.0
        %457 = vmatprep.subr.mxu0 0.0
        %458 = vmatpush2.msra.mxu0 0.0
        %459 = vmatprep.subr.mxu0 0.0
        %460 = vmatpush2.msra.mxu0 0.0
        %461 = vmatprep.subr.mxu0 0.0
        %462 = vmatpush2.msra.mxu0 0.0
        %463 = vmatprep.subr.mxu0 0.0
        %464 = vmatpush2.msra.mxu0 0.0
        %465 = vmatprep.subr.mxu0 0.0
        %466 = vmatpush2.msra.mxu0 0.0
        %467 = vmatprep.subr.mxu0 0.0
        %468 = vmatpush2.msra.mxu0 0.0
        %469 = vmatprep.subr.mxu0 0.0
        %470 = vmatpush2.msra.mxu0 0.0
        %471 = vmatprep.subr.mxu0 0.0
        %472 = vmatpush2.msra.mxu0 0.0
        %473 = vmatprep.subr.mxu0 0.0
        %474 = vmatpush2.msra.mxu0 0.0
        %475 = vmatprep.subr.mxu0 0.0
        %476 = vmatpush2.msra.mxu0 0.0
        %477 = vmatprep.subr.mxu0 0.0
        %478 = vmatpush2.msra.mxu0 0.0
        %479 = vmatprep.subr.mxu0 0.0
        %480 = vmatpush2.msra.mxu0 0.0
        %481 = vmatprep.mubr.f32.mxu0 0.0
        %482 = vmatmul.mubr.f32.gmra.mxu0 %v412
        %v483 = vpop.f32.mrf.mxu0
        %v484 = vadd.f32 %v409, %v483
        %v485 = vpop.f32.mrf.mxu0
        %486 = vmatprep.mubr.f32.mxu0 0.0
        %487 = vmatmul.mubr.f32.gmra.mxu0 %v415
        %v488 = vpop.f32.mrf.mxu0
        %v489 = vadd.f32 %v409, %v488
        %v490 = vpop.f32.mrf.mxu0
        %491 = vdwg.mxu0
        %493 = vrot.lane.b32.xlu0 %v484, 96
        %v494 = vpop.permute.xlu0 %493
        %vm495 = vcmask 64512
        %v496 = vsel %vm495, %v484, 0
        %v498 = vsel %vm495, %v494, 0
        %500 = vmatprep.subr.mxu0 0.0
        %501 = vmatpush1.xpose.msra.mxu0 0.0
        %502 = vmatprep.subr.mxu0 0.0
        %503 = vmatpush1.xpose.msra.mxu0 0.0
        %504 = vmatprep.subr.mxu0 0.0
        %505 = vmatpush1.xpose.msra.mxu0 0.0
        %506 = vmatprep.subr.mxu0 0.0
        %507 = vmatpush1.xpose.msra.mxu0 0.0
        %508 = vmatprep.subr.mxu0 0.0
        %509 = vmatpush1.xpose.msra.mxu0 0.0
        %510 = vmatprep.subr.mxu0 0.0
        %511 = vmatpush1.xpose.msra.mxu0 0.0
        %512 = vmatprep.subr.mxu0 0.0
        %513 = vmatpush1.xpose.msra.mxu0 0.0
        %514 = vmatprep.subr.mxu0 0.0
        %515 = vmatpush1.xpose.msra.mxu0 0.0
        %516 = vmatprep.subr.mxu0 0.0
        %517 = vmatpush1.xpose.msra.mxu0 0.0
        %518 = vmatprep.subr.mxu0 0.0
        %519 = vmatpush1.xpose.msra.mxu0 0.0
        %520 = vmatprep.subr.mxu0 0.0
        %521 = vmatpush1.xpose.msra.mxu0 0.0
        %522 = vmatprep.subr.mxu0 0.0
        %523 = vmatpush1.xpose.msra.mxu0 0.0
        %524 = vmatprep.subr.mxu0 0.0
        %525 = vmatpush1.xpose.msra.mxu0 0.0
        %526 = vmatprep.subr.mxu0 0.0
        %527 = vmatpush1.xpose.msra.mxu0 0.0
        %528 = vmatprep.subr.mxu0 0.0
        %529 = vmatpush1.xpose.msra.mxu0 0.0
        %530 = vmatprep.subr.mxu0 0.0
        %531 = vmatpush1.xpose.msra.mxu0 %v498
        %532 = vmatprep.subr.mxu0 0.0
        %533 = vmatpush2.xpose.msra.mxu0 0.0
        %534 = vmatprep.subr.mxu0 0.0
        %535 = vmatpush2.xpose.msra.mxu0 0.0
        %536 = vmatprep.subr.mxu0 0.0
        %537 = vmatpush2.xpose.msra.mxu0 0.0
        %538 = vmatprep.subr.mxu0 0.0
        %539 = vmatpush2.xpose.msra.mxu0 0.0
        %540 = vmatprep.subr.mxu0 0.0
        %541 = vmatpush2.xpose.msra.mxu0 0.0
        %542 = vmatprep.subr.mxu0 0.0
        %543 = vmatpush2.xpose.msra.mxu0 0.0
        %544 = vmatprep.subr.mxu0 0.0
        %545 = vmatpush2.xpose.msra.mxu0 0.0
        %546 = vmatprep.subr.mxu0 0.0
        %547 = vmatpush2.xpose.msra.mxu0 0.0
        %548 = vmatprep.subr.mxu0 0.0
        %549 = vmatpush2.xpose.msra.mxu0 0.0
        %550 = vmatprep.subr.mxu0 0.0
        %551 = vmatpush2.xpose.msra.mxu0 0.0
        %552 = vmatprep.subr.mxu0 0.0
        %553 = vmatpush2.xpose.msra.mxu0 0.0
        %554 = vmatprep.subr.mxu0 0.0
        %555 = vmatpush2.xpose.msra.mxu0 0.0
        %556 = vmatprep.subr.mxu0 0.0
        %557 = vmatpush2.xpose.msra.mxu0 0.0
        %558 = vmatprep.subr.mxu0 0.0
        %559 = vmatpush2.xpose.msra.mxu0 0.0
        %560 = vmatprep.subr.mxu0 0.0
        %561 = vmatpush2.xpose.msra.mxu0 0.0
        %562 = vmatprep.subr.mxu0 0.0
        %563 = vmatpush2.xpose.msra.mxu0 0.0
        %564 = vmatprep.mubr.f32.mxu0 0.0
        %565 = vmatmul.mubr.f32.gmra.mxu0 %v496
        %v566 = vpop.f32.mrf.mxu0
        %v567 = vadd.f32 0.0, %v566
        %v568 = vpop.f32.mrf.mxu0
        %569 = vdwg.mxu0
        %571 = vrot.lane.b32.xlu0 %v489, 96
        %v572 = vpop.permute.xlu0 %571
        %v573 = vsel %vm495, %v489, 0
        %v575 = vsel %vm495, %v572, 0
        %577 = vmatprep.subr.mxu0 0.0
        %578 = vmatpush1.xpose.msra.mxu0 0.0
        %579 = vmatprep.subr.mxu0 0.0
        %580 = vmatpush1.xpose.msra.mxu0 0.0
        %581 = vmatprep.subr.mxu0 0.0
        %582 = vmatpush1.xpose.msra.mxu0 0.0
        %583 = vmatprep.subr.mxu0 0.0
        %584 = vmatpush1.xpose.msra.mxu0 0.0
        %585 = vmatprep.subr.mxu0 0.0
        %586 = vmatpush1.xpose.msra.mxu0 0.0
        %587 = vmatprep.subr.mxu0 0.0
        %588 = vmatpush1.xpose.msra.mxu0 0.0
        %589 = vmatprep.subr.mxu0 0.0
        %590 = vmatpush1.xpose.msra.mxu0 0.0
        %591 = vmatprep.subr.mxu0 0.0
        %592 = vmatpush1.xpose.msra.mxu0 0.0
        %593 = vmatprep.subr.mxu0 0.0
        %594 = vmatpush1.xpose.msra.mxu0 0.0
        %595 = vmatprep.subr.mxu0 0.0
        %596 = vmatpush1.xpose.msra.mxu0 0.0
        %597 = vmatprep.subr.mxu0 0.0
        %598 = vmatpush1.xpose.msra.mxu0 0.0
        %599 = vmatprep.subr.mxu0 0.0
        %600 = vmatpush1.xpose.msra.mxu0 0.0
        %601 = vmatprep.subr.mxu0 0.0
        %602 = vmatpush1.xpose.msra.mxu0 0.0
        %603 = vmatprep.subr.mxu0 0.0
        %604 = vmatpush1.xpose.msra.mxu0 0.0
        %605 = vmatprep.subr.mxu0 0.0
        %606 = vmatpush1.xpose.msra.mxu0 0.0
        %607 = vmatprep.subr.mxu0 0.0
        %608 = vmatpush1.xpose.msra.mxu0 %v575
        %609 = vmatprep.subr.mxu0 0.0
        %610 = vmatpush2.xpose.msra.mxu0 0.0
        %611 = vmatprep.subr.mxu0 0.0
        %612 = vmatpush2.xpose.msra.mxu0 0.0
        %613 = vmatprep.subr.mxu0 0.0
        %614 = vmatpush2.xpose.msra.mxu0 0.0
        %615 = vmatprep.subr.mxu0 0.0
        %616 = vmatpush2.xpose.msra.mxu0 0.0
        %617 = vmatprep.subr.mxu0 0.0
        %618 = vmatpush2.xpose.msra.mxu0 0.0
        %619 = vmatprep.subr.mxu0 0.0
        %620 = vmatpush2.xpose.msra.mxu0 0.0
        %621 = vmatprep.subr.mxu0 0.0
        %622 = vmatpush2.xpose.msra.mxu0 0.0
        %623 = vmatprep.subr.mxu0 0.0
        %624 = vmatpush2.xpose.msra.mxu0 0.0
        %625 = vmatprep.subr.mxu0 0.0
        %626 = vmatpush2.xpose.msra.mxu0 0.0
        %627 = vmatprep.subr.mxu0 0.0
        %628 = vmatpush2.xpose.msra.mxu0 0.0
        %629 = vmatprep.subr.mxu0 0.0
        %630 = vmatpush2.xpose.msra.mxu0 0.0
        %631 = vmatprep.subr.mxu0 0.0
        %632 = vmatpush2.xpose.msra.mxu0 0.0
        %633 = vmatprep.subr.mxu0 0.0
        %634 = vmatpush2.xpose.msra.mxu0 0.0
        %635 = vmatprep.subr.mxu0 0.0
        %636 = vmatpush2.xpose.msra.mxu0 0.0
        %637 = vmatprep.subr.mxu0 0.0
        %638 = vmatpush2.xpose.msra.mxu0 0.0
        %639 = vmatprep.subr.mxu0 0.0
        %640 = vmatpush2.xpose.msra.mxu0 0.0
        %641 = vmatprep.mubr.f32.mxu0 0.0
        %642 = vmatmul.mubr.f32.gmra.mxu0 %v573
        %v643 = vpop.f32.mrf.mxu0
        %v644 = vadd.f32 0.0, %v643
        %v645 = vpop.f32.mrf.mxu0
        %646 = vdwg.mxu0
        %v647 = vmul.f32 %v567, 0.35355338
        %v648 = vmul.f32 %v644, 0.35355338
        %v649 = vsel %vm495, %v647, -inf
        %650 = vmax.xlane.f32.xlu0 %v649
        %v651 = vpop.xlane.xlu0 %650
        %v652 = vsel %vm495, %v648, -inf
        %653 = vmax.xlane.f32.xlu0 %v652
        %v654 = vpop.xlane.xlu0 %653
        %v655 = vsub.f32 %v647, %v651
        %v656 = vsub.f32 %v648, %v654
        %v657 = vmul.f32 %v655, 1.442695
        %v658 = vpow.pop %v657
        %v659 = vmul.f32 %v656, 1.442695
        %v660 = vpow.pop %v659
        %v661 = vsel %vm495, %v658, 0.0
        %662 = vadd.xlane.f32.xlu0 %v661
        %v663 = vpop.xlane.xlu0 %662
        %v664 = vsel %vm495, %v660, 0.0
        %665 = vadd.xlane.f32.xlu0 %v664
        %v666 = vpop.xlane.xlu0 %665
        %v667 = vrcp.pop %v663
        %v668 = vmul.f32 %v658, %v667
        %v669 = vrcp.pop %v666
        %v670 = vmul.f32 %v660, %v669
        %671 = vrot.lane.b32.xlu0 %v484, 64
        %v672 = vpop.permute.xlu0 %671
        %v675 = vsel %vm495, %v668, 0
        %677 = vmatprep.subr.mxu0 0.0
        %678 = vmatpush1.msra.mxu0 0.0
        %679 = vmatprep.subr.mxu0 0.0
        %680 = vmatpush1.msra.mxu0 0.0
        %681 = vmatprep.subr.mxu0 0.0
        %682 = vmatpush1.msra.mxu0 0.0
        %683 = vmatprep.subr.mxu0 0.0
        %684 = vmatpush1.msra.mxu0 0.0
        %685 = vmatprep.subr.mxu0 0.0
        %686 = vmatpush1.msra.mxu0 0.0
        %687 = vmatprep.subr.mxu0 0.0
        %688 = vmatpush1.msra.mxu0 0.0
        %689 = vmatprep.subr.mxu0 0.0
        %690 = vmatpush1.msra.mxu0 0.0
        %691 = vmatprep.subr.mxu0 0.0
        %692 = vmatpush1.msra.mxu0 0.0
        %693 = vmatprep.subr.mxu0 0.0
        %694 = vmatpush1.msra.mxu0 0.0
        %695 = vmatprep.subr.mxu0 0.0
        %696 = vmatpush1.msra.mxu0 0.0
        %697 = vmatprep.subr.mxu0 0.0
        %698 = vmatpush1.msra.mxu0 0.0
        %699 = vmatprep.subr.mxu0 0.0
        %700 = vmatpush1.msra.mxu0 0.0
        %701 = vmatprep.subr.mxu0 0.0
        %702 = vmatpush1.msra.mxu0 0.0
        %703 = vmatprep.subr.mxu0 0.0
        %704 = vmatpush1.msra.mxu0 0.0
        %705 = vmatprep.subr.mxu0 0.0
        %706 = vmatpush1.msra.mxu0 0.0
        %707 = vmatprep.subr.mxu0 0.0
        %708 = vmatpush1.msra.mxu0 %v672
        %709 = vmatprep.subr.mxu0 0.0
        %710 = vmatpush2.msra.mxu0 0.0
        %711 = vmatprep.subr.mxu0 0.0
        %712 = vmatpush2.msra.mxu0 0.0
        %713 = vmatprep.subr.mxu0 0.0
        %714 = vmatpush2.msra.mxu0 0.0
        %715 = vmatprep.subr.mxu0 0.0
        %716 = vmatpush2.msra.mxu0 0.0
        %717 = vmatprep.subr.mxu0 0.0
        %718 = vmatpush2.msra.mxu0 0.0
        %719 = vmatprep.subr.mxu0 0.0
        %720 = vmatpush2.msra.mxu0 0.0
        %721 = vmatprep.subr.mxu0 0.0
        %722 = vmatpush2.msra.mxu0 0.0
        %723 = vmatprep.subr.mxu0 0.0
        %724 = vmatpush2.msra.mxu0 0.0
        %725 = vmatprep.subr.mxu0 0.0
        %726 = vmatpush2.msra.mxu0 0.0
        %727 = vmatprep.subr.mxu0 0.0
        %728 = vmatpush2.msra.mxu0 0.0
        %729 = vmatprep.subr.mxu0 0.0
        %730 = vmatpush2.msra.mxu0 0.0
        %731 = vmatprep.subr.mxu0 0.0
        %732 = vmatpush2.msra.mxu0 0.0
        %733 = vmatprep.subr.mxu0 0.0
        %734 = vmatpush2.msra.mxu0 0.0
        %735 = vmatprep.subr.mxu0 0.0
        %736 = vmatpush2.msra.mxu0 0.0
        %737 = vmatprep.subr.mxu0 0.0
        %738 = vmatpush2.msra.mxu0 0.0
        %739 = vmatprep.subr.mxu0 0.0
        %740 = vmatpush2.msra.mxu0 0.0
        %741 = vmatprep.mubr.f32.mxu0 0.0
        %742 = vmatmul.mubr.f32.gmra.mxu0 %v675
        %v743 = vpop.f32.mrf.mxu0
        %v744 = vadd.f32 0.0, %v743
        %v745 = vpop.f32.mrf.mxu0
        %746 = vdwg.mxu0
        %747 = vrot.lane.b32.xlu0 %v489, 64
        %v748 = vpop.permute.xlu0 %747
        %v751 = vsel %vm495, %v670, 0
        %753 = vmatprep.subr.mxu0 0.0
        %754 = vmatpush1.msra.mxu0 0.0
        %755 = vmatprep.subr.mxu0 0.0
        %756 = vmatpush1.msra.mxu0 0.0
        %757 = vmatprep.subr.mxu0 0.0
        %758 = vmatpush1.msra.mxu0 0.0
        %759 = vmatprep.subr.mxu0 0.0
        %760 = vmatpush1.msra.mxu0 0.0
        %761 = vmatprep.subr.mxu0 0.0
        %762 = vmatpush1.msra.mxu0 0.0
        %763 = vmatprep.subr.mxu0 0.0
        %764 = vmatpush1.msra.mxu0 0.0
        %765 = vmatprep.subr.mxu0 0.0
        %766 = vmatpush1.msra.mxu0 0.0
        %767 = vmatprep.subr.mxu0 0.0
        %768 = vmatpush1.msra.mxu0 0.0
        %769 = vmatprep.subr.mxu0 0.0
        %770 = vmatpush1.msra.mxu0 0.0
        %771 = vmatprep.subr.mxu0 0.0
        %772 = vmatpush1.msra.mxu0 0.0
        %773 = vmatprep.subr.mxu0 0.0
        %774 = vmatpush1.msra.mxu0 0.0
        %775 = vmatprep.subr.mxu0 0.0
        %776 = vmatpush1.msra.mxu0 0.0
        %777 = vmatprep.subr.mxu0 0.0
        %778 = vmatpush1.msra.mxu0 0.0
        %779 = vmatprep.subr.mxu0 0.0
        %780 = vmatpush1.msra.mxu0 0.0
        %781 = vmatprep.subr.mxu0 0.0
        %782 = vmatpush1.msra.mxu0 0.0
        %783 = vmatprep.subr.mxu0 0.0
        %784 = vmatpush1.msra.mxu0 %v748
        %785 = vmatprep.subr.mxu0 0.0
        %786 = vmatpush2.msra.mxu0 0.0
        %787 = vmatprep.subr.mxu0 0.0
        %788 = vmatpush2.msra.mxu0 0.0
        %789 = vmatprep.subr.mxu0 0.0
        %790 = vmatpush2.msra.mxu0 0.0
        %791 = vmatprep.subr.mxu0 0.0
        %792 = vmatpush2.msra.mxu0 0.0
        %793 = vmatprep.subr.mxu0 0.0
        %794 = vmatpush2.msra.mxu0 0.0
        %795 = vmatprep.subr.mxu0 0.0
        %796 = vmatpush2.msra.mxu0 0.0
        %797 = vmatprep.subr.mxu0 0.0
        %798 = vmatpush2.msra.mxu0 0.0
        %799 = vmatprep.subr.mxu0 0.0
        %800 = vmatpush2.msra.mxu0 0.0
        %801 = vmatprep.subr.mxu0 0.0
        %802 = vmatpush2.msra.mxu0 0.0
        %803 = vmatprep.subr.mxu0 0.0
        %804 = vmatpush2.msra.mxu0 0.0
        %805 = vmatprep.subr.mxu0 0.0
        %806 = vmatpush2.msra.mxu0 0.0
        %807 = vmatprep.subr.mxu0 0.0
        %808 = vmatpush2.msra.mxu0 0.0
        %809 = vmatprep.subr.mxu0 0.0
        %810 = vmatpush2.msra.mxu0 0.0
        %811 = vmatprep.subr.mxu0 0.0
        %812 = vmatpush2.msra.mxu0 0.0
        %813 = vmatprep.subr.mxu0 0.0
        %814 = vmatpush2.msra.mxu0 0.0
        %815 = vmatprep.subr.mxu0 0.0
        %816 = vmatpush2.msra.mxu0 0.0
        %817 = vmatprep.mubr.f32.mxu0 0.0
        %818 = vmatmul.mubr.f32.gmra.mxu0 %v751
        %v819 = vpop.f32.mrf.mxu0
        %v820 = vadd.f32 0.0, %v819
        %v821 = vpop.f32.mrf.mxu0
        %822 = vdwg.mxu0
        %823 = vrot.lane.b32.xlu0 %v484, 120
        %v824 = vpop.permute.xlu0 %823
        %825 = vrot.lane.b32.xlu0 %v484, 88
        %v826 = vpop.permute.xlu0 %825
        %v827 = vsel %vm495, %v824, 0
        %v829 = vsel %vm495, %v826, 0
        %831 = vmatprep.subr.mxu0 0.0
        %832 = vmatpush1.xpose.msra.mxu0 0.0
        %833 = vmatprep.subr.mxu0 0.0
        %834 = vmatpush1.xpose.msra.mxu0 0.0
        %835 = vmatprep.subr.mxu0 0.0
        %836 = vmatpush1.xpose.msra.mxu0 0.0
        %837 = vmatprep.subr.mxu0 0.0
        %838 = vmatpush1.xpose.msra.mxu0 0.0
        %839 = vmatprep.subr.mxu0 0.0
        %840 = vmatpush1.xpose.msra.mxu0 0.0
        %841 = vmatprep.subr.mxu0 0.0
        %842 = vmatpush1.xpose.msra.mxu0 0.0
        %843 = vmatprep.subr.mxu0 0.0
        %844 = vmatpush1.xpose.msra.mxu0 0.0
        %845 = vmatprep.subr.mxu0 0.0
        %846 = vmatpush1.xpose.msra.mxu0 0.0
        %847 = vmatprep.subr.mxu0 0.0
        %848 = vmatpush1.xpose.msra.mxu0 0.0
        %849 = vmatprep.subr.mxu0 0.0
        %850 = vmatpush1.xpose.msra.mxu0 0.0
        %851 = vmatprep.subr.mxu0 0.0
        %852 = vmatpush1.xpose.msra.mxu0 0.0
        %853 = vmatprep.subr.mxu0 0.0
        %854 = vmatpush1.xpose.msra.mxu0 0.0
        %855 = vmatprep.subr.mxu0 0.0
        %856 = vmatpush1.xpose.msra.mxu0 0.0
        %857 = vmatprep.subr.mxu0 0.0
        %858 = vmatpush1.xpose.msra.mxu0 0.0
        %859 = vmatprep.subr.mxu0 0.0
        %860 = vmatpush1.xpose.msra.mxu0 0.0
        %861 = vmatprep.subr.mxu0 0.0
        %862 = vmatpush1.xpose.msra.mxu0 %v829
        %863 = vmatprep.subr.mxu0 0.0
        %864 = vmatpush2.xpose.msra.mxu0 0.0
        %865 = vmatprep.subr.mxu0 0.0
        %866 = vmatpush2.xpose.msra.mxu0 0.0
        %867 = vmatprep.subr.mxu0 0.0
        %868 = vmatpush2.xpose.msra.mxu0 0.0
        %869 = vmatprep.subr.mxu0 0.0
        %870 = vmatpush2.xpose.msra.mxu0 0.0
        %871 = vmatprep.subr.mxu0 0.0
        %872 = vmatpush2.xpose.msra.mxu0 0.0
        %873 = vmatprep.subr.mxu0 0.0
        %874 = vmatpush2.xpose.msra.mxu0 0.0
        %875 = vmatprep.subr.mxu0 0.0
        %876 = vmatpush2.xpose.msra.mxu0 0.0
        %877 = vmatprep.subr.mxu0 0.0
        %878 = vmatpush2.xpose.msra.mxu0 0.0
        %879 = vmatprep.subr.mxu0 0.0
        %880 = vmatpush2.xpose.msra.mxu0 0.0
        %881 = vmatprep.subr.mxu0 0.0
        %882 = vmatpush2.xpose.msra.mxu0 0.0
        %883 = vmatprep.subr.mxu0 0.0
        %884 = vmatpush2.xpose.msra.mxu0 0.0
        %885 = vmatprep.subr.mxu0 0.0
        %886 = vmatpush2.xpose.msra.mxu0 0.0
        %887 = vmatprep.subr.mxu0 0.0
        %888 = vmatpush2.xpose.msra.mxu0 0.0
        %889 = vmatprep.subr.mxu0 0.0
        %890 = vmatpush2.xpose.msra.mxu0 0.0
        %891 = vmatprep.subr.mxu0 0.0
        %892 = vmatpush2.xpose.msra.mxu0 0.0
        %893 = vmatprep.subr.mxu0 0.0
        %894 = vmatpush2.xpose.msra.mxu0 0.0
        %895 = vmatprep.mubr.f32.mxu0 0.0
        %896 = vmatmul.mubr.f32.gmra.mxu0 %v827
        %v897 = vpop.f32.mrf.mxu0
        %v898 = vadd.f32 0.0, %v897
        %v899 = vpop.f32.mrf.mxu0
        %900 = vdwg.mxu0
        %901 = vrot.lane.b32.xlu0 %v489, 120
        %v902 = vpop.permute.xlu0 %901
        %903 = vrot.lane.b32.xlu0 %v489, 88
        %v904 = vpop.permute.xlu0 %903
        %v905 = vsel %vm495, %v902, 0
        %v907 = vsel %vm495, %v904, 0
        %909 = vmatprep.subr.mxu0 0.0
        %910 = vmatpush1.xpose.msra.mxu0 0.0
        %911 = vmatprep.subr.mxu0 0.0
        %912 = vmatpush1.xpose.msra.mxu0 0.0
        %913 = vmatprep.subr.mxu0 0.0
        %914 = vmatpush1.xpose.msra.mxu0 0.0
        %915 = vmatprep.subr.mxu0 0.0
        %916 = vmatpush1.xpose.msra.mxu0 0.0
        %917 = vmatprep.subr.mxu0 0.0
        %918 = vmatpush1.xpose.msra.mxu0 0.0
        %919 = vmatprep.subr.mxu0 0.0
        %920 = vmatpush1.xpose.msra.mxu0 0.0
        %921 = vmatprep.subr.mxu0 0.0
        %922 = vmatpush1.xpose.msra.mxu0 0.0
        %923 = vmatprep.subr.mxu0 0.0
        %924 = vmatpush1.xpose.msra.mxu0 0.0
        %925 = vmatprep.subr.mxu0 0.0
        %926 = vmatpush1.xpose.msra.mxu0 0.0
        %927 = vmatprep.subr.mxu0 0.0
        %928 = vmatpush1.xpose.msra.mxu0 0.0
        %929 = vmatprep.subr.mxu0 0.0
        %930 = vmatpush1.xpose.msra.mxu0 0.0
        %931 = vmatprep.subr.mxu0 0.0
        %932 = vmatpush1.xpose.msra.mxu0 0.0
        %933 = vmatprep.subr.mxu0 0.0
        %934 = vmatpush1.xpose.msra.mxu0 0.0
        %935 = vmatprep.subr.mxu0 0.0
        %936 = vmatpush1.xpose.msra.mxu0 0.0
        %937 = vmatprep.subr.mxu0 0.0
        %938 = vmatpush1.xpose.msra.mxu0 0.0
        %939 = vmatprep.subr.mxu0 0.0
        %940 = vmatpush1.xpose.msra.mxu0 %v907
        %941 = vmatprep.subr.mxu0 0.0
        %942 = vmatpush2.xpose.msra.mxu0 0.0
        %943 = vmatprep.subr.mxu0 0.0
        %944 = vmatpush2.xpose.msra.mxu0 0.0
        %945 = vmatprep.subr.mxu0 0.0
        %946 = vmatpush2.xpose.msra.mxu0 0.0
        %947 = vmatprep.subr.mxu0 0.0
        %948 = vmatpush2.xpose.msra.mxu0 0.0
        %949 = vmatprep.subr.mxu0 0.0
        %950 = vmatpush2.xpose.msra.mxu0 0.0
        %951 = vmatprep.subr.mxu0 0.0
        %952 = vmatpush2.xpose.msra.mxu0 0.0
        %953 = vmatprep.subr.mxu0 0.0
        %954 = vmatpush2.xpose.msra.mxu0 0.0
        %955 = vmatprep.subr.mxu0 0.0
        %956 = vmatpush2.xpose.msra.mxu0 0.0
        %957 = vmatprep.subr.mxu0 0.0
        %958 = vmatpush2.xpose.msra.mxu0 0.0
        %959 = vmatprep.subr.mxu0 0.0
        %960 = vmatpush2.xpose.msra.mxu0 0.0
        %961 = vmatprep.subr.mxu0 0.0
        %962 = vmatpush2.xpose.msra.mxu0 0.0
        %963 = vmatprep.subr.mxu0 0.0
        %964 = vmatpush2.xpose.msra.mxu0 0.0
        %965 = vmatprep.subr.mxu0 0.0
        %966 = vmatpush2.xpose.msra.mxu0 0.0
        %967 = vmatprep.subr.mxu0 0.0
        %968 = vmatpush2.xpose.msra.mxu0 0.0
        %969 = vmatprep.subr.mxu0 0.0
        %970 = vmatpush2.xpose.msra.mxu0 0.0
        %971 = vmatprep.subr.mxu0 0.0
        %972 = vmatpush2.xpose.msra.mxu0 0.0
        %973 = vmatprep.mubr.f32.mxu0 0.0
        %974 = vmatmul.mubr.f32.gmra.mxu0 %v905
        %v975 = vpop.f32.mrf.mxu0
        %v976 = vadd.f32 0.0, %v975
        %v977 = vpop.f32.mrf.mxu0
        %978 = vdwg.mxu0
        %v979 = vmul.f32 %v898, 0.35355338
        %v980 = vmul.f32 %v976, 0.35355338
        %v981 = vsel %vm495, %v979, -inf
        %982 = vmax.xlane.f32.xlu0 %v981
        %v983 = vpop.xlane.xlu0 %982
        %v984 = vsel %vm495, %v980, -inf
        %985 = vmax.xlane.f32.xlu0 %v984
        %v986 = vpop.xlane.xlu0 %985
        %v987 = vsub.f32 %v979, %v983
        %v988 = vsub.f32 %v980, %v986
        %v989 = vmul.f32 %v987, 1.442695
        %v990 = vpow.pop %v989
        %v991 = vmul.f32 %v988, 1.442695
        %v992 = vpow.pop %v991
        %v993 = vsel %vm495, %v990, 0.0
        %994 = vadd.xlane.f32.xlu0 %v993
        %v995 = vpop.xlane.xlu0 %994
        %v996 = vsel %vm495, %v992, 0.0
        %997 = vadd.xlane.f32.xlu0 %v996
        %v998 = vpop.xlane.xlu0 %997
        %v999 = vrcp.pop %v995
        %v1000 = vmul.f32 %v990, %v999
        %v1001 = vrcp.pop %v998
        %v1002 = vmul.f32 %v992, %v1001
        %1003 = vrot.lane.b32.xlu0 %v484, 56
        %v1004 = vpop.permute.xlu0 %1003
        %v1007 = vsel %vm495, %v1000, 0
        %1009 = vmatprep.subr.mxu0 0.0
        %1010 = vmatpush1.msra.mxu0 0.0
        %1011 = vmatprep.subr.mxu0 0.0
        %1012 = vmatpush1.msra.mxu0 0.0
        %1013 = vmatprep.subr.mxu0 0.0
        %1014 = vmatpush1.msra.mxu0 0.0
        %1015 = vmatprep.subr.mxu0 0.0
        %1016 = vmatpush1.msra.mxu0 0.0
        %1017 = vmatprep.subr.mxu0 0.0
        %1018 = vmatpush1.msra.mxu0 0.0
        %1019 = vmatprep.subr.mxu0 0.0
        %1020 = vmatpush1.msra.mxu0 0.0
        %1021 = vmatprep.subr.mxu0 0.0
        %1022 = vmatpush1.msra.mxu0 0.0
        %1023 = vmatprep.subr.mxu0 0.0
        %1024 = vmatpush1.msra.mxu0 0.0
        %1025 = vmatprep.subr.mxu0 0.0
        %1026 = vmatpush1.msra.mxu0 0.0
        %1027 = vmatprep.subr.mxu0 0.0
        %1028 = vmatpush1.msra.mxu0 0.0
        %1029 = vmatprep.subr.mxu0 0.0
        %1030 = vmatpush1.msra.mxu0 0.0
        %1031 = vmatprep.subr.mxu0 0.0
        %1032 = vmatpush1.msra.mxu0 0.0
        %1033 = vmatprep.subr.mxu0 0.0
        %1034 = vmatpush1.msra.mxu0 0.0
        %1035 = vmatprep.subr.mxu0 0.0
        %1036 = vmatpush1.msra.mxu0 0.0
        %1037 = vmatprep.subr.mxu0 0.0
        %1038 = vmatpush1.msra.mxu0 0.0
        %1039 = vmatprep.subr.mxu0 0.0
        %1040 = vmatpush1.msra.mxu0 %v1004
        %1041 = vmatprep.subr.mxu0 0.0
        %1042 = vmatpush2.msra.mxu0 0.0
        %1043 = vmatprep.subr.mxu0 0.0
        %1044 = vmatpush2.msra.mxu0 0.0
        %1045 = vmatprep.subr.mxu0 0.0
        %1046 = vmatpush2.msra.mxu0 0.0
        %1047 = vmatprep.subr.mxu0 0.0
        %1048 = vmatpush2.msra.mxu0 0.0
        %1049 = vmatprep.subr.mxu0 0.0
        %1050 = vmatpush2.msra.mxu0 0.0
        %1051 = vmatprep.subr.mxu0 0.0
        %1052 = vmatpush2.msra.mxu0 0.0
        %1053 = vmatprep.subr.mxu0 0.0
        %1054 = vmatpush2.msra.mxu0 0.0
        %1055 = vmatprep.subr.mxu0 0.0
        %1056 = vmatpush2.msra.mxu0 0.0
        %1057 = vmatprep.subr.mxu0 0.0
        %1058 = vmatpush2.msra.mxu0 0.0
        %1059 = vmatprep.subr.mxu0 0.0
        %1060 = vmatpush2.msra.mxu0 0.0
        %1061 = vmatprep.subr.mxu0 0.0
        %1062 = vmatpush2.msra.mxu0 0.0
        %1063 = vmatprep.subr.mxu0 0.0
        %1064 = vmatpush2.msra.mxu0 0.0
        %1065 = vmatprep.subr.mxu0 0.0
        %1066 = vmatpush2.msra.mxu0 0.0
        %1067 = vmatprep.subr.mxu0 0.0
        %1068 = vmatpush2.msra.mxu0 0.0
        %1069 = vmatprep.subr.mxu0 0.0
        %1070 = vmatpush2.msra.mxu0 0.0
        %1071 = vmatprep.subr.mxu0 0.0
        %1072 = vmatpush2.msra.mxu0 0.0
        %1073 = vmatprep.mubr.f32.mxu0 0.0
        %1074 = vmatmul.mubr.f32.gmra.mxu0 %v1007
        %v1075 = vpop.f32.mrf.mxu0
        %v1076 = vadd.f32 0.0, %v1075
        %v1077 = vpop.f32.mrf.mxu0
        %1078 = vdwg.mxu0
        %1079 = vrot.lane.b32.xlu0 %v489, 56
        %v1080 = vpop.permute.xlu0 %1079
        %v1083 = vsel %vm495, %v1002, 0
        %1085 = vmatprep.subr.mxu0 0.0
        %1086 = vmatpush1.msra.mxu0 0.0
        %1087 = vmatprep.subr.mxu0 0.0
        %1088 = vmatpush1.msra.mxu0 0.0
        %1089 = vmatprep.subr.mxu0 0.0
        %1090 = vmatpush1.msra.mxu0 0.0
        %1091 = vmatprep.subr.mxu0 0.0
        %1092 = vmatpush1.msra.mxu0 0.0
        %1093 = vmatprep.subr.mxu0 0.0
        %1094 = vmatpush1.msra.mxu0 0.0
        %1095 = vmatprep.subr.mxu0 0.0
        %1096 = vmatpush1.msra.mxu0 0.0
        %1097 = vmatprep.subr.mxu0 0.0
        %1098 = vmatpush1.msra.mxu0 0.0
        %1099 = vmatprep.subr.mxu0 0.0
        %1100 = vmatpush1.msra.mxu0 0.0
        %1101 = vmatprep.subr.mxu0 0.0
        %1102 = vmatpush1.msra.mxu0 0.0
        %1103 = vmatprep.subr.mxu0 0.0
        %1104 = vmatpush1.msra.mxu0 0.0
        %1105 = vmatprep.subr.mxu0 0.0
        %1106 = vmatpush1.msra.mxu0 0.0
        %1107 = vmatprep.subr.mxu0 0.0
        %1108 = vmatpush1.msra.mxu0 0.0
        %1109 = vmatprep.subr.mxu0 0.0
        %1110 = vmatpush1.msra.mxu0 0.0
        %1111 = vmatprep.subr.mxu0 0.0
        %1112 = vmatpush1.msra.mxu0 0.0
        %1113 = vmatprep.subr.mxu0 0.0
        %1114 = vmatpush1.msra.mxu0 0.0
        %1115 = vmatprep.subr.mxu0 0.0
        %1116 = vmatpush1.msra.mxu0 %v1080
        %1117 = vmatprep.subr.mxu0 0.0
        %1118 = vmatpush2.msra.mxu0 0.0
        %1119 = vmatprep.subr.mxu0 0.0
        %1120 = vmatpush2.msra.mxu0 0.0
        %1121 = vmatprep.subr.mxu0 0.0
        %1122 = vmatpush2.msra.mxu0 0.0
        %1123 = vmatprep.subr.mxu0 0.0
        %1124 = vmatpush2.msra.mxu0 0.0
        %1125 = vmatprep.subr.mxu0 0.0
        %1126 = vmatpush2.msra.mxu0 0.0
        %1127 = vmatprep.subr.mxu0 0.0
        %1128 = vmatpush2.msra.mxu0 0.0
        %1129 = vmatprep.subr.mxu0 0.0
        %1130 = vmatpush2.msra.mxu0 0.0
        %1131 = vmatprep.subr.mxu0 0.0
        %1132 = vmatpush2.msra.mxu0 0.0
        %1133 = vmatprep.subr.mxu0 0.0
        %1134 = vmatpush2.msra.mxu0 0.0
        %1135 = vmatprep.subr.mxu0 0.0
        %1136 = vmatpush2.msra.mxu0 0.0
        %1137 = vmatprep.subr.mxu0 0.0
        %1138 = vmatpush2.msra.mxu0 0.0
        %1139 = vmatprep.subr.mxu0 0.0
        %1140 = vmatpush2.msra.mxu0 0.0
        %1141 = vmatprep.subr.mxu0 0.0
        %1142 = vmatpush2.msra.mxu0 0.0
        %1143 = vmatprep.subr.mxu0 0.0
        %1144 = vmatpush2.msra.mxu0 0.0
        %1145 = vmatprep.subr.mxu0 0.0
        %1146 = vmatpush2.msra.mxu0 0.0
        %1147 = vmatprep.subr.mxu0 0.0
        %1148 = vmatpush2.msra.mxu0 0.0
        %1149 = vmatprep.mubr.f32.mxu0 0.0
        %1150 = vmatmul.mubr.f32.gmra.mxu0 %v1083
        %v1151 = vpop.f32.mrf.mxu0
        %v1152 = vadd.f32 0.0, %v1151
        %v1153 = vpop.f32.mrf.mxu0
        %1154 = vdwg.mxu0
        %1156 = vrot.lane.b32.xlu0 %v403, 32
        %v1157 = vpop.permute.xlu0 %1156
        %v1160 = vsel %vm495, %v1076, 0
        %v1163 = vsel %vm495, %v1152, 0
        %1165 = vmatprep.subr.mxu0 0.0
        %1166 = vmatpush1.msra.mxu0 0.0
        %1167 = vmatprep.subr.mxu0 0.0
        %1168 = vmatpush1.msra.mxu0 0.0
        %1169 = vmatprep.subr.mxu0 0.0
        %1170 = vmatpush1.msra.mxu0 0.0
        %1171 = vmatprep.subr.mxu0 0.0
        %1172 = vmatpush1.msra.mxu0 0.0
        %1173 = vmatprep.subr.mxu0 0.0
        %1174 = vmatpush1.msra.mxu0 0.0
        %1175 = vmatprep.subr.mxu0 0.0
        %1176 = vmatpush1.msra.mxu0 0.0
        %1177 = vmatprep.subr.mxu0 0.0
        %1178 = vmatpush1.msra.mxu0 0.0
        %1179 = vmatprep.subr.mxu0 0.0
        %1180 = vmatpush1.msra.mxu0 0.0
        %1181 = vmatprep.subr.mxu0 0.0
        %1182 = vmatpush1.msra.mxu0 0.0
        %1183 = vmatprep.subr.mxu0 0.0
        %1184 = vmatpush1.msra.mxu0 0.0
        %1185 = vmatprep.subr.mxu0 0.0
        %1186 = vmatpush1.msra.mxu0 0.0
        %1187 = vmatprep.subr.mxu0 0.0
        %1188 = vmatpush1.msra.mxu0 0.0
        %1189 = vmatprep.subr.mxu0 0.0
        %1190 = vmatpush1.msra.mxu0 0.0
        %1191 = vmatprep.subr.mxu0 0.0
        %1192 = vmatpush1.msra.mxu0 0.0
        %1193 = vmatprep.subr.mxu0 0.0
        %1194 = vmatpush1.msra.mxu0 0.0
        %1195 = vmatprep.subr.mxu0 0.0
        %1196 = vmatpush1.msra.mxu0 %v1157
        %1197 = vmatprep.subr.mxu0 0.0
        %1198 = vmatpush2.msra.mxu0 0.0
        %1199 = vmatprep.subr.mxu0 0.0
        %1200 = vmatpush2.msra.mxu0 0.0
        %1201 = vmatprep.subr.mxu0 0.0
        %1202 = vmatpush2.msra.mxu0 0.0
        %1203 = vmatprep.subr.mxu0 0.0
        %1204 = vmatpush2.msra.mxu0 0.0
        %1205 = vmatprep.subr.mxu0 0.0
        %1206 = vmatpush2.msra.mxu0 0.0
        %1207 = vmatprep.subr.mxu0 0.0
        %1208 = vmatpush2.msra.mxu0 0.0
        %1209 = vmatprep.subr.mxu0 0.0
        %1210 = vmatpush2.msra.mxu0 0.0
        %1211 = vmatprep.subr.mxu0 0.0
        %1212 = vmatpush2.msra.mxu0 0.0
        %1213 = vmatprep.subr.mxu0 0.0
        %1214 = vmatpush2.msra.mxu0 0.0
        %1215 = vmatprep.subr.mxu0 0.0
        %1216 = vmatpush2.msra.mxu0 0.0
        %1217 = vmatprep.subr.mxu0 0.0
        %1218 = vmatpush2.msra.mxu0 0.0
        %1219 = vmatprep.subr.mxu0 0.0
        %1220 = vmatpush2.msra.mxu0 0.0
        %1221 = vmatprep.subr.mxu0 0.0
        %1222 = vmatpush2.msra.mxu0 0.0
        %1223 = vmatprep.subr.mxu0 0.0
        %1224 = vmatpush2.msra.mxu0 0.0
        %1225 = vmatprep.subr.mxu0 0.0
        %1226 = vmatpush2.msra.mxu0 0.0
        %1227 = vmatprep.subr.mxu0 0.0
        %1228 = vmatpush2.msra.mxu0 0.0
        %1229 = vmatprep.mubr.f32.mxu0 0.0
        %1230 = vmatmul.mubr.f32.gmra.mxu0 %v1160
        %v1231 = vpop.f32.mrf.mxu0
        %v1232 = vadd.f32 0.0, %v1231
        %v1233 = vpop.f32.mrf.mxu0
        %1234 = vmatprep.mubr.f32.mxu0 0.0
        %1235 = vmatmul.mubr.f32.gmra.mxu0 %v1163
        %v1236 = vpop.f32.mrf.mxu0
        %v1237 = vadd.f32 0.0, %v1236
        %v1238 = vpop.f32.mrf.mxu0
        %1239 = vdwg.mxu0
        %1241 = vrot.lane.b32.xlu0 %v402, 32
        %v1242 = vpop.permute.xlu0 %1241
        %v1245 = vsel %vm495, %v744, 0
        %v1248 = vsel %vm495, %v820, 0
        %1250 = vmatprep.subr.mxu0 0.0
        %1251 = vmatpush1.msra.mxu0 0.0
        %1252 = vmatprep.subr.mxu0 0.0
        %1253 = vmatpush1.msra.mxu0 0.0
        %1254 = vmatprep.subr.mxu0 0.0
        %1255 = vmatpush1.msra.mxu0 0.0
        %1256 = vmatprep.subr.mxu0 0.0
        %1257 = vmatpush1.msra.mxu0 0.0
        %1258 = vmatprep.subr.mxu0 0.0
        %1259 = vmatpush1.msra.mxu0 0.0
        %1260 = vmatprep.subr.mxu0 0.0
        %1261 = vmatpush1.msra.mxu0 0.0
        %1262 = vmatprep.subr.mxu0 0.0
        %1263 = vmatpush1.msra.mxu0 0.0
        %1264 = vmatprep.subr.mxu0 0.0
        %1265 = vmatpush1.msra.mxu0 0.0
        %1266 = vmatprep.subr.mxu0 0.0
        %1267 = vmatpush1.msra.mxu0 0.0
        %1268 = vmatprep.subr.mxu0 0.0
        %1269 = vmatpush1.msra.mxu0 0.0
        %1270 = vmatprep.subr.mxu0 0.0
        %1271 = vmatpush1.msra.mxu0 0.0
        %1272 = vmatprep.subr.mxu0 0.0
        %1273 = vmatpush1.msra.mxu0 0.0
        %1274 = vmatprep.subr.mxu0 0.0
        %1275 = vmatpush1.msra.mxu0 0.0
        %1276 = vmatprep.subr.mxu0 0.0
        %1277 = vmatpush1.msra.mxu0 0.0
        %1278 = vmatprep.subr.mxu0 0.0
        %1279 = vmatpush1.msra.mxu0 0.0
        %1280 = vmatprep.subr.mxu0 0.0
        %1281 = vmatpush1.msra.mxu0 %v1242
        %1282 = vmatprep.subr.mxu0 0.0
        %1283 = vmatpush2.msra.mxu0 0.0
        %1284 = vmatprep.subr.mxu0 0.0
        %1285 = vmatpush2.msra.mxu0 0.0
        %1286 = vmatprep.subr.mxu0 0.0
        %1287 = vmatpush2.msra.mxu0 0.0
        %1288 = vmatprep.subr.mxu0 0.0
        %1289 = vmatpush2.msra.mxu0 0.0
        %1290 = vmatprep.subr.mxu0 0.0
        %1291 = vmatpush2.msra.mxu0 0.0
        %1292 = vmatprep.subr.mxu0 0.0
        %1293 = vmatpush2.msra.mxu0 0.0
        %1294 = vmatprep.subr.mxu0 0.0
        %1295 = vmatpush2.msra.mxu0 0.0
        %1296 = vmatprep.subr.mxu0 0.0
        %1297 = vmatpush2.msra.mxu0 0.0
        %1298 = vmatprep.subr.mxu0 0.0
        %1299 = vmatpush2.msra.mxu0 0.0
        %1300 = vmatprep.subr.mxu0 0.0
        %1301 = vmatpush2.msra.mxu0 0.0
        %1302 = vmatprep.subr.mxu0 0.0
        %1303 = vmatpush2.msra.mxu0 0.0
        %1304 = vmatprep.subr.mxu0 0.0
        %1305 = vmatpush2.msra.mxu0 0.0
        %1306 = vmatprep.subr.mxu0 0.0
        %1307 = vmatpush2.msra.mxu0 0.0
        %1308 = vmatprep.subr.mxu0 0.0
        %1309 = vmatpush2.msra.mxu0 0.0
        %1310 = vmatprep.subr.mxu0 0.0
        %1311 = vmatpush2.msra.mxu0 0.0
        %1312 = vmatprep.subr.mxu0 0.0
        %1313 = vmatpush2.msra.mxu0 0.0
        %1314 = vmatprep.mubr.f32.mxu0 0.0
        %1315 = vmatmul.mubr.f32.gmra.mxu0 %v1245
        %v1316 = vpop.f32.mrf.mxu0
        %v1317 = vadd.f32 %v1232, %v1316
        %v1318 = vpop.f32.mrf.mxu0
        %1319 = vmatprep.mubr.f32.mxu0 0.0
        %1320 = vmatmul.mubr.f32.gmra.mxu0 %v1248
        %v1321 = vpop.f32.mrf.mxu0
        %v1322 = vadd.f32 %v1237, %v1321
        %v1323 = vpop.f32.mrf.mxu0
        %1324 = vdwg.mxu0
        %1325 = vrot.lane.b32.xlu0 %v484, 112
        %v1326 = vpop.permute.xlu0 %1325
        %1327 = vrot.lane.b32.xlu0 %v484, 80
        %v1328 = vpop.permute.xlu0 %1327
        %v1329 = vsel %vm495, %v1326, 0
        %v1331 = vsel %vm495, %v1328, 0
        %1333 = vmatprep.subr.mxu0 0.0
        %1334 = vmatpush1.xpose.msra.mxu0 0.0
        %1335 = vmatprep.subr.mxu0 0.0
        %1336 = vmatpush1.xpose.msra.mxu0 0.0
        %1337 = vmatprep.subr.mxu0 0.0
        %1338 = vmatpush1.xpose.msra.mxu0 0.0
        %1339 = vmatprep.subr.mxu0 0.0
        %1340 = vmatpush1.xpose.msra.mxu0 0.0
        %1341 = vmatprep.subr.mxu0 0.0
        %1342 = vmatpush1.xpose.msra.mxu0 0.0
        %1343 = vmatprep.subr.mxu0 0.0
        %1344 = vmatpush1.xpose.msra.mxu0 0.0
        %1345 = vmatprep.subr.mxu0 0.0
        %1346 = vmatpush1.xpose.msra.mxu0 0.0
        %1347 = vmatprep.subr.mxu0 0.0
        %1348 = vmatpush1.xpose.msra.mxu0 0.0
        %1349 = vmatprep.subr.mxu0 0.0
        %1350 = vmatpush1.xpose.msra.mxu0 0.0
        %1351 = vmatprep.subr.mxu0 0.0
        %1352 = vmatpush1.xpose.msra.mxu0 0.0
        %1353 = vmatprep.subr.mxu0 0.0
        %1354 = vmatpush1.xpose.msra.mxu0 0.0
        %1355 = vmatprep.subr.mxu0 0.0
        %1356 = vmatpush1.xpose.msra.mxu0 0.0
        %1357 = vmatprep.subr.mxu0 0.0
        %1358 = vmatpush1.xpose.msra.mxu0 0.0
        %1359 = vmatprep.subr.mxu0 0.0
        %1360 = vmatpush1.xpose.msra.mxu0 0.0
        %1361 = vmatprep.subr.mxu0 0.0
        %1362 = vmatpush1.xpose.msra.mxu0 0.0
        %1363 = vmatprep.subr.mxu0 0.0
        %1364 = vmatpush1.xpose.msra.mxu0 %v1331
        %1365 = vmatprep.subr.mxu0 0.0
        %1366 = vmatpush2.xpose.msra.mxu0 0.0
        %1367 = vmatprep.subr.mxu0 0.0
        %1368 = vmatpush2.xpose.msra.mxu0 0.0
        %1369 = vmatprep.subr.mxu0 0.0
        %1370 = vmatpush2.xpose.msra.mxu0 0.0
        %1371 = vmatprep.subr.mxu0 0.0
        %1372 = vmatpush2.xpose.msra.mxu0 0.0
        %1373 = vmatprep.subr.mxu0 0.0
        %1374 = vmatpush2.xpose.msra.mxu0 0.0
        %1375 = vmatprep.subr.mxu0 0.0
        %1376 = vmatpush2.xpose.msra.mxu0 0.0
        %1377 = vmatprep.subr.mxu0 0.0
        %1378 = vmatpush2.xpose.msra.mxu0 0.0
        %1379 = vmatprep.subr.mxu0 0.0
        %1380 = vmatpush2.xpose.msra.mxu0 0.0
        %1381 = vmatprep.subr.mxu0 0.0
        %1382 = vmatpush2.xpose.msra.mxu0 0.0
        %1383 = vmatprep.subr.mxu0 0.0
        %1384 = vmatpush2.xpose.msra.mxu0 0.0
        %1385 = vmatprep.subr.mxu0 0.0
        %1386 = vmatpush2.xpose.msra.mxu0 0.0
        %1387 = vmatprep.subr.mxu0 0.0
        %1388 = vmatpush2.xpose.msra.mxu0 0.0
        %1389 = vmatprep.subr.mxu0 0.0
        %1390 = vmatpush2.xpose.msra.mxu0 0.0
        %1391 = vmatprep.subr.mxu0 0.0
        %1392 = vmatpush2.xpose.msra.mxu0 0.0
        %1393 = vmatprep.subr.mxu0 0.0
        %1394 = vmatpush2.xpose.msra.mxu0 0.0
        %1395 = vmatprep.subr.mxu0 0.0
        %1396 = vmatpush2.xpose.msra.mxu0 0.0
        %1397 = vmatprep.mubr.f32.mxu0 0.0
        %1398 = vmatmul.mubr.f32.gmra.mxu0 %v1329
        %v1399 = vpop.f32.mrf.mxu0
        %v1400 = vadd.f32 0.0, %v1399
        %v1401 = vpop.f32.mrf.mxu0
        %1402 = vdwg.mxu0
        %1403 = vrot.lane.b32.xlu0 %v489, 112
        %v1404 = vpop.permute.xlu0 %1403
        %1405 = vrot.lane.b32.xlu0 %v489, 80
        %v1406 = vpop.permute.xlu0 %1405
        %v1407 = vsel %vm495, %v1404, 0
        %v1409 = vsel %vm495, %v1406, 0
        %1411 = vmatprep.subr.mxu0 0.0
        %1412 = vmatpush1.xpose.msra.mxu0 0.0
        %1413 = vmatprep.subr.mxu0 0.0
        %1414 = vmatpush1.xpose.msra.mxu0 0.0
        %1415 = vmatprep.subr.mxu0 0.0
        %1416 = vmatpush1.xpose.msra.mxu0 0.0
        %1417 = vmatprep.subr.mxu0 0.0
        %1418 = vmatpush1.xpose.msra.mxu0 0.0
        %1419 = vmatprep.subr.mxu0 0.0
        %1420 = vmatpush1.xpose.msra.mxu0 0.0
        %1421 = vmatprep.subr.mxu0 0.0
        %1422 = vmatpush1.xpose.msra.mxu0 0.0
        %1423 = vmatprep.subr.mxu0 0.0
        %1424 = vmatpush1.xpose.msra.mxu0 0.0
        %1425 = vmatprep.subr.mxu0 0.0
        %1426 = vmatpush1.xpose.msra.mxu0 0.0
        %1427 = vmatprep.subr.mxu0 0.0
        %1428 = vmatpush1.xpose.msra.mxu0 0.0
        %1429 = vmatprep.subr.mxu0 0.0
        %1430 = vmatpush1.xpose.msra.mxu0 0.0
        %1431 = vmatprep.subr.mxu0 0.0
        %1432 = vmatpush1.xpose.msra.mxu0 0.0
        %1433 = vmatprep.subr.mxu0 0.0
        %1434 = vmatpush1.xpose.msra.mxu0 0.0
        %1435 = vmatprep.subr.mxu0 0.0
        %1436 = vmatpush1.xpose.msra.mxu0 0.0
        %1437 = vmatprep.subr.mxu0 0.0
        %1438 = vmatpush1.xpose.msra.mxu0 0.0
        %1439 = vmatprep.subr.mxu0 0.0
        %1440 = vmatpush1.xpose.msra.mxu0 0.0
        %1441 = vmatprep.subr.mxu0 0.0
        %1442 = vmatpush1.xpose.msra.mxu0 %v1409
        %1443 = vmatprep.subr.mxu0 0.0
        %1444 = vmatpush2.xpose.msra.mxu0 0.0
        %1445 = vmatprep.subr.mxu0 0.0
        %1446 = vmatpush2.xpose.msra.mxu0 0.0
        %1447 = vmatprep.subr.mxu0 0.0
        %1448 = vmatpush2.xpose.msra.mxu0 0.0
        %1449 = vmatprep.subr.mxu0 0.0
        %1450 = vmatpush2.xpose.msra.mxu0 0.0
        %1451 = vmatprep.subr.mxu0 0.0
        %1452 = vmatpush2.xpose.msra.mxu0 0.0
        %1453 = vmatprep.subr.mxu0 0.0
        %1454 = vmatpush2.xpose.msra.mxu0 0.0
        %1455 = vmatprep.subr.mxu0 0.0
        %1456 = vmatpush2.xpose.msra.mxu0 0.0
        %1457 = vmatprep.subr.mxu0 0.0
        %1458 = vmatpush2.xpose.msra.mxu0 0.0
        %1459 = vmatprep.subr.mxu0 0.0
        %1460 = vmatpush2.xpose.msra.mxu0 0.0
        %1461 = vmatprep.subr.mxu0 0.0
        %1462 = vmatpush2.xpose.msra.mxu0 0.0
        %1463 = vmatprep.subr.mxu0 0.0
        %1464 = vmatpush2.xpose.msra.mxu0 0.0
        %1465 = vmatprep.subr.mxu0 0.0
        %1466 = vmatpush2.xpose.msra.mxu0 0.0
        %1467 = vmatprep.subr.mxu0 0.0
        %1468 = vmatpush2.xpose.msra.mxu0 0.0
        %1469 = vmatprep.subr.mxu0 0.0
        %1470 = vmatpush2.xpose.msra.mxu0 0.0
        %1471 = vmatprep.subr.mxu0 0.0
        %1472 = vmatpush2.xpose.msra.mxu0 0.0
        %1473 = vmatprep.subr.mxu0 0.0
        %1474 = vmatpush2.xpose.msra.mxu0 0.0
        %1475 = vmatprep.mubr.f32.mxu0 0.0
        %1476 = vmatmul.mubr.f32.gmra.mxu0 %v1407
        %v1477 = vpop.f32.mrf.mxu0
        %v1478 = vadd.f32 0.0, %v1477
        %v1479 = vpop.f32.mrf.mxu0
        %1480 = vdwg.mxu0
        %v1481 = vmul.f32 %v1400, 0.35355338
        %v1482 = vmul.f32 %v1478, 0.35355338
        %v1483 = vsel %vm495, %v1481, -inf
        %1484 = vmax.xlane.f32.xlu0 %v1483
        %v1485 = vpop.xlane.xlu0 %1484
        %v1486 = vsel %vm495, %v1482, -inf
        %1487 = vmax.xlane.f32.xlu0 %v1486
        %v1488 = vpop.xlane.xlu0 %1487
        %v1489 = vsub.f32 %v1481, %v1485
        %v1490 = vsub.f32 %v1482, %v1488
        %v1491 = vmul.f32 %v1489, 1.442695
        %v1492 = vpow.pop %v1491
        %v1493 = vmul.f32 %v1490, 1.442695
        %v1494 = vpow.pop %v1493
        %v1495 = vsel %vm495, %v1492, 0.0
        %1496 = vadd.xlane.f32.xlu0 %v1495
        %v1497 = vpop.xlane.xlu0 %1496
        %v1498 = vsel %vm495, %v1494, 0.0
        %1499 = vadd.xlane.f32.xlu0 %v1498
        %v1500 = vpop.xlane.xlu0 %1499
        %v1501 = vrcp.pop %v1497
        %v1502 = vmul.f32 %v1492, %v1501
        %v1503 = vrcp.pop %v1500
        %v1504 = vmul.f32 %v1494, %v1503
        %1505 = vrot.lane.b32.xlu0 %v484, 48
        %v1506 = vpop.permute.xlu0 %1505
        %v1509 = vsel %vm495, %v1502, 0
        %1511 = vmatprep.subr.mxu0 0.0
        %1512 = vmatpush1.msra.mxu0 0.0
        %1513 = vmatprep.subr.mxu0 0.0
        %1514 = vmatpush1.msra.mxu0 0.0
        %1515 = vmatprep.subr.mxu0 0.0
        %1516 = vmatpush1.msra.mxu0 0.0
        %1517 = vmatprep.subr.mxu0 0.0
        %1518 = vmatpush1.msra.mxu0 0.0
        %1519 = vmatprep.subr.mxu0 0.0
        %1520 = vmatpush1.msra.mxu0 0.0
        %1521 = vmatprep.subr.mxu0 0.0
        %1522 = vmatpush1.msra.mxu0 0.0
        %1523 = vmatprep.subr.mxu0 0.0
        %1524 = vmatpush1.msra.mxu0 0.0
        %1525 = vmatprep.subr.mxu0 0.0
        %1526 = vmatpush1.msra.mxu0 0.0
        %1527 = vmatprep.subr.mxu0 0.0
        %1528 = vmatpush1.msra.mxu0 0.0
        %1529 = vmatprep.subr.mxu0 0.0
        %1530 = vmatpush1.msra.mxu0 0.0
        %1531 = vmatprep.subr.mxu0 0.0
        %1532 = vmatpush1.msra.mxu0 0.0
        %1533 = vmatprep.subr.mxu0 0.0
        %1534 = vmatpush1.msra.mxu0 0.0
        %1535 = vmatprep.subr.mxu0 0.0
        %1536 = vmatpush1.msra.mxu0 0.0
        %1537 = vmatprep.subr.mxu0 0.0
        %1538 = vmatpush1.msra.mxu0 0.0
        %1539 = vmatprep.subr.mxu0 0.0
        %1540 = vmatpush1.msra.mxu0 0.0
        %1541 = vmatprep.subr.mxu0 0.0
        %1542 = vmatpush1.msra.mxu0 %v1506
        %1543 = vmatprep.subr.mxu0 0.0
        %1544 = vmatpush2.msra.mxu0 0.0
        %1545 = vmatprep.subr.mxu0 0.0
        %1546 = vmatpush2.msra.mxu0 0.0
        %1547 = vmatprep.subr.mxu0 0.0
        %1548 = vmatpush2.msra.mxu0 0.0
        %1549 = vmatprep.subr.mxu0 0.0
        %1550 = vmatpush2.msra.mxu0 0.0
        %1551 = vmatprep.subr.mxu0 0.0
        %1552 = vmatpush2.msra.mxu0 0.0
        %1553 = vmatprep.subr.mxu0 0.0
        %1554 = vmatpush2.msra.mxu0 0.0
        %1555 = vmatprep.subr.mxu0 0.0
        %1556 = vmatpush2.msra.mxu0 0.0
        %1557 = vmatprep.subr.mxu0 0.0
        %1558 = vmatpush2.msra.mxu0 0.0
        %1559 = vmatprep.subr.mxu0 0.0
        %1560 = vmatpush2.msra.mxu0 0.0
        %1561 = vmatprep.subr.mxu0 0.0
        %1562 = vmatpush2.msra.mxu0 0.0
        %1563 = vmatprep.subr.mxu0 0.0
        %1564 = vmatpush2.msra.mxu0 0.0
        %1565 = vmatprep.subr.mxu0 0.0
        %1566 = vmatpush2.msra.mxu0 0.0
        %1567 = vmatprep.subr.mxu0 0.0
        %1568 = vmatpush2.msra.mxu0 0.0
        %1569 = vmatprep.subr.mxu0 0.0
        %1570 = vmatpush2.msra.mxu0 0.0
        %1571 = vmatprep.subr.mxu0 0.0
        %1572 = vmatpush2.msra.mxu0 0.0
        %1573 = vmatprep.subr.mxu0 0.0
        %1574 = vmatpush2.msra.mxu0 0.0
        %1575 = vmatprep.mubr.f32.mxu0 0.0
        %1576 = vmatmul.mubr.f32.gmra.mxu0 %v1509
        %v1577 = vpop.f32.mrf.mxu0
        %v1578 = vadd.f32 0.0, %v1577
        %v1579 = vpop.f32.mrf.mxu0
        %1580 = vdwg.mxu0
        %1581 = vrot.lane.b32.xlu0 %v489, 48
        %v1582 = vpop.permute.xlu0 %1581
        %v1585 = vsel %vm495, %v1504, 0
        %1587 = vmatprep.subr.mxu0 0.0
        %1588 = vmatpush1.msra.mxu0 0.0
        %1589 = vmatprep.subr.mxu0 0.0
        %1590 = vmatpush1.msra.mxu0 0.0
        %1591 = vmatprep.subr.mxu0 0.0
        %1592 = vmatpush1.msra.mxu0 0.0
        %1593 = vmatprep.subr.mxu0 0.0
        %1594 = vmatpush1.msra.mxu0 0.0
        %1595 = vmatprep.subr.mxu0 0.0
        %1596 = vmatpush1.msra.mxu0 0.0
        %1597 = vmatprep.subr.mxu0 0.0
        %1598 = vmatpush1.msra.mxu0 0.0
        %1599 = vmatprep.subr.mxu0 0.0
        %1600 = vmatpush1.msra.mxu0 0.0
        %1601 = vmatprep.subr.mxu0 0.0
        %1602 = vmatpush1.msra.mxu0 0.0
        %1603 = vmatprep.subr.mxu0 0.0
        %1604 = vmatpush1.msra.mxu0 0.0
        %1605 = vmatprep.subr.mxu0 0.0
        %1606 = vmatpush1.msra.mxu0 0.0
        %1607 = vmatprep.subr.mxu0 0.0
        %1608 = vmatpush1.msra.mxu0 0.0
        %1609 = vmatprep.subr.mxu0 0.0
        %1610 = vmatpush1.msra.mxu0 0.0
        %1611 = vmatprep.subr.mxu0 0.0
        %1612 = vmatpush1.msra.mxu0 0.0
        %1613 = vmatprep.subr.mxu0 0.0
        %1614 = vmatpush1.msra.mxu0 0.0
        %1615 = vmatprep.subr.mxu0 0.0
        %1616 = vmatpush1.msra.mxu0 0.0
        %1617 = vmatprep.subr.mxu0 0.0
        %1618 = vmatpush1.msra.mxu0 %v1582
        %1619 = vmatprep.subr.mxu0 0.0
        %1620 = vmatpush2.msra.mxu0 0.0
        %1621 = vmatprep.subr.mxu0 0.0
        %1622 = vmatpush2.msra.mxu0 0.0
        %1623 = vmatprep.subr.mxu0 0.0
        %1624 = vmatpush2.msra.mxu0 0.0
        %1625 = vmatprep.subr.mxu0 0.0
        %1626 = vmatpush2.msra.mxu0 0.0
        %1627 = vmatprep.subr.mxu0 0.0
        %1628 = vmatpush2.msra.mxu0 0.0
        %1629 = vmatprep.subr.mxu0 0.0
        %1630 = vmatpush2.msra.mxu0 0.0
        %1631 = vmatprep.subr.mxu0 0.0
        %1632 = vmatpush2.msra.mxu0 0.0
        %1633 = vmatprep.subr.mxu0 0.0
        %1634 = vmatpush2.msra.mxu0 0.0
        %1635 = vmatprep.subr.mxu0 0.0
        %1636 = vmatpush2.msra.mxu0 0.0
        %1637 = vmatprep.subr.mxu0 0.0
        %1638 = vmatpush2.msra.mxu0 0.0
        %1639 = vmatprep.subr.mxu0 0.0
        %1640 = vmatpush2.msra.mxu0 0.0
        %1641 = vmatprep.subr.mxu0 0.0
        %1642 = vmatpush2.msra.mxu0 0.0
        %1643 = vmatprep.subr.mxu0 0.0
        %1644 = vmatpush2.msra.mxu0 0.0
        %1645 = vmatprep.subr.mxu0 0.0
        %1646 = vmatpush2.msra.mxu0 0.0
        %1647 = vmatprep.subr.mxu0 0.0
        %1648 = vmatpush2.msra.mxu0 0.0
        %1649 = vmatprep.subr.mxu0 0.0
        %1650 = vmatpush2.msra.mxu0 0.0
        %1651 = vmatprep.mubr.f32.mxu0 0.0
        %1652 = vmatmul.mubr.f32.gmra.mxu0 %v1585
        %v1653 = vpop.f32.mrf.mxu0
        %v1654 = vadd.f32 0.0, %v1653
        %v1655 = vpop.f32.mrf.mxu0
        %1656 = vdwg.mxu0
        %1658 = vrot.lane.b32.xlu0 %v404, 32
        %v1659 = vpop.permute.xlu0 %1658
        %v1662 = vsel %vm495, %v1578, 0
        %v1665 = vsel %vm495, %v1654, 0
        %1667 = vmatprep.subr.mxu0 0.0
        %1668 = vmatpush1.msra.mxu0 0.0
        %1669 = vmatprep.subr.mxu0 0.0
        %1670 = vmatpush1.msra.mxu0 0.0
        %1671 = vmatprep.subr.mxu0 0.0
        %1672 = vmatpush1.msra.mxu0 0.0
        %1673 = vmatprep.subr.mxu0 0.0
        %1674 = vmatpush1.msra.mxu0 0.0
        %1675 = vmatprep.subr.mxu0 0.0
        %1676 = vmatpush1.msra.mxu0 0.0
        %1677 = vmatprep.subr.mxu0 0.0
        %1678 = vmatpush1.msra.mxu0 0.0
        %1679 = vmatprep.subr.mxu0 0.0
        %1680 = vmatpush1.msra.mxu0 0.0
        %1681 = vmatprep.subr.mxu0 0.0
        %1682 = vmatpush1.msra.mxu0 0.0
        %1683 = vmatprep.subr.mxu0 0.0
        %1684 = vmatpush1.msra.mxu0 0.0
        %1685 = vmatprep.subr.mxu0 0.0
        %1686 = vmatpush1.msra.mxu0 0.0
        %1687 = vmatprep.subr.mxu0 0.0
        %1688 = vmatpush1.msra.mxu0 0.0
        %1689 = vmatprep.subr.mxu0 0.0
        %1690 = vmatpush1.msra.mxu0 0.0
        %1691 = vmatprep.subr.mxu0 0.0
        %1692 = vmatpush1.msra.mxu0 0.0
        %1693 = vmatprep.subr.mxu0 0.0
        %1694 = vmatpush1.msra.mxu0 0.0
        %1695 = vmatprep.subr.mxu0 0.0
        %1696 = vmatpush1.msra.mxu0 0.0
        %1697 = vmatprep.subr.mxu0 0.0
        %1698 = vmatpush1.msra.mxu0 %v1659
        %1699 = vmatprep.subr.mxu0 0.0
        %1700 = vmatpush2.msra.mxu0 0.0
        %1701 = vmatprep.subr.mxu0 0.0
        %1702 = vmatpush2.msra.mxu0 0.0
        %1703 = vmatprep.subr.mxu0 0.0
        %1704 = vmatpush2.msra.mxu0 0.0
        %1705 = vmatprep.subr.mxu0 0.0
        %1706 = vmatpush2.msra.mxu0 0.0
        %1707 = vmatprep.subr.mxu0 0.0
        %1708 = vmatpush2.msra.mxu0 0.0
        %1709 = vmatprep.subr.mxu0 0.0
        %1710 = vmatpush2.msra.mxu0 0.0
        %1711 = vmatprep.subr.mxu0 0.0
        %1712 = vmatpush2.msra.mxu0 0.0
        %1713 = vmatprep.subr.mxu0 0.0
        %1714 = vmatpush2.msra.mxu0 0.0
        %1715 = vmatprep.subr.mxu0 0.0
        %1716 = vmatpush2.msra.mxu0 0.0
        %1717 = vmatprep.subr.mxu0 0.0
        %1718 = vmatpush2.msra.mxu0 0.0
        %1719 = vmatprep.subr.mxu0 0.0
        %1720 = vmatpush2.msra.mxu0 0.0
        %1721 = vmatprep.subr.mxu0 0.0
        %1722 = vmatpush2.msra.mxu0 0.0
        %1723 = vmatprep.subr.mxu0 0.0
        %1724 = vmatpush2.msra.mxu0 0.0
        %1725 = vmatprep.subr.mxu0 0.0
        %1726 = vmatpush2.msra.mxu0 0.0
        %1727 = vmatprep.subr.mxu0 0.0
        %1728 = vmatpush2.msra.mxu0 0.0
        %1729 = vmatprep.subr.mxu0 0.0
        %1730 = vmatpush2.msra.mxu0 0.0
        %1731 = vmatprep.mubr.f32.mxu0 0.0
        %1732 = vmatmul.mubr.f32.gmra.mxu0 %v1662
        %v1733 = vpop.f32.mrf.mxu0
        %v1734 = vadd.f32 0.0, %v1733
        %v1735 = vpop.f32.mrf.mxu0
        %1736 = vmatprep.mubr.f32.mxu0 0.0
        %1737 = vmatmul.mubr.f32.gmra.mxu0 %v1665
        %v1738 = vpop.f32.mrf.mxu0
        %v1739 = vadd.f32 0.0, %v1738
        %v1740 = vpop.f32.mrf.mxu0
        %1741 = vdwg.mxu0
        %v1742 = vadd.f32 %v1317, %v1734
        %v1743 = vadd.f32 %v1322, %v1739
        %1744 = vrot.lane.b32.xlu0 %v484, 104
        %v1745 = vpop.permute.xlu0 %1744
        %1746 = vrot.lane.b32.xlu0 %v484, 72
        %v1747 = vpop.permute.xlu0 %1746
        %v1748 = vsel %vm495, %v1745, 0
        %v1750 = vsel %vm495, %v1747, 0
        %1752 = vmatprep.subr.mxu0 0.0
        %1753 = vmatpush1.xpose.msra.mxu0 0.0
        %1754 = vmatprep.subr.mxu0 0.0
        %1755 = vmatpush1.xpose.msra.mxu0 0.0
        %1756 = vmatprep.subr.mxu0 0.0
        %1757 = vmatpush1.xpose.msra.mxu0 0.0
        %1758 = vmatprep.subr.mxu0 0.0
        %1759 = vmatpush1.xpose.msra.mxu0 0.0
        %1760 = vmatprep.subr.mxu0 0.0
        %1761 = vmatpush1.xpose.msra.mxu0 0.0
        %1762 = vmatprep.subr.mxu0 0.0
        %1763 = vmatpush1.xpose.msra.mxu0 0.0
        %1764 = vmatprep.subr.mxu0 0.0
        %1765 = vmatpush1.xpose.msra.mxu0 0.0
        %1766 = vmatprep.subr.mxu0 0.0
        %1767 = vmatpush1.xpose.msra.mxu0 0.0
        %1768 = vmatprep.subr.mxu0 0.0
        %1769 = vmatpush1.xpose.msra.mxu0 0.0
        %1770 = vmatprep.subr.mxu0 0.0
        %1771 = vmatpush1.xpose.msra.mxu0 0.0
        %1772 = vmatprep.subr.mxu0 0.0
        %1773 = vmatpush1.xpose.msra.mxu0 0.0
        %1774 = vmatprep.subr.mxu0 0.0
        %1775 = vmatpush1.xpose.msra.mxu0 0.0
        %1776 = vmatprep.subr.mxu0 0.0
        %1777 = vmatpush1.xpose.msra.mxu0 0.0
        %1778 = vmatprep.subr.mxu0 0.0
        %1779 = vmatpush1.xpose.msra.mxu0 0.0
        %1780 = vmatprep.subr.mxu0 0.0
        %1781 = vmatpush1.xpose.msra.mxu0 0.0
        %1782 = vmatprep.subr.mxu0 0.0
        %1783 = vmatpush1.xpose.msra.mxu0 %v1750
        %1784 = vmatprep.subr.mxu0 0.0
        %1785 = vmatpush2.xpose.msra.mxu0 0.0
        %1786 = vmatprep.subr.mxu0 0.0
        %1787 = vmatpush2.xpose.msra.mxu0 0.0
        %1788 = vmatprep.subr.mxu0 0.0
        %1789 = vmatpush2.xpose.msra.mxu0 0.0
        %1790 = vmatprep.subr.mxu0 0.0
        %1791 = vmatpush2.xpose.msra.mxu0 0.0
        %1792 = vmatprep.subr.mxu0 0.0
        %1793 = vmatpush2.xpose.msra.mxu0 0.0
        %1794 = vmatprep.subr.mxu0 0.0
        %1795 = vmatpush2.xpose.msra.mxu0 0.0
        %1796 = vmatprep.subr.mxu0 0.0
        %1797 = vmatpush2.xpose.msra.mxu0 0.0
        %1798 = vmatprep.subr.mxu0 0.0
        %1799 = vmatpush2.xpose.msra.mxu0 0.0
        %1800 = vmatprep.subr.mxu0 0.0
        %1801 = vmatpush2.xpose.msra.mxu0 0.0
        %1802 = vmatprep.subr.mxu0 0.0
        %1803 = vmatpush2.xpose.msra.mxu0 0.0
        %1804 = vmatprep.subr.mxu0 0.0
        %1805 = vmatpush2.xpose.msra.mxu0 0.0
        %1806 = vmatprep.subr.mxu0 0.0
        %1807 = vmatpush2.xpose.msra.mxu0 0.0
        %1808 = vmatprep.subr.mxu0 0.0
        %1809 = vmatpush2.xpose.msra.mxu0 0.0
        %1810 = vmatprep.subr.mxu0 0.0
        %1811 = vmatpush2.xpose.msra.mxu0 0.0
        %1812 = vmatprep.subr.mxu0 0.0
        %1813 = vmatpush2.xpose.msra.mxu0 0.0
        %1814 = vmatprep.subr.mxu0 0.0
        %1815 = vmatpush2.xpose.msra.mxu0 0.0
        %1816 = vmatprep.mubr.f32.mxu0 0.0
        %1817 = vmatmul.mubr.f32.gmra.mxu0 %v1748
        %v1818 = vpop.f32.mrf.mxu0
        %v1819 = vadd.f32 0.0, %v1818
        %v1820 = vpop.f32.mrf.mxu0
        %1821 = vdwg.mxu0
        %1822 = vrot.lane.b32.xlu0 %v489, 104
        %v1823 = vpop.permute.xlu0 %1822
        %1824 = vrot.lane.b32.xlu0 %v489, 72
        %v1825 = vpop.permute.xlu0 %1824
        %v1826 = vsel %vm495, %v1823, 0
        %v1828 = vsel %vm495, %v1825, 0
        %1830 = vmatprep.subr.mxu0 0.0
        %1831 = vmatpush1.xpose.msra.mxu0 0.0
        %1832 = vmatprep.subr.mxu0 0.0
        %1833 = vmatpush1.xpose.msra.mxu0 0.0
        %1834 = vmatprep.subr.mxu0 0.0
        %1835 = vmatpush1.xpose.msra.mxu0 0.0
        %1836 = vmatprep.subr.mxu0 0.0
        %1837 = vmatpush1.xpose.msra.mxu0 0.0
        %1838 = vmatprep.subr.mxu0 0.0
        %1839 = vmatpush1.xpose.msra.mxu0 0.0
        %1840 = vmatprep.subr.mxu0 0.0
        %1841 = vmatpush1.xpose.msra.mxu0 0.0
        %1842 = vmatprep.subr.mxu0 0.0
        %1843 = vmatpush1.xpose.msra.mxu0 0.0
        %1844 = vmatprep.subr.mxu0 0.0
        %1845 = vmatpush1.xpose.msra.mxu0 0.0
        %1846 = vmatprep.subr.mxu0 0.0
        %1847 = vmatpush1.xpose.msra.mxu0 0.0
        %1848 = vmatprep.subr.mxu0 0.0
        %1849 = vmatpush1.xpose.msra.mxu0 0.0
        %1850 = vmatprep.subr.mxu0 0.0
        %1851 = vmatpush1.xpose.msra.mxu0 0.0
        %1852 = vmatprep.subr.mxu0 0.0
        %1853 = vmatpush1.xpose.msra.mxu0 0.0
        %1854 = vmatprep.subr.mxu0 0.0
        %1855 = vmatpush1.xpose.msra.mxu0 0.0
        %1856 = vmatprep.subr.mxu0 0.0
        %1857 = vmatpush1.xpose.msra.mxu0 0.0
        %1858 = vmatprep.subr.mxu0 0.0
        %1859 = vmatpush1.xpose.msra.mxu0 0.0
        %1860 = vmatprep.subr.mxu0 0.0
        %1861 = vmatpush1.xpose.msra.mxu0 %v1828
        %1862 = vmatprep.subr.mxu0 0.0
        %1863 = vmatpush2.xpose.msra.mxu0 0.0
        %1864 = vmatprep.subr.mxu0 0.0
        %1865 = vmatpush2.xpose.msra.mxu0 0.0
        %1866 = vmatprep.subr.mxu0 0.0
        %1867 = vmatpush2.xpose.msra.mxu0 0.0
        %1868 = vmatprep.subr.mxu0 0.0
        %1869 = vmatpush2.xpose.msra.mxu0 0.0
        %1870 = vmatprep.subr.mxu0 0.0
        %1871 = vmatpush2.xpose.msra.mxu0 0.0
        %1872 = vmatprep.subr.mxu0 0.0
        %1873 = vmatpush2.xpose.msra.mxu0 0.0
        %1874 = vmatprep.subr.mxu0 0.0
        %1875 = vmatpush2.xpose.msra.mxu0 0.0
        %1876 = vmatprep.subr.mxu0 0.0
        %1877 = vmatpush2.xpose.msra.mxu0 0.0
        %1878 = vmatprep.subr.mxu0 0.0
        %1879 = vmatpush2.xpose.msra.mxu0 0.0
        %1880 = vmatprep.subr.mxu0 0.0
        %1881 = vmatpush2.xpose.msra.mxu0 0.0
        %1882 = vmatprep.subr.mxu0 0.0
        %1883 = vmatpush2.xpose.msra.mxu0 0.0
        %1884 = vmatprep.subr.mxu0 0.0
        %1885 = vmatpush2.xpose.msra.mxu0 0.0
        %1886 = vmatprep.subr.mxu0 0.0
        %1887 = vmatpush2.xpose.msra.mxu0 0.0
        %1888 = vmatprep.subr.mxu0 0.0
        %1889 = vmatpush2.xpose.msra.mxu0 0.0
        %1890 = vmatprep.subr.mxu0 0.0
        %1891 = vmatpush2.xpose.msra.mxu0 0.0
        %1892 = vmatprep.subr.mxu0 0.0
        %1893 = vmatpush2.xpose.msra.mxu0 0.0
        %1894 = vmatprep.mubr.f32.mxu0 0.0
        %1895 = vmatmul.mubr.f32.gmra.mxu0 %v1826
        %v1896 = vpop.f32.mrf.mxu0
        %v1897 = vadd.f32 0.0, %v1896
        %v1898 = vpop.f32.mrf.mxu0
        %1899 = vdwg.mxu0
        %v1900 = vmul.f32 %v1819, 0.35355338
        %v1901 = vmul.f32 %v1897, 0.35355338
        %v1902 = vsel %vm495, %v1900, -inf
        %1903 = vmax.xlane.f32.xlu0 %v1902
        %v1904 = vpop.xlane.xlu0 %1903
        %v1905 = vsel %vm495, %v1901, -inf
        %1906 = vmax.xlane.f32.xlu0 %v1905
        %v1907 = vpop.xlane.xlu0 %1906
        %v1908 = vsub.f32 %v1900, %v1904
        %v1909 = vsub.f32 %v1901, %v1907
        %v1910 = vmul.f32 %v1908, 1.442695
        %v1911 = vpow.pop %v1910
        %v1912 = vmul.f32 %v1909, 1.442695
        %v1913 = vpow.pop %v1912
        %v1914 = vsel %vm495, %v1911, 0.0
        %1915 = vadd.xlane.f32.xlu0 %v1914
        %v1916 = vpop.xlane.xlu0 %1915
        %v1917 = vsel %vm495, %v1913, 0.0
        %1918 = vadd.xlane.f32.xlu0 %v1917
        %v1919 = vpop.xlane.xlu0 %1918
        %v1920 = vrcp.pop %v1916
        %v1921 = vmul.f32 %v1911, %v1920
        %v1922 = vrcp.pop %v1919
        %v1923 = vmul.f32 %v1913, %v1922
        %1924 = vrot.lane.b32.xlu0 %v484, 40
        %v1925 = vpop.permute.xlu0 %1924
        %v1928 = vsel %vm495, %v1921, 0
        %1930 = vmatprep.subr.mxu0 0.0
        %1931 = vmatpush1.msra.mxu0 0.0
        %1932 = vmatprep.subr.mxu0 0.0
        %1933 = vmatpush1.msra.mxu0 0.0
        %1934 = vmatprep.subr.mxu0 0.0
        %1935 = vmatpush1.msra.mxu0 0.0
        %1936 = vmatprep.subr.mxu0 0.0
        %1937 = vmatpush1.msra.mxu0 0.0
        %1938 = vmatprep.subr.mxu0 0.0
        %1939 = vmatpush1.msra.mxu0 0.0
        %1940 = vmatprep.subr.mxu0 0.0
        %1941 = vmatpush1.msra.mxu0 0.0
        %1942 = vmatprep.subr.mxu0 0.0
        %1943 = vmatpush1.msra.mxu0 0.0
        %1944 = vmatprep.subr.mxu0 0.0
        %1945 = vmatpush1.msra.mxu0 0.0
        %1946 = vmatprep.subr.mxu0 0.0
        %1947 = vmatpush1.msra.mxu0 0.0
        %1948 = vmatprep.subr.mxu0 0.0
        %1949 = vmatpush1.msra.mxu0 0.0
        %1950 = vmatprep.subr.mxu0 0.0
        %1951 = vmatpush1.msra.mxu0 0.0
        %1952 = vmatprep.subr.mxu0 0.0
        %1953 = vmatpush1.msra.mxu0 0.0
        %1954 = vmatprep.subr.mxu0 0.0
        %1955 = vmatpush1.msra.mxu0 0.0
        %1956 = vmatprep.subr.mxu0 0.0
        %1957 = vmatpush1.msra.mxu0 0.0
        %1958 = vmatprep.subr.mxu0 0.0
        %1959 = vmatpush1.msra.mxu0 0.0
        %1960 = vmatprep.subr.mxu0 0.0
        %1961 = vmatpush1.msra.mxu0 %v1925
        %1962 = vmatprep.subr.mxu0 0.0
        %1963 = vmatpush2.msra.mxu0 0.0
        %1964 = vmatprep.subr.mxu0 0.0
        %1965 = vmatpush2.msra.mxu0 0.0
        %1966 = vmatprep.subr.mxu0 0.0
        %1967 = vmatpush2.msra.mxu0 0.0
        %1968 = vmatprep.subr.mxu0 0.0
        %1969 = vmatpush2.msra.mxu0 0.0
        %1970 = vmatprep.subr.mxu0 0.0
        %1971 = vmatpush2.msra.mxu0 0.0
        %1972 = vmatprep.subr.mxu0 0.0
        %1973 = vmatpush2.msra.mxu0 0.0
        %1974 = vmatprep.subr.mxu0 0.0
        %1975 = vmatpush2.msra.mxu0 0.0
        %1976 = vmatprep.subr.mxu0 0.0
        %1977 = vmatpush2.msra.mxu0 0.0
        %1978 = vmatprep.subr.mxu0 0.0
        %1979 = vmatpush2.msra.mxu0 0.0
        %1980 = vmatprep.subr.mxu0 0.0
        %1981 = vmatpush2.msra.mxu0 0.0
        %1982 = vmatprep.subr.mxu0 0.0
        %1983 = vmatpush2.msra.mxu0 0.0
        %1984 = vmatprep.subr.mxu0 0.0
        %1985 = vmatpush2.msra.mxu0 0.0
        %1986 = vmatprep.subr.mxu0 0.0
        %1987 = vmatpush2.msra.mxu0 0.0
        %1988 = vmatprep.subr.mxu0 0.0
        %1989 = vmatpush2.msra.mxu0 0.0
        %1990 = vmatprep.subr.mxu0 0.0
        %1991 = vmatpush2.msra.mxu0 0.0
        %1992 = vmatprep.subr.mxu0 0.0
        %1993 = vmatpush2.msra.mxu0 0.0
        %1994 = vmatprep.mubr.f32.mxu0 0.0
        %1995 = vmatmul.mubr.f32.gmra.mxu0 %v1928
        %v1996 = vpop.f32.mrf.mxu0
        %v1997 = vadd.f32 0.0, %v1996
        %v1998 = vpop.f32.mrf.mxu0
        %1999 = vdwg.mxu0
        %2000 = vrot.lane.b32.xlu0 %v489, 40
        %v2001 = vpop.permute.xlu0 %2000
        %v2004 = vsel %vm495, %v1923, 0
        %2006 = vmatprep.subr.mxu0 0.0
        %2007 = vmatpush1.msra.mxu0 0.0
        %2008 = vmatprep.subr.mxu0 0.0
        %2009 = vmatpush1.msra.mxu0 0.0
        %2010 = vmatprep.subr.mxu0 0.0
        %2011 = vmatpush1.msra.mxu0 0.0
        %2012 = vmatprep.subr.mxu0 0.0
        %2013 = vmatpush1.msra.mxu0 0.0
        %2014 = vmatprep.subr.mxu0 0.0
        %2015 = vmatpush1.msra.mxu0 0.0
        %2016 = vmatprep.subr.mxu0 0.0
        %2017 = vmatpush1.msra.mxu0 0.0
        %2018 = vmatprep.subr.mxu0 0.0
        %2019 = vmatpush1.msra.mxu0 0.0
        %2020 = vmatprep.subr.mxu0 0.0
        %2021 = vmatpush1.msra.mxu0 0.0
        %2022 = vmatprep.subr.mxu0 0.0
        %2023 = vmatpush1.msra.mxu0 0.0
        %2024 = vmatprep.subr.mxu0 0.0
        %2025 = vmatpush1.msra.mxu0 0.0
        %2026 = vmatprep.subr.mxu0 0.0
        %2027 = vmatpush1.msra.mxu0 0.0
        %2028 = vmatprep.subr.mxu0 0.0
        %2029 = vmatpush1.msra.mxu0 0.0
        %2030 = vmatprep.subr.mxu0 0.0
        %2031 = vmatpush1.msra.mxu0 0.0
        %2032 = vmatprep.subr.mxu0 0.0
        %2033 = vmatpush1.msra.mxu0 0.0
        %2034 = vmatprep.subr.mxu0 0.0
        %2035 = vmatpush1.msra.mxu0 0.0
        %2036 = vmatprep.subr.mxu0 0.0
        %2037 = vmatpush1.msra.mxu0 %v2001
        %2038 = vmatprep.subr.mxu0 0.0
        %2039 = vmatpush2.msra.mxu0 0.0
        %2040 = vmatprep.subr.mxu0 0.0
        %2041 = vmatpush2.msra.mxu0 0.0
        %2042 = vmatprep.subr.mxu0 0.0
        %2043 = vmatpush2.msra.mxu0 0.0
        %2044 = vmatprep.subr.mxu0 0.0
        %2045 = vmatpush2.msra.mxu0 0.0
        %2046 = vmatprep.subr.mxu0 0.0
        %2047 = vmatpush2.msra.mxu0 0.0
        %2048 = vmatprep.subr.mxu0 0.0
        %2049 = vmatpush2.msra.mxu0 0.0
        %2050 = vmatprep.subr.mxu0 0.0
        %2051 = vmatpush2.msra.mxu0 0.0
        %2052 = vmatprep.subr.mxu0 0.0
        %2053 = vmatpush2.msra.mxu0 0.0
        %2054 = vmatprep.subr.mxu0 0.0
        %2055 = vmatpush2.msra.mxu0 0.0
        %2056 = vmatprep.subr.mxu0 0.0
        %2057 = vmatpush2.msra.mxu0 0.0
        %2058 = vmatprep.subr.mxu0 0.0
        %2059 = vmatpush2.msra.mxu0 0.0
        %2060 = vmatprep.subr.mxu0 0.0
        %2061 = vmatpush2.msra.mxu0 0.0
        %2062 = vmatprep.subr.mxu0 0.0
        %2063 = vmatpush2.msra.mxu0 0.0
        %2064 = vmatprep.subr.mxu0 0.0
        %2065 = vmatpush2.msra.mxu0 0.0
        %2066 = vmatprep.subr.mxu0 0.0
        %2067 = vmatpush2.msra.mxu0 0.0
        %2068 = vmatprep.subr.mxu0 0.0
        %2069 = vmatpush2.msra.mxu0 0.0
        %2070 = vmatprep.mubr.f32.mxu0 0.0
        %2071 = vmatmul.mubr.f32.gmra.mxu0 %v2004
        %v2072 = vpop.f32.mrf.mxu0
        %v2073 = vadd.f32 0.0, %v2072
        %v2074 = vpop.f32.mrf.mxu0
        %2075 = vdwg.mxu0
        %2077 = vrot.lane.b32.xlu0 %v405, 32
        %v2078 = vpop.permute.xlu0 %2077
        %v2081 = vsel %vm495, %v1997, 0
        %v2084 = vsel %vm495, %v2073, 0
        %2086 = vmatprep.subr.mxu0 0.0
        %2087 = vmatpush1.msra.mxu0 0.0
        %2088 = vmatprep.subr.mxu0 0.0
        %2089 = vmatpush1.msra.mxu0 0.0
        %2090 = vmatprep.subr.mxu0 0.0
        %2091 = vmatpush1.msra.mxu0 0.0
        %2092 = vmatprep.subr.mxu0 0.0
        %2093 = vmatpush1.msra.mxu0 0.0
        %2094 = vmatprep.subr.mxu0 0.0
        %2095 = vmatpush1.msra.mxu0 0.0
        %2096 = vmatprep.subr.mxu0 0.0
        %2097 = vmatpush1.msra.mxu0 0.0
        %2098 = vmatprep.subr.mxu0 0.0
        %2099 = vmatpush1.msra.mxu0 0.0
        %2100 = vmatprep.subr.mxu0 0.0
        %2101 = vmatpush1.msra.mxu0 0.0
        %2102 = vmatprep.subr.mxu0 0.0
        %2103 = vmatpush1.msra.mxu0 0.0
        %2104 = vmatprep.subr.mxu0 0.0
        %2105 = vmatpush1.msra.mxu0 0.0
        %2106 = vmatprep.subr.mxu0 0.0
        %2107 = vmatpush1.msra.mxu0 0.0
        %2108 = vmatprep.subr.mxu0 0.0
        %2109 = vmatpush1.msra.mxu0 0.0
        %2110 = vmatprep.subr.mxu0 0.0
        %2111 = vmatpush1.msra.mxu0 0.0
        %2112 = vmatprep.subr.mxu0 0.0
        %2113 = vmatpush1.msra.mxu0 0.0
        %2114 = vmatprep.subr.mxu0 0.0
        %2115 = vmatpush1.msra.mxu0 0.0
        %2116 = vmatprep.subr.mxu0 0.0
        %2117 = vmatpush1.msra.mxu0 %v2078
        %2118 = vmatprep.subr.mxu0 0.0
        %2119 = vmatpush2.msra.mxu0 0.0
        %2120 = vmatprep.subr.mxu0 0.0
        %2121 = vmatpush2.msra.mxu0 0.0
        %2122 = vmatprep.subr.mxu0 0.0
        %2123 = vmatpush2.msra.mxu0 0.0
        %2124 = vmatprep.subr.mxu0 0.0
        %2125 = vmatpush2.msra.mxu0 0.0
        %2126 = vmatprep.subr.mxu0 0.0
        %2127 = vmatpush2.msra.mxu0 0.0
        %2128 = vmatprep.subr.mxu0 0.0
        %2129 = vmatpush2.msra.mxu0 0.0
        %2130 = vmatprep.subr.mxu0 0.0
        %2131 = vmatpush2.msra.mxu0 0.0
        %2132 = vmatprep.subr.mxu0 0.0
        %2133 = vmatpush2.msra.mxu0 0.0
        %2134 = vmatprep.subr.mxu0 0.0
        %2135 = vmatpush2.msra.mxu0 0.0
        %2136 = vmatprep.subr.mxu0 0.0
        %2137 = vmatpush2.msra.mxu0 0.0
        %2138 = vmatprep.subr.mxu0 0.0
        %2139 = vmatpush2.msra.mxu0 0.0
        %2140 = vmatprep.subr.mxu0 0.0
        %2141 = vmatpush2.msra.mxu0 0.0
        %2142 = vmatprep.subr.mxu0 0.0
        %2143 = vmatpush2.msra.mxu0 0.0
        %2144 = vmatprep.subr.mxu0 0.0
        %2145 = vmatpush2.msra.mxu0 0.0
        %2146 = vmatprep.subr.mxu0 0.0
        %2147 = vmatpush2.msra.mxu0 0.0
        %2148 = vmatprep.subr.mxu0 0.0
        %2149 = vmatpush2.msra.mxu0 0.0
        %2150 = vmatprep.mubr.f32.mxu0 0.0
        %2151 = vmatmul.mubr.f32.gmra.mxu0 %v2081
        %v2152 = vpop.f32.mrf.mxu0
        %v2153 = vadd.f32 0.0, %v2152
        %v2154 = vpop.f32.mrf.mxu0
        %2155 = vmatprep.mubr.f32.mxu0 0.0
        %2156 = vmatmul.mubr.f32.gmra.mxu0 %v2084
        %v2157 = vpop.f32.mrf.mxu0
        %v2158 = vadd.f32 0.0, %v2157
        %v2159 = vpop.f32.mrf.mxu0
        %2160 = vdwg.mxu0
        %v2161 = vadd.f32 %v1742, %v2153
        %v2162 = vadd.f32 %v1743, %v2158
        %2164 = vrot.lane.b32.xlu0 %v409, 32
        %v2165 = vpop.permute.xlu0 %2164
        %v2167 = vadd.f32 %v2161, %v2165
        %v2168 = vadd.f32 %v2162, %v2165
        %2169 = vrot.lane.b32.xlu0 %v1000, 8
        %v2170 = vpop.permute.xlu0 %2169
        %2171 = vrot.lane.b32.xlu0 %v1002, 8
        %v2172 = vpop.permute.xlu0 %2171
        %2175 = vrot.lane.b32.xlu0 %v1502, 16
        %v2176 = vpop.permute.xlu0 %2175
        %2177 = vrot.lane.b32.xlu0 %v1504, 16
        %v2178 = vpop.permute.xlu0 %2177
        %2181 = vrot.lane.b32.xlu0 %v1921, 24
        %v2182 = vpop.permute.xlu0 %2181
        %2183 = vrot.lane.b32.xlu0 %v1923, 24
        %v2184 = vpop.permute.xlu0 %2183
        %v2187 = vsel %vm495, %v668, %v2170
        %v2188 = vsel %vm495, %v670, %v2172
        %vm2189 = vcmask 130048
        %v2190 = vsel %vm2189, %v2187, %v2176
        %v2191 = vsel %vm2189, %v2188, %v2178
        %vm2192 = vcmask 195584
        %v2193 = vsel %vm2192, %v2190, %v2182
        %v2194 = vsel %vm2192, %v2191, %v2184
        %2195 = vst.msk [vmem:[%s357] sm:$0xff] %vm410, %v2193
        %2196 = vst.msk [vmem:[%s357 + $0x8] sm:$0xff] %vm410, %v2194
        %v2197 = vadd.f32 %v394, %v2167
        %v2198 = vadd.f32 %v395, %v2168
        %v2199 = vsel %vm410, %v2197, 0.0
        %2200 = vadd.xlane.f32.xlu0 %v2199
        %v2201 = vpop.xlane.xlu0 %2200
        %v2202 = vsel %vm410, %v2198, 0.0
        %2203 = vadd.xlane.f32.xlu0 %v2202
        %v2204 = vpop.xlane.xlu0 %2203
        %v2205 = vrcp.pop 32.0
        %v2206 = vmul.f32 %v2201, %v2205
        %v2207 = vmul.f32 %v2204, %v2205
        %v2208 = vsub.f32 %v2197, %v2206
        %v2209 = vsub.f32 %v2198, %v2207
        %v2210 = vmul.f32 %v2208, %v2208
        %v2211 = vmul.f32 %v2209, %v2209
        %v2212 = vsel %vm410, %v2210, 0.0
        %2213 = vadd.xlane.f32.xlu0 %v2212
        %v2214 = vpop.xlane.xlu0 %2213
        %v2215 = vsel %vm410, %v2211, 0.0
        %2216 = vadd.xlane.f32.xlu0 %v2215
        %v2217 = vpop.xlane.xlu0 %2216
        %v2218 = vmul.f32 %v2214, %v2205
        %v2219 = vmul.f32 %v2217, %v2205
        %v2220 = vadd.f32 %v2218, 1e-05
        %v2221 = vadd.f32 %v2219, 1e-05
        %v2222 = vrsqrt.pop %v2220
        %v2223 = vrsqrt.pop %v2221
        %v2224 = vmul.f32 %v2208, %v2222
        %v2225 = vmul.f32 %v2209, %v2223
        %v2226 = vlaneseq
        %v2227 = vshrl.u32 %v2226, 7
        %v2228 = vsub.s32 4, %v2227
        %v2229 = vrot.slane %v400, %v2228
        %v2230 = vmul.f32 %v2224, %v2229
        %v2231 = vmul.f32 %v2225, %v2229
        %v2232 = vlaneseq
        %v2233 = vshrl.u32 %v2232, 7
        %v2234 = vsub.s32 5, %v2233
        %v2235 = vrot.slane %v400, %v2234
        %v2236 = vadd.f32 %v2230, %v2235
        %v2237 = vadd.f32 %v2231, %v2235
        %s2238 = scalar_lea.vmem %s369, 32
        %v2239 = vld [vmem:[%s2238] sm:$0xff]
        %v2240 = vld [vmem:[%s2238 + $0x8] sm:$0xff]
        %v2241 = vld [vmem:[%s2238 + $0x10] sm:$0xff]
        %v2242 = vld [vmem:[%s2238 + $0x18] sm:$0xff]
        %v2247 = vcombine.high %v396, %v396
        %v2249 = vunpack.c.l.s4 1983009808
        %v2250 = vunpack.c.0.s8 %v2249
        %v2251 = vlaneseq
        %v2252 = vshrl.u32 %v2251, 7
        %v2253 = vsub.s32 %v2250, %v2252
        %v2254 = vrot.slane %v396, %v2253
        %v2256 = vunpack.c.l.s4 1983009808
        %v2257 = vunpack.c.0.s8 %v2256
        %v2258 = vlaneseq
        %v2259 = vshrl.u32 %v2258, 7
        %v2260 = vsub.s32 %v2257, %v2259
        %v2261 = vrot.slane %v2247, %v2260
        %v2262 = vcombine.high %v2254, %v2254
        %v2263 = vcombine.high %v2261, %v2261
        %v2265 = vunpack.c.l.s4 1983009808
        %v2266 = vunpack.c.0.s8 %v2265
        %v2267 = vlaneseq
        %v2268 = vshrl.u32 %v2267, 7
        %v2269 = vsub.s32 %v2266, %v2268
        %v2270 = vrot.slane %v397, %v2269
        %v2271 = vcombine.high %v398, %v398
        %v2273 = vunpack.c.l.s4 1983009808
        %v2274 = vunpack.c.0.s8 %v2273
        %v2275 = vlaneseq
        %v2276 = vshrl.u32 %v2275, 7
        %v2277 = vsub.s32 %v2274, %v2276
        %v2278 = vrot.slane %v398, %v2277
        %v2280 = vunpack.c.l.s4 1983009808
        %v2281 = vunpack.c.0.s8 %v2280
        %v2282 = vlaneseq
        %v2283 = vshrl.u32 %v2282, 7
        %v2284 = vsub.s32 %v2281, %v2283
        %v2285 = vrot.slane %v2271, %v2284
        %v2286 = vcombine.high %v2278, %v2278
        %v2287 = vcombine.high %v2285, %v2285
        %v2289 = vunpack.c.l.s4 1983009808
        %v2290 = vunpack.c.0.s8 %v2289
        %v2291 = vlaneseq
        %v2292 = vshrl.u32 %v2291, 7
        %v2293 = vsub.s32 %v2290, %v2292
        %v2294 = vrot.slane %v399, %v2293
        %v2295 = vlaneseq
        %v2296 = vshrl.u32 %v2295, 7
        %v2297 = vsub.s32 1, %v2296
        %v2298 = vrot.slane %v400, %v2297
        %v2300 = vsel %vm410, %v2236, 0
        %v2303 = vsel %vm410, %v2237, 0
        %2305 = vmatprep.subr.mxu0 0.0
        %2306 = vmatpush1.msra.mxu0 0.0
        %2307 = vmatprep.subr.mxu0 0.0
        %2308 = vmatpush1.msra.mxu0 0.0
        %2309 = vmatprep.subr.mxu0 0.0
        %2310 = vmatpush1.msra.mxu0 0.0
        %2311 = vmatprep.subr.mxu0 0.0
        %2312 = vmatpush1.msra.mxu0 0.0
        %2313 = vmatprep.subr.mxu0 0.0
        %2314 = vmatpush1.msra.mxu0 0.0
        %2315 = vmatprep.subr.mxu0 0.0
        %2316 = vmatpush1.msra.mxu0 0.0
        %2317 = vmatprep.subr.mxu0 0.0
        %2318 = vmatpush1.msra.mxu0 0.0
        %2319 = vmatprep.subr.mxu0 0.0
        %2320 = vmatpush1.msra.mxu0 0.0
        %2321 = vmatprep.subr.mxu0 0.0
        %2322 = vmatpush1.msra.mxu0 0.0
        %2323 = vmatprep.subr.mxu0 0.0
        %2324 = vmatpush1.msra.mxu0 0.0
        %2325 = vmatprep.subr.mxu0 0.0
        %2326 = vmatpush1.msra.mxu0 0.0
        %2327 = vmatprep.subr.mxu0 0.0
        %2328 = vmatpush1.msra.mxu0 0.0
        %2329 = vmatprep.subr.mxu0 0.0
        %2330 = vmatpush1.msra.mxu0 %v2242
        %2331 = vmatprep.subr.mxu0 0.0
        %2332 = vmatpush1.msra.mxu0 %v2241
        %2333 = vmatprep.subr.mxu0 0.0
        %2334 = vmatpush1.msra.mxu0 %v2240
        %2335 = vmatprep.subr.mxu0 0.0
        %2336 = vmatpush1.msra.mxu0 %v2239
        %2337 = vmatprep.subr.mxu0 0.0
        %2338 = vmatpush2.msra.mxu0 0.0
        %2339 = vmatprep.subr.mxu0 0.0
        %2340 = vmatpush2.msra.mxu0 0.0
        %2341 = vmatprep.subr.mxu0 0.0
        %2342 = vmatpush2.msra.mxu0 0.0
        %2343 = vmatprep.subr.mxu0 0.0
        %2344 = vmatpush2.msra.mxu0 0.0
        %2345 = vmatprep.subr.mxu0 0.0
        %2346 = vmatpush2.msra.mxu0 0.0
        %2347 = vmatprep.subr.mxu0 0.0
        %2348 = vmatpush2.msra.mxu0 0.0
        %2349 = vmatprep.subr.mxu0 0.0
        %2350 = vmatpush2.msra.mxu0 0.0
        %2351 = vmatprep.subr.mxu0 0.0
        %2352 = vmatpush2.msra.mxu0 0.0
        %2353 = vmatprep.subr.mxu0 0.0
        %2354 = vmatpush2.msra.mxu0 0.0
        %2355 = vmatprep.subr.mxu0 0.0
        %2356 = vmatpush2.msra.mxu0 0.0
        %2357 = vmatprep.subr.mxu0 0.0
        %2358 = vmatpush2.msra.mxu0 0.0
        %2359 = vmatprep.subr.mxu0 0.0
        %2360 = vmatpush2.msra.mxu0 0.0
        %2361 = vmatprep.subr.mxu0 0.0
        %2362 = vmatpush2.msra.mxu0 0.0
        %2363 = vmatprep.subr.mxu0 0.0
        %2364 = vmatpush2.msra.mxu0 0.0
        %2365 = vmatprep.subr.mxu0 0.0
        %2366 = vmatpush2.msra.mxu0 0.0
        %2367 = vmatprep.subr.mxu0 0.0
        %2368 = vmatpush2.msra.mxu0 0.0
        %2369 = vmatprep.mubr.f32.mxu0 0.0
        %2370 = vmatmul.mubr.f32.gmra.mxu0 %v2300
        %v2371 = vpop.f32.mrf.mxu0
        %v2372 = vadd.f32 %v2298, %v2371
        %v2373 = vpop.f32.mrf.mxu0
        %2374 = vmatprep.mubr.f32.mxu0 0.0
        %2375 = vmatmul.mubr.f32.gmra.mxu0 %v2303
        %v2376 = vpop.f32.mrf.mxu0
        %v2377 = vadd.f32 %v2298, %v2376
        %v2378 = vpop.f32.mrf.mxu0
        %2379 = vdwg.mxu0
        %v2380 = vcombine.low %v2254, %v2262
        %v2381 = vcombine.low %v2261, %v2263
        %v2383 = vunpack.c.l.s4 1983009808
        %v2384 = vunpack.c.0.s8 %v2383
        %v2385 = vlaneseq
        %v2386 = vshrl.u32 %v2385, 7
        %v2387 = vsub.s32 %v2384, %v2386
        %v2388 = vrot.slane %v2380, %v2387
        %v2390 = vunpack.c.l.s4 1983009808
        %v2391 = vunpack.c.0.s8 %v2390
        %v2392 = vlaneseq
        %v2393 = vshrl.u32 %v2392, 7
        %v2394 = vsub.s32 %v2391, %v2393
        %v2395 = vrot.slane %v2381, %v2394
        %v2396 = vcombine.low %v2388, %v2395
        %v2397 = vcombine.low %v2270, %v2278
        %v2398 = vcombine.low %v2286, %v2285
        %v2400 = vunpack.c.l.s4 1983009808
        %v2401 = vunpack.c.0.s8 %v2400
        %v2402 = vlaneseq
        %v2403 = vshrl.u32 %v2402, 7
        %v2404 = vsub.s32 %v2401, %v2403
        %v2405 = vrot.slane %v2397, %v2404
        %v2407 = vunpack.c.l.s4 1983009808
        %v2408 = vunpack.c.0.s8 %v2407
        %v2409 = vlaneseq
        %v2410 = vshrl.u32 %v2409, 7
        %v2411 = vsub.s32 %v2408, %v2410
        %v2412 = vrot.slane %v2398, %v2411
        %v2413 = vcombine.low %v2405, %v2412
        %v2414 = vcombine.low %v2287, %v2294
        %v2416 = vunpack.c.l.s4 1983009808
        %v2417 = vunpack.c.0.s8 %v2416
        %v2418 = vlaneseq
        %v2419 = vshrl.u32 %v2418, 7
        %v2420 = vsub.s32 %v2417, %v2419
        %v2421 = vrot.slane %v2414, %v2420
        %2426 = vrot.lane.b32.xlu0 %v2239, 96
        %v2427 = vpop.permute.xlu0 %2426
        %2428 = vrot.lane.b32.xlu0 %v2240, 96
        %v2429 = vpop.permute.xlu0 %2428
        %2430 = vrot.lane.b32.xlu0 %v2241, 96
        %v2431 = vpop.permute.xlu0 %2430
        %2432 = vrot.lane.b32.xlu0 %v2242, 96
        %v2433 = vpop.permute.xlu0 %2432
        %2439 = vrot.lane.b32.xlu0 %v2298, 96
        %v2440 = vpop.permute.xlu0 %2439
        %v2442 = vsel %vm410, %v2396, 0
        %v2444 = vsel %vm410, %v2413, 0
        %v2446 = vsel %vm410, %v2421, 0
        %2448 = vmatprep.subr.mxu0 0.0
        %2449 = vmatpush1.msra.mxu0 0.0
        %2450 = vmatprep.subr.mxu0 0.0
        %2451 = vmatpush1.msra.mxu0 0.0
        %2452 = vmatprep.subr.mxu0 0.0
        %2453 = vmatpush1.msra.mxu0 0.0
        %2454 = vmatprep.subr.mxu0 0.0
        %2455 = vmatpush1.msra.mxu0 0.0
        %2456 = vmatprep.subr.mxu0 0.0
        %2457 = vmatpush1.msra.mxu0 0.0
        %2458 = vmatprep.subr.mxu0 0.0
        %2459 = vmatpush1.msra.mxu0 0.0
        %2460 = vmatprep.subr.mxu0 0.0
        %2461 = vmatpush1.msra.mxu0 0.0
        %2462 = vmatprep.subr.mxu0 0.0
        %2463 = vmatpush1.msra.mxu0 0.0
        %2464 = vmatprep.subr.mxu0 0.0
        %2465 = vmatpush1.msra.mxu0 0.0
        %2466 = vmatprep.subr.mxu0 0.0
        %2467 = vmatpush1.msra.mxu0 0.0
        %2468 = vmatprep.subr.mxu0 0.0
        %2469 = vmatpush1.msra.mxu0 0.0
        %2470 = vmatprep.subr.mxu0 0.0
        %2471 = vmatpush1.msra.mxu0 0.0
        %2472 = vmatprep.subr.mxu0 0.0
        %2473 = vmatpush1.msra.mxu0 %v2433
        %2474 = vmatprep.subr.mxu0 0.0
        %2475 = vmatpush1.msra.mxu0 %v2431
        %2476 = vmatprep.subr.mxu0 0.0
        %2477 = vmatpush1.msra.mxu0 %v2429
        %2478 = vmatprep.subr.mxu0 0.0
        %2479 = vmatpush1.msra.mxu0 %v2427
        %2480 = vmatprep.subr.mxu0 0.0
        %2481 = vmatpush2.msra.mxu0 0.0
        %2482 = vmatprep.subr.mxu0 0.0
        %2483 = vmatpush2.msra.mxu0 0.0
        %2484 = vmatprep.subr.mxu0 0.0
        %2485 = vmatpush2.msra.mxu0 0.0
        %2486 = vmatprep.subr.mxu0 0.0
        %2487 = vmatpush2.msra.mxu0 0.0
        %2488 = vmatprep.subr.mxu0 0.0
        %2489 = vmatpush2.msra.mxu0 0.0
        %2490 = vmatprep.subr.mxu0 0.0
        %2491 = vmatpush2.msra.mxu0 0.0
        %2492 = vmatprep.subr.mxu0 0.0
        %2493 = vmatpush2.msra.mxu0 0.0
        %2494 = vmatprep.subr.mxu0 0.0
        %2495 = vmatpush2.msra.mxu0 0.0
        %2496 = vmatprep.subr.mxu0 0.0
        %2497 = vmatpush2.msra.mxu0 0.0
        %2498 = vmatprep.subr.mxu0 0.0
        %2499 = vmatpush2.msra.mxu0 0.0
        %2500 = vmatprep.subr.mxu0 0.0
        %2501 = vmatpush2.msra.mxu0 0.0
        %2502 = vmatprep.subr.mxu0 0.0
        %2503 = vmatpush2.msra.mxu0 0.0
        %2504 = vmatprep.subr.mxu0 0.0
        %2505 = vmatpush2.msra.mxu0 0.0
        %2506 = vmatprep.subr.mxu0 0.0
        %2507 = vmatpush2.msra.mxu0 0.0
        %2508 = vmatprep.subr.mxu0 0.0
        %2509 = vmatpush2.msra.mxu0 0.0
        %2510 = vmatprep.subr.mxu0 0.0
        %2511 = vmatpush2.msra.mxu0 0.0
        %2512 = vmatprep.mubr.f32.mxu0 0.0
        %2513 = vmatmul.mubr.f32.gmra.mxu0 %v2442
        %v2514 = vpop.f32.mrf.mxu0
        %v2515 = vadd.f32 %v2440, %v2514
        %v2516 = vpop.f32.mrf.mxu0
        %2517 = vmatprep.mubr.f32.mxu0 0.0
        %2518 = vmatmul.mubr.f32.gmra.mxu0 %v2444
        %v2519 = vpop.f32.mrf.mxu0
        %v2520 = vadd.f32 %v2440, %v2519
        %v2521 = vpop.f32.mrf.mxu0
        %2522 = vmatprep.mubr.f32.mxu0 0.0
        %2523 = vmatmul.mubr.f32.gmra.mxu0 %v2446
        %v2524 = vpop.f32.mrf.mxu0
        %v2525 = vadd.f32 %v2440, %v2524
        %v2526 = vpop.f32.mrf.mxu0
        %2527 = vdwg.mxu0
        %v2531 = vcombine.high %v2515, %v2515
        %v2533 = vunpack.c.l.s4 1983009808
        %v2534 = vunpack.c.0.s8 %v2533
        %v2535 = vlaneseq
        %v2536 = vshrl.u32 %v2535, 7
        %v2537 = vsub.s32 %v2534, %v2536
        %v2538 = vrot.slane %v2515, %v2537
        %v2540 = vunpack.c.l.s4 1983009808
        %v2541 = vunpack.c.0.s8 %v2540
        %v2542 = vlaneseq
        %v2543 = vshrl.u32 %v2542, 7
        %v2544 = vsub.s32 %v2541, %v2543
        %v2545 = vrot.slane %v2531, %v2544
        %v2546 = vcombine.high %v2538, %v2538
        %v2547 = vcombine.high %v2545, %v2545
        %v2548 = vcombine.high %v2520, %v2520
        %v2550 = vunpack.c.l.s4 1983009808
        %v2551 = vunpack.c.0.s8 %v2550
        %v2552 = vlaneseq
        %v2553 = vshrl.u32 %v2552, 7
        %v2554 = vsub.s32 %v2551, %v2553
        %v2555 = vrot.slane %v2520, %v2554
        %v2557 = vunpack.c.l.s4 1983009808
        %v2558 = vunpack.c.0.s8 %v2557
        %v2559 = vlaneseq
        %v2560 = vshrl.u32 %v2559, 7
        %v2561 = vsub.s32 %v2558, %v2560
        %v2562 = vrot.slane %v2548, %v2561
        %v2563 = vcombine.high %v2555, %v2555
        %v2564 = vcombine.high %v2562, %v2562
        %v2566 = vunpack.c.l.s4 1983009808
        %v2567 = vunpack.c.0.s8 %v2566
        %v2568 = vlaneseq
        %v2569 = vshrl.u32 %v2568, 7
        %v2570 = vsub.s32 %v2567, %v2569
        %v2571 = vrot.slane %v2525, %v2570
        %v2572 = vcombine.high %v2571, %v2571
        %v2573 = vcombine.low %v2538, %v2546
        %v2574 = vcombine.low %v2545, %v2547
        %v2576 = vunpack.c.l.s4 1983009808
        %v2577 = vunpack.c.0.s8 %v2576
        %v2578 = vlaneseq
        %v2579 = vshrl.u32 %v2578, 7
        %v2580 = vsub.s32 %v2577, %v2579
        %v2581 = vrot.slane %v2573, %v2580
        %v2583 = vunpack.c.l.s4 1983009808
        %v2584 = vunpack.c.0.s8 %v2583
        %v2585 = vlaneseq
        %v2586 = vshrl.u32 %v2585, 7
        %v2587 = vsub.s32 %v2584, %v2586
        %v2588 = vrot.slane %v2574, %v2587
        %v2589 = vcombine.low %v2581, %v2588
        %v2591 = vunpack.c.l.s4 1983009808
        %v2592 = vunpack.c.0.s8 %v2591
        %v2593 = vlaneseq
        %v2594 = vshrl.u32 %v2593, 7
        %v2595 = vsub.s32 %v2592, %v2594
        %v2596 = vrot.slane %v2555, %v2595
        %v2598 = vsel %vm495, %v2372, 0
        %v2600 = vsel %vm495, %v2589, 0
        %v2602 = vsel %vm495, %v2596, 0
        %2604 = vmatprep.subr.mxu0 0.0
        %2605 = vmatpush1.xpose.msra.mxu0 0.0
        %2606 = vmatprep.subr.mxu0 0.0
        %2607 = vmatpush1.xpose.msra.mxu0 0.0
        %2608 = vmatprep.subr.mxu0 0.0
        %2609 = vmatpush1.xpose.msra.mxu0 0.0
        %2610 = vmatprep.subr.mxu0 0.0
        %2611 = vmatpush1.xpose.msra.mxu0 0.0
        %2612 = vmatprep.subr.mxu0 0.0
        %2613 = vmatpush1.xpose.msra.mxu0 0.0
        %2614 = vmatprep.subr.mxu0 0.0
        %2615 = vmatpush1.xpose.msra.mxu0 0.0
        %2616 = vmatprep.subr.mxu0 0.0
        %2617 = vmatpush1.xpose.msra.mxu0 0.0
        %2618 = vmatprep.subr.mxu0 0.0
        %2619 = vmatpush1.xpose.msra.mxu0 0.0
        %2620 = vmatprep.subr.mxu0 0.0
        %2621 = vmatpush1.xpose.msra.mxu0 0.0
        %2622 = vmatprep.subr.mxu0 0.0
        %2623 = vmatpush1.xpose.msra.mxu0 0.0
        %2624 = vmatprep.subr.mxu0 0.0
        %2625 = vmatpush1.xpose.msra.mxu0 0.0
        %2626 = vmatprep.subr.mxu0 0.0
        %2627 = vmatpush1.xpose.msra.mxu0 0.0
        %2628 = vmatprep.subr.mxu0 0.0
        %2629 = vmatpush1.xpose.msra.mxu0 0.0
        %2630 = vmatprep.subr.mxu0 0.0
        %2631 = vmatpush1.xpose.msra.mxu0 0.0
        %2632 = vmatprep.subr.mxu0 0.0
        %2633 = vmatpush1.xpose.msra.mxu0 %v2602
        %2634 = vmatprep.subr.mxu0 0.0
        %2635 = vmatpush1.xpose.msra.mxu0 %v2600
        %2636 = vmatprep.subr.mxu0 0.0
        %2637 = vmatpush2.xpose.msra.mxu0 0.0
        %2638 = vmatprep.subr.mxu0 0.0
        %2639 = vmatpush2.xpose.msra.mxu0 0.0
        %2640 = vmatprep.subr.mxu0 0.0
        %2641 = vmatpush2.xpose.msra.mxu0 0.0
        %2642 = vmatprep.subr.mxu0 0.0
        %2643 = vmatpush2.xpose.msra.mxu0 0.0
        %2644 = vmatprep.subr.mxu0 0.0
        %2645 = vmatpush2.xpose.msra.mxu0 0.0
        %2646 = vmatprep.subr.mxu0 0.0
        %2647 = vmatpush2.xpose.msra.mxu0 0.0
        %2648 = vmatprep.subr.mxu0 0.0
        %2649 = vmatpush2.xpose.msra.mxu0 0.0
        %2650 = vmatprep.subr.mxu0 0.0
        %2651 = vmatpush2.xpose.msra.mxu0 0.0
        %2652 = vmatprep.subr.mxu0 0.0
        %2653 = vmatpush2.xpose.msra.mxu0 0.0
        %2654 = vmatprep.subr.mxu0 0.0
        %2655 = vmatpush2.xpose.msra.mxu0 0.0
        %2656 = vmatprep.subr.mxu0 0.0
        %2657 = vmatpush2.xpose.msra.mxu0 0.0
        %2658 = vmatprep.subr.mxu0 0.0
        %2659 = vmatpush2.xpose.msra.mxu0 0.0
        %2660 = vmatprep.subr.mxu0 0.0
        %2661 = vmatpush2.xpose.msra.mxu0 0.0
        %2662 = vmatprep.subr.mxu0 0.0
        %2663 = vmatpush2.xpose.msra.mxu0 0.0
        %2664 = vmatprep.subr.mxu0 0.0
        %2665 = vmatpush2.xpose.msra.mxu0 0.0
        %2666 = vmatprep.subr.mxu0 0.0
        %2667 = vmatpush2.xpose.msra.mxu0 0.0
        %2668 = vmatprep.mubr.f32.mxu0 0.0
        %2669 = vmatmul.mubr.f32.gmra.mxu0 %v2598
        %v2670 = vpop.f32.mrf.mxu0
        %v2671 = vadd.f32 0.0, %v2670
        %v2672 = vpop.f32.mrf.mxu0
        %2673 = vdwg.mxu0
        %v2674 = vcombine.low %v2563, %v2562
        %v2675 = vcombine.low %v2564, %v2571
        %v2677 = vunpack.c.l.s4 1983009808
        %v2678 = vunpack.c.0.s8 %v2677
        %v2679 = vlaneseq
        %v2680 = vshrl.u32 %v2679, 7
        %v2681 = vsub.s32 %v2678, %v2680
        %v2682 = vrot.slane %v2674, %v2681
        %v2684 = vunpack.c.l.s4 1983009808
        %v2685 = vunpack.c.0.s8 %v2684
        %v2686 = vlaneseq
        %v2687 = vshrl.u32 %v2686, 7
        %v2688 = vsub.s32 %v2685, %v2687
        %v2689 = vrot.slane %v2675, %v2688
        %v2690 = vcombine.low %v2682, %v2689
        %v2692 = vunpack.c.l.s4 1983009808
        %v2693 = vunpack.c.0.s8 %v2692
        %v2694 = vlaneseq
        %v2695 = vshrl.u32 %v2694, 7
        %v2696 = vsub.s32 %v2693, %v2695
        %v2697 = vrot.slane %v2572, %v2696
        %v2699 = vsel %vm495, %v2377, 0
        %v2701 = vsel %vm495, %v2690, 0
        %v2703 = vsel %vm495, %v2697, 0
        %2705 = vmatprep.subr.mxu0 0.0
        %2706 = vmatpush1.xpose.msra.mxu0 0.0
        %2707 = vmatprep.subr.mxu0 0.0
        %2708 = vmatpush1.xpose.msra.mxu0 0.0
        %2709 = vmatprep.subr.mxu0 0.0
        %2710 = vmatpush1.xpose.msra.mxu0 0.0
        %2711 = vmatprep.subr.mxu0 0.0
        %2712 = vmatpush1.xpose.msra.mxu0 0.0
        %2713 = vmatprep.subr.mxu0 0.0
        %2714 = vmatpush1.xpose.msra.mxu0 0.0
        %2715 = vmatprep.subr.mxu0 0.0
        %2716 = vmatpush1.xpose.msra.mxu0 0.0
        %2717 = vmatprep.subr.mxu0 0.0
        %2718 = vmatpush1.xpose.msra.mxu0 0.0
        %2719 = vmatprep.subr.mxu0 0.0
        %2720 = vmatpush1.xpose.msra.mxu0 0.0
        %2721 = vmatprep.subr.mxu0 0.0
        %2722 = vmatpush1.xpose.msra.mxu0 0.0
        %2723 = vmatprep.subr.mxu0 0.0
        %2724 = vmatpush1.xpose.msra.mxu0 0.0
        %2725 = vmatprep.subr.mxu0 0.0
        %2726 = vmatpush1.xpose.msra.mxu0 0.0
        %2727 = vmatprep.subr.mxu0 0.0
        %2728 = vmatpush1.xpose.msra.mxu0 0.0
        %2729 = vmatprep.subr.mxu0 0.0
        %2730 = vmatpush1.xpose.msra.mxu0 0.0
        %2731 = vmatprep.subr.mxu0 0.0
        %2732 = vmatpush1.xpose.msra.mxu0 0.0
        %2733 = vmatprep.subr.mxu0 0.0
        %2734 = vmatpush1.xpose.msra.mxu0 %v2703
        %2735 = vmatprep.subr.mxu0 0.0
        %2736 = vmatpush1.xpose.msra.mxu0 %v2701
        %2737 = vmatprep.subr.mxu0 0.0
        %2738 = vmatpush2.xpose.msra.mxu0 0.0
        %2739 = vmatprep.subr.mxu0 0.0
        %2740 = vmatpush2.xpose.msra.mxu0 0.0
        %2741 = vmatprep.subr.mxu0 0.0
        %2742 = vmatpush2.xpose.msra.mxu0 0.0
        %2743 = vmatprep.subr.mxu0 0.0
        %2744 = vmatpush2.xpose.msra.mxu0 0.0
        %2745 = vmatprep.subr.mxu0 0.0
        %2746 = vmatpush2.xpose.msra.mxu0 0.0
        %2747 = vmatprep.subr.mxu0 0.0
        %2748 = vmatpush2.xpose.msra.mxu0 0.0
        %2749 = vmatprep.subr.mxu0 0.0
        %2750 = vmatpush2.xpose.msra.mxu0 0.0
        %2751 = vmatprep.subr.mxu0 0.0
        %2752 = vmatpush2.xpose.msra.mxu0 0.0
        %2753 = vmatprep.subr.mxu0 0.0
        %2754 = vmatpush2.xpose.msra.mxu0 0.0
        %2755 = vmatprep.subr.mxu0 0.0
        %2756 = vmatpush2.xpose.msra.mxu0 0.0
        %2757 = vmatprep.subr.mxu0 0.0
        %2758 = vmatpush2.xpose.msra.mxu0 0.0
        %2759 = vmatprep.subr.mxu0 0.0
        %2760 = vmatpush2.xpose.msra.mxu0 0.0
        %2761 = vmatprep.subr.mxu0 0.0
        %2762 = vmatpush2.xpose.msra.mxu0 0.0
        %2763 = vmatprep.subr.mxu0 0.0
        %2764 = vmatpush2.xpose.msra.mxu0 0.0
        %2765 = vmatprep.subr.mxu0 0.0
        %2766 = vmatpush2.xpose.msra.mxu0 0.0
        %2767 = vmatprep.subr.mxu0 0.0
        %2768 = vmatpush2.xpose.msra.mxu0 0.0
        %2769 = vmatprep.mubr.f32.mxu0 0.0
        %2770 = vmatmul.mubr.f32.gmra.mxu0 %v2699
        %v2771 = vpop.f32.mrf.mxu0
        %v2772 = vadd.f32 0.0, %v2771
        %v2773 = vpop.f32.mrf.mxu0
        %2774 = vdwg.mxu0
        %v2775 = vmul.f32 %v2671, 0.35355338
        %v2776 = vmul.f32 %v2772, 0.35355338
        %vm2777 = vcmask 80896
        %v2778 = vsel %vm2777, %v2775, -inf
        %2779 = vmax.xlane.f32.xlu0 %v2778
        %v2780 = vpop.xlane.xlu0 %2779
        %v2781 = vsel %vm2777, %v2776, -inf
        %2782 = vmax.xlane.f32.xlu0 %v2781
        %v2783 = vpop.xlane.xlu0 %2782
        %v2784 = vsub.f32 %v2775, %v2780
        %v2785 = vsub.f32 %v2776, %v2783
        %v2786 = vmul.f32 %v2784, 1.442695
        %v2787 = vpow.pop %v2786
        %v2788 = vmul.f32 %v2785, 1.442695
        %v2789 = vpow.pop %v2788
        %v2790 = vsel %vm2777, %v2787, 0.0
        %2791 = vadd.xlane.f32.xlu0 %v2790
        %v2792 = vpop.xlane.xlu0 %2791
        %v2793 = vsel %vm2777, %v2789, 0.0
        %2794 = vadd.xlane.f32.xlu0 %v2793
        %v2795 = vpop.xlane.xlu0 %2794
        %v2796 = vrcp.pop %v2792
        %v2797 = vmul.f32 %v2787, %v2796
        %v2798 = vrcp.pop %v2795
        %v2799 = vmul.f32 %v2789, %v2798
        %2800 = vrot.lane.b32.xlu0 %v2589, 96
        %v2801 = vpop.permute.xlu0 %2800
        %2802 = vrot.lane.b32.xlu0 %v2596, 96
        %v2803 = vpop.permute.xlu0 %2802
        %v2806 = vsel %vm2777, %v2797, 0
        %vm2808 = vcmask 1041408
        %v2809 = vsel %vm2808, %v2803, 0
        %2811 = vmatprep.subr.mxu0 0.0
        %2812 = vmatpush1.msra.mxu0 0.0
        %2813 = vmatprep.subr.mxu0 0.0
        %2814 = vmatpush1.msra.mxu0 0.0
        %2815 = vmatprep.subr.mxu0 0.0
        %2816 = vmatpush1.msra.mxu0 0.0
        %2817 = vmatprep.subr.mxu0 0.0
        %2818 = vmatpush1.msra.mxu0 0.0
        %2819 = vmatprep.subr.mxu0 0.0
        %2820 = vmatpush1.msra.mxu0 0.0
        %2821 = vmatprep.subr.mxu0 0.0
        %2822 = vmatpush1.msra.mxu0 0.0
        %2823 = vmatprep.subr.mxu0 0.0
        %2824 = vmatpush1.msra.mxu0 0.0
        %2825 = vmatprep.subr.mxu0 0.0
        %2826 = vmatpush1.msra.mxu0 0.0
        %2827 = vmatprep.subr.mxu0 0.0
        %2828 = vmatpush1.msra.mxu0 0.0
        %2829 = vmatprep.subr.mxu0 0.0
        %2830 = vmatpush1.msra.mxu0 0.0
        %2831 = vmatprep.subr.mxu0 0.0
        %2832 = vmatpush1.msra.mxu0 0.0
        %2833 = vmatprep.subr.mxu0 0.0
        %2834 = vmatpush1.msra.mxu0 0.0
        %2835 = vmatprep.subr.mxu0 0.0
        %2836 = vmatpush1.msra.mxu0 0.0
        %2837 = vmatprep.subr.mxu0 0.0
        %2838 = vmatpush1.msra.mxu0 0.0
        %2839 = vmatprep.subr.mxu0 0.0
        %2840 = vmatpush1.msra.mxu0 %v2809
        %2841 = vmatprep.subr.mxu0 0.0
        %2842 = vmatpush1.msra.mxu0 %v2801
        %2843 = vmatprep.subr.mxu0 0.0
        %2844 = vmatpush2.msra.mxu0 0.0
        %2845 = vmatprep.subr.mxu0 0.0
        %2846 = vmatpush2.msra.mxu0 0.0
        %2847 = vmatprep.subr.mxu0 0.0
        %2848 = vmatpush2.msra.mxu0 0.0
        %2849 = vmatprep.subr.mxu0 0.0
        %2850 = vmatpush2.msra.mxu0 0.0
        %2851 = vmatprep.subr.mxu0 0.0
        %2852 = vmatpush2.msra.mxu0 0.0
        %2853 = vmatprep.subr.mxu0 0.0
        %2854 = vmatpush2.msra.mxu0 0.0
        %2855 = vmatprep.subr.mxu0 0.0
        %2856 = vmatpush2.msra.mxu0 0.0
        %2857 = vmatprep.subr.mxu0 0.0
        %2858 = vmatpush2.msra.mxu0 0.0
        %2859 = vmatprep.subr.mxu0 0.0
        %2860 = vmatpush2.msra.mxu0 0.0
        %2861 = vmatprep.subr.mxu0 0.0
        %2862 = vmatpush2.msra.mxu0 0.0
        %2863 = vmatprep.subr.mxu0 0.0
        %2864 = vmatpush2.msra.mxu0 0.0
        %2865 = vmatprep.subr.mxu0 0.0
        %2866 = vmatpush2.msra.mxu0 0.0
        %2867 = vmatprep.subr.mxu0 0.0
        %2868 = vmatpush2.msra.mxu0 0.0
        %2869 = vmatprep.subr.mxu0 0.0
        %2870 = vmatpush2.msra.mxu0 0.0
        %2871 = vmatprep.subr.mxu0 0.0
        %2872 = vmatpush2.msra.mxu0 0.0
        %2873 = vmatprep.subr.mxu0 0.0
        %2874 = vmatpush2.msra.mxu0 0.0
        %2875 = vmatprep.mubr.f32.mxu0 0.0
        %2876 = vmatmul.mubr.f32.gmra.mxu0 %v2806
        %v2877 = vpop.f32.mrf.mxu0
        %v2878 = vadd.f32 0.0, %v2877
        %v2879 = vpop.f32.mrf.mxu0
        %2880 = vdwg.mxu0
        %2881 = vrot.lane.b32.xlu0 %v2690, 96
        %v2882 = vpop.permute.xlu0 %2881
        %2883 = vrot.lane.b32.xlu0 %v2697, 96
        %v2884 = vpop.permute.xlu0 %2883
        %v2887 = vsel %vm2777, %v2799, 0
        %v2889 = vsel %vm2808, %v2884, 0
        %2891 = vmatprep.subr.mxu0 0.0
        %2892 = vmatpush1.msra.mxu0 0.0
        %2893 = vmatprep.subr.mxu0 0.0
        %2894 = vmatpush1.msra.mxu0 0.0
        %2895 = vmatprep.subr.mxu0 0.0
        %2896 = vmatpush1.msra.mxu0 0.0
        %2897 = vmatprep.subr.mxu0 0.0
        %2898 = vmatpush1.msra.mxu0 0.0
        %2899 = vmatprep.subr.mxu0 0.0
        %2900 = vmatpush1.msra.mxu0 0.0
        %2901 = vmatprep.subr.mxu0 0.0
        %2902 = vmatpush1.msra.mxu0 0.0
        %2903 = vmatprep.subr.mxu0 0.0
        %2904 = vmatpush1.msra.mxu0 0.0
        %2905 = vmatprep.subr.mxu0 0.0
        %2906 = vmatpush1.msra.mxu0 0.0
        %2907 = vmatprep.subr.mxu0 0.0
        %2908 = vmatpush1.msra.mxu0 0.0
        %2909 = vmatprep.subr.mxu0 0.0
        %2910 = vmatpush1.msra.mxu0 0.0
        %2911 = vmatprep.subr.mxu0 0.0
        %2912 = vmatpush1.msra.mxu0 0.0
        %2913 = vmatprep.subr.mxu0 0.0
        %2914 = vmatpush1.msra.mxu0 0.0
        %2915 = vmatprep.subr.mxu0 0.0
        %2916 = vmatpush1.msra.mxu0 0.0
        %2917 = vmatprep.subr.mxu0 0.0
        %2918 = vmatpush1.msra.mxu0 0.0
        %2919 = vmatprep.subr.mxu0 0.0
        %2920 = vmatpush1.msra.mxu0 %v2889
        %2921 = vmatprep.subr.mxu0 0.0
        %2922 = vmatpush1.msra.mxu0 %v2882
        %2923 = vmatprep.subr.mxu0 0.0
        %2924 = vmatpush2.msra.mxu0 0.0
        %2925 = vmatprep.subr.mxu0 0.0
        %2926 = vmatpush2.msra.mxu0 0.0
        %2927 = vmatprep.subr.mxu0 0.0
        %2928 = vmatpush2.msra.mxu0 0.0
        %2929 = vmatprep.subr.mxu0 0.0
        %2930 = vmatpush2.msra.mxu0 0.0
        %2931 = vmatprep.subr.mxu0 0.0
        %2932 = vmatpush2.msra.mxu0 0.0
        %2933 = vmatprep.subr.mxu0 0.0
        %2934 = vmatpush2.msra.mxu0 0.0
        %2935 = vmatprep.subr.mxu0 0.0
        %2936 = vmatpush2.msra.mxu0 0.0
        %2937 = vmatprep.subr.mxu0 0.0
        %2938 = vmatpush2.msra.mxu0 0.0
        %2939 = vmatprep.subr.mxu0 0.0
        %2940 = vmatpush2.msra.mxu0 0.0
        %2941 = vmatprep.subr.mxu0 0.0
        %2942 = vmatpush2.msra.mxu0 0.0
        %2943 = vmatprep.subr.mxu0 0.0
        %2944 = vmatpush2.msra.mxu0 0.0
        %2945 = vmatprep.subr.mxu0 0.0
        %2946 = vmatpush2.msra.mxu0 0.0
        %2947 = vmatprep.subr.mxu0 0.0
        %2948 = vmatpush2.msra.mxu0 0.0
        %2949 = vmatprep.subr.mxu0 0.0
        %2950 = vmatpush2.msra.mxu0 0.0
        %2951 = vmatprep.subr.mxu0 0.0
        %2952 = vmatpush2.msra.mxu0 0.0
        %2953 = vmatprep.subr.mxu0 0.0
        %2954 = vmatpush2.msra.mxu0 0.0
        %2955 = vmatprep.mubr.f32.mxu0 0.0
        %2956 = vmatmul.mubr.f32.gmra.mxu0 %v2887
        %v2957 = vpop.f32.mrf.mxu0
        %v2958 = vadd.f32 0.0, %v2957
        %v2959 = vpop.f32.mrf.mxu0
        %2960 = vdwg.mxu0
        %2961 = vrot.lane.b32.xlu0 %v2372, 120
        %v2962 = vpop.permute.xlu0 %2961
        %2963 = vrot.lane.b32.xlu0 %v2589, 120
        %v2964 = vpop.permute.xlu0 %2963
        %2965 = vrot.lane.b32.xlu0 %v2596, 120
        %v2966 = vpop.permute.xlu0 %2965
        %v2967 = vsel %vm495, %v2962, 0
        %v2969 = vsel %vm495, %v2964, 0
        %v2971 = vsel %vm495, %v2966, 0
        %2973 = vmatprep.subr.mxu0 0.0
        %2974 = vmatpush1.xpose.msra.mxu0 0.0
        %2975 = vmatprep.subr.mxu0 0.0
        %2976 = vmatpush1.xpose.msra.mxu0 0.0
        %2977 = vmatprep.subr.mxu0 0.0
        %2978 = vmatpush1.xpose.msra.mxu0 0.0
        %2979 = vmatprep.subr.mxu0 0.0
        %2980 = vmatpush1.xpose.msra.mxu0 0.0
        %2981 = vmatprep.subr.mxu0 0.0
        %2982 = vmatpush1.xpose.msra.mxu0 0.0
        %2983 = vmatprep.subr.mxu0 0.0
        %2984 = vmatpush1.xpose.msra.mxu0 0.0
        %2985 = vmatprep.subr.mxu0 0.0
        %2986 = vmatpush1.xpose.msra.mxu0 0.0
        %2987 = vmatprep.subr.mxu0 0.0
        %2988 = vmatpush1.xpose.msra.mxu0 0.0
        %2989 = vmatprep.subr.mxu0 0.0
        %2990 = vmatpush1.xpose.msra.mxu0 0.0
        %2991 = vmatprep.subr.mxu0 0.0
        %2992 = vmatpush1.xpose.msra.mxu0 0.0
        %2993 = vmatprep.subr.mxu0 0.0
        %2994 = vmatpush1.xpose.msra.mxu0 0.0
        %2995 = vmatprep.subr.mxu0 0.0
        %2996 = vmatpush1.xpose.msra.mxu0 0.0
        %2997 = vmatprep.subr.mxu0 0.0
        %2998 = vmatpush1.xpose.msra.mxu0 0.0
        %2999 = vmatprep.subr.mxu0 0.0
        %3000 = vmatpush1.xpose.msra.mxu0 0.0
        %3001 = vmatprep.subr.mxu0 0.0
        %3002 = vmatpush1.xpose.msra.mxu0 %v2971
        %3003 = vmatprep.subr.mxu0 0.0
        %3004 = vmatpush1.xpose.msra.mxu0 %v2969
        %3005 = vmatprep.subr.mxu0 0.0
        %3006 = vmatpush2.xpose.msra.mxu0 0.0
        %3007 = vmatprep.subr.mxu0 0.0
        %3008 = vmatpush2.xpose.msra.mxu0 0.0
        %3009 = vmatprep.subr.mxu0 0.0
        %3010 = vmatpush2.xpose.msra.mxu0 0.0
        %3011 = vmatprep.subr.mxu0 0.0
        %3012 = vmatpush2.xpose.msra.mxu0 0.0
        %3013 = vmatprep.subr.mxu0 0.0
        %3014 = vmatpush2.xpose.msra.mxu0 0.0
        %3015 = vmatprep.subr.mxu0 0.0
        %3016 = vmatpush2.xpose.msra.mxu0 0.0
        %3017 = vmatprep.subr.mxu0 0.0
        %3018 = vmatpush2.xpose.msra.mxu0 0.0
        %3019 = vmatprep.subr.mxu0 0.0
        %3020 = vmatpush2.xpose.msra.mxu0 0.0
        %3021 = vmatprep.subr.mxu0 0.0
        %3022 = vmatpush2.xpose.msra.mxu0 0.0
        %3023 = vmatprep.subr.mxu0 0.0
        %3024 = vmatpush2.xpose.msra.mxu0 0.0
        %3025 = vmatprep.subr.mxu0 0.0
        %3026 = vmatpush2.xpose.msra.mxu0 0.0
        %3027 = vmatprep.subr.mxu0 0.0
        %3028 = vmatpush2.xpose.msra.mxu0 0.0
        %3029 = vmatprep.subr.mxu0 0.0
        %3030 = vmatpush2.xpose.msra.mxu0 0.0
        %3031 = vmatprep.subr.mxu0 0.0
        %3032 = vmatpush2.xpose.msra.mxu0 0.0
        %3033 = vmatprep.subr.mxu0 0.0
        %3034 = vmatpush2.xpose.msra.mxu0 0.0
        %3035 = vmatprep.subr.mxu0 0.0
        %3036 = vmatpush2.xpose.msra.mxu0 0.0
        %3037 = vmatprep.mubr.f32.mxu0 0.0
        %3038 = vmatmul.mubr.f32.gmra.mxu0 %v2967
        %v3039 = vpop.f32.mrf.mxu0
        %v3040 = vadd.f32 0.0, %v3039
        %v3041 = vpop.f32.mrf.mxu0
        %3042 = vdwg.mxu0
        %3043 = vrot.lane.b32.xlu0 %v2377, 120
        %v3044 = vpop.permute.xlu0 %3043
        %3045 = vrot.lane.b32.xlu0 %v2690, 120
        %v3046 = vpop.permute.xlu0 %3045
        %3047 = vrot.lane.b32.xlu0 %v2697, 120
        %v3048 = vpop.permute.xlu0 %3047
        %v3049 = vsel %vm495, %v3044, 0
        %v3051 = vsel %vm495, %v3046, 0
        %v3053 = vsel %vm495, %v3048, 0
        %3055 = vmatprep.subr.mxu0 0.0
        %3056 = vmatpush1.xpose.msra.mxu0 0.0
        %3057 = vmatprep.subr.mxu0 0.0
        %3058 = vmatpush1.xpose.msra.mxu0 0.0
        %3059 = vmatprep.subr.mxu0 0.0
        %3060 = vmatpush1.xpose.msra.mxu0 0.0
        %3061 = vmatprep.subr.mxu0 0.0
        %3062 = vmatpush1.xpose.msra.mxu0 0.0
        %3063 = vmatprep.subr.mxu0 0.0
        %3064 = vmatpush1.xpose.msra.mxu0 0.0
        %3065 = vmatprep.subr.mxu0 0.0
        %3066 = vmatpush1.xpose.msra.mxu0 0.0
        %3067 = vmatprep.subr.mxu0 0.0
        %3068 = vmatpush1.xpose.msra.mxu0 0.0
        %3069 = vmatprep.subr.mxu0 0.0
        %3070 = vmatpush1.xpose.msra.mxu0 0.0
        %3071 = vmatprep.subr.mxu0 0.0
        %3072 = vmatpush1.xpose.msra.mxu0 0.0
        %3073 = vmatprep.subr.mxu0 0.0
        %3074 = vmatpush1.xpose.msra.mxu0 0.0
        %3075 = vmatprep.subr.mxu0 0.0
        %3076 = vmatpush1.xpose.msra.mxu0 0.0
        %3077 = vmatprep.subr.mxu0 0.0
        %3078 = vmatpush1.xpose.msra.mxu0 0.0
        %3079 = vmatprep.subr.mxu0 0.0
        %3080 = vmatpush1.xpose.msra.mxu0 0.0
        %3081 = vmatprep.subr.mxu0 0.0
        %3082 = vmatpush1.xpose.msra.mxu0 0.0
        %3083 = vmatprep.subr.mxu0 0.0
        %3084 = vmatpush1.xpose.msra.mxu0 %v3053
        %3085 = vmatprep.subr.mxu0 0.0
        %3086 = vmatpush1.xpose.msra.mxu0 %v3051
        %3087 = vmatprep.subr.mxu0 0.0
        %3088 = vmatpush2.xpose.msra.mxu0 0.0
        %3089 = vmatprep.subr.mxu0 0.0
        %3090 = vmatpush2.xpose.msra.mxu0 0.0
        %3091 = vmatprep.subr.mxu0 0.0
        %3092 = vmatpush2.xpose.msra.mxu0 0.0
        %3093 = vmatprep.subr.mxu0 0.0
        %3094 = vmatpush2.xpose.msra.mxu0 0.0
        %3095 = vmatprep.subr.mxu0 0.0
        %3096 = vmatpush2.xpose.msra.mxu0 0.0
        %3097 = vmatprep.subr.mxu0 0.0
        %3098 = vmatpush2.xpose.msra.mxu0 0.0
        %3099 = vmatprep.subr.mxu0 0.0
        %3100 = vmatpush2.xpose.msra.mxu0 0.0
        %3101 = vmatprep.subr.mxu0 0.0
        %3102 = vmatpush2.xpose.msra.mxu0 0.0
        %3103 = vmatprep.subr.mxu0 0.0
        %3104 = vmatpush2.xpose.msra.mxu0 0.0
        %3105 = vmatprep.subr.mxu0 0.0
        %3106 = vmatpush2.xpose.msra.mxu0 0.0
        %3107 = vmatprep.subr.mxu0 0.0
        %3108 = vmatpush2.xpose.msra.mxu0 0.0
        %3109 = vmatprep.subr.mxu0 0.0
        %3110 = vmatpush2.xpose.msra.mxu0 0.0
        %3111 = vmatprep.subr.mxu0 0.0
        %3112 = vmatpush2.xpose.msra.mxu0 0.0
        %3113 = vmatprep.subr.mxu0 0.0
        %3114 = vmatpush2.xpose.msra.mxu0 0.0
        %3115 = vmatprep.subr.mxu0 0.0
        %3116 = vmatpush2.xpose.msra.mxu0 0.0
        %3117 = vmatprep.subr.mxu0 0.0
        %3118 = vmatpush2.xpose.msra.mxu0 0.0
        %3119 = vmatprep.mubr.f32.mxu0 0.0
        %3120 = vmatmul.mubr.f32.gmra.mxu0 %v3049
        %v3121 = vpop.f32.mrf.mxu0
        %v3122 = vadd.f32 0.0, %v3121
        %v3123 = vpop.f32.mrf.mxu0
        %3124 = vdwg.mxu0
        %v3125 = vmul.f32 %v3040, 0.35355338
        %v3126 = vmul.f32 %v3122, 0.35355338
        %v3127 = vsel %vm2777, %v3125, -inf
        %3128 = vmax.xlane.f32.xlu0 %v3127
        %v3129 = vpop.xlane.xlu0 %3128
        %v3130 = vsel %vm2777, %v3126, -inf
        %3131 = vmax.xlane.f32.xlu0 %v3130
        %v3132 = vpop.xlane.xlu0 %3131
        %v3133 = vsub.f32 %v3125, %v3129
        %v3134 = vsub.f32 %v3126, %v3132
        %v3135 = vmul.f32 %v3133, 1.442695
        %v3136 = vpow.pop %v3135
        %v3137 = vmul.f32 %v3134, 1.442695
        %v3138 = vpow.pop %v3137
        %v3139 = vsel %vm2777, %v3136, 0.0
        %3140 = vadd.xlane.f32.xlu0 %v3139
        %v3141 = vpop.xlane.xlu0 %3140
        %v3142 = vsel %vm2777, %v3138, 0.0
        %3143 = vadd.xlane.f32.xlu0 %v3142
        %v3144 = vpop.xlane.xlu0 %3143
        %v3145 = vrcp.pop %v3141
        %v3146 = vmul.f32 %v3136, %v3145
        %v3147 = vrcp.pop %v3144
        %v3148 = vmul.f32 %v3138, %v3147
        %3149 = vrot.lane.b32.xlu0 %v2589, 88
        %v3150 = vpop.permute.xlu0 %3149
        %3151 = vrot.lane.b32.xlu0 %v2596, 88
        %v3152 = vpop.permute.xlu0 %3151
        %v3155 = vsel %vm2777, %v3146, 0
        %v3157 = vsel %vm2808, %v3152, 0
        %3159 = vmatprep.subr.mxu0 0.0
        %3160 = vmatpush1.msra.mxu0 0.0
        %3161 = vmatprep.subr.mxu0 0.0
        %3162 = vmatpush1.msra.mxu0 0.0
        %3163 = vmatprep.subr.mxu0 0.0
        %3164 = vmatpush1.msra.mxu0 0.0
        %3165 = vmatprep.subr.mxu0 0.0
        %3166 = vmatpush1.msra.mxu0 0.0
        %3167 = vmatprep.subr.mxu0 0.0
        %3168 = vmatpush1.msra.mxu0 0.0
        %3169 = vmatprep.subr.mxu0 0.0
        %3170 = vmatpush1.msra.mxu0 0.0
        %3171 = vmatprep.subr.mxu0 0.0
        %3172 = vmatpush1.msra.mxu0 0.0
        %3173 = vmatprep.subr.mxu0 0.0
        %3174 = vmatpush1.msra.mxu0 0.0
        %3175 = vmatprep.subr.mxu0 0.0
        %3176 = vmatpush1.msra.mxu0 0.0
        %3177 = vmatprep.subr.mxu0 0.0
        %3178 = vmatpush1.msra.mxu0 0.0
        %3179 = vmatprep.subr.mxu0 0.0
        %3180 = vmatpush1.msra.mxu0 0.0
        %3181 = vmatprep.subr.mxu0 0.0
        %3182 = vmatpush1.msra.mxu0 0.0
        %3183 = vmatprep.subr.mxu0 0.0
        %3184 = vmatpush1.msra.mxu0 0.0
        %3185 = vmatprep.subr.mxu0 0.0
        %3186 = vmatpush1.msra.mxu0 0.0
        %3187 = vmatprep.subr.mxu0 0.0
        %3188 = vmatpush1.msra.mxu0 %v3157
        %3189 = vmatprep.subr.mxu0 0.0
        %3190 = vmatpush1.msra.mxu0 %v3150
        %3191 = vmatprep.subr.mxu0 0.0
        %3192 = vmatpush2.msra.mxu0 0.0
        %3193 = vmatprep.subr.mxu0 0.0
        %3194 = vmatpush2.msra.mxu0 0.0
        %3195 = vmatprep.subr.mxu0 0.0
        %3196 = vmatpush2.msra.mxu0 0.0
        %3197 = vmatprep.subr.mxu0 0.0
        %3198 = vmatpush2.msra.mxu0 0.0
        %3199 = vmatprep.subr.mxu0 0.0
        %3200 = vmatpush2.msra.mxu0 0.0
        %3201 = vmatprep.subr.mxu0 0.0
        %3202 = vmatpush2.msra.mxu0 0.0
        %3203 = vmatprep.subr.mxu0 0.0
        %3204 = vmatpush2.msra.mxu0 0.0
        %3205 = vmatprep.subr.mxu0 0.0
        %3206 = vmatpush2.msra.mxu0 0.0
        %3207 = vmatprep.subr.mxu0 0.0
        %3208 = vmatpush2.msra.mxu0 0.0
        %3209 = vmatprep.subr.mxu0 0.0
        %3210 = vmatpush2.msra.mxu0 0.0
        %3211 = vmatprep.subr.mxu0 0.0
        %3212 = vmatpush2.msra.mxu0 0.0
        %3213 = vmatprep.subr.mxu0 0.0
        %3214 = vmatpush2.msra.mxu0 0.0
        %3215 = vmatprep.subr.mxu0 0.0
        %3216 = vmatpush2.msra.mxu0 0.0
        %3217 = vmatprep.subr.mxu0 0.0
        %3218 = vmatpush2.msra.mxu0 0.0
        %3219 = vmatprep.subr.mxu0 0.0
        %3220 = vmatpush2.msra.mxu0 0.0
        %3221 = vmatprep.subr.mxu0 0.0
        %3222 = vmatpush2.msra.mxu0 0.0
        %3223 = vmatprep.mubr.f32.mxu0 0.0
        %3224 = vmatmul.mubr.f32.gmra.mxu0 %v3155
        %v3225 = vpop.f32.mrf.mxu0
        %v3226 = vadd.f32 0.0, %v3225
        %v3227 = vpop.f32.mrf.mxu0
        %3228 = vdwg.mxu0
        %3229 = vrot.lane.b32.xlu0 %v2690, 88
        %v3230 = vpop.permute.xlu0 %3229
        %3231 = vrot.lane.b32.xlu0 %v2697, 88
        %v3232 = vpop.permute.xlu0 %3231
        %v3235 = vsel %vm2777, %v3148, 0
        %v3237 = vsel %vm2808, %v3232, 0
        %3239 = vmatprep.subr.mxu0 0.0
        %3240 = vmatpush1.msra.mxu0 0.0
        %3241 = vmatprep.subr.mxu0 0.0
        %3242 = vmatpush1.msra.mxu0 0.0
        %3243 = vmatprep.subr.mxu0 0.0
        %3244 = vmatpush1.msra.mxu0 0.0
        %3245 = vmatprep.subr.mxu0 0.0
        %3246 = vmatpush1.msra.mxu0 0.0
        %3247 = vmatprep.subr.mxu0 0.0
        %3248 = vmatpush1.msra.mxu0 0.0
        %3249 = vmatprep.subr.mxu0 0.0
        %3250 = vmatpush1.msra.mxu0 0.0
        %3251 = vmatprep.subr.mxu0 0.0
        %3252 = vmatpush1.msra.mxu0 0.0
        %3253 = vmatprep.subr.mxu0 0.0
        %3254 = vmatpush1.msra.mxu0 0.0
        %3255 = vmatprep.subr.mxu0 0.0
        %3256 = vmatpush1.msra.mxu0 0.0
        %3257 = vmatprep.subr.mxu0 0.0
        %3258 = vmatpush1.msra.mxu0 0.0
        %3259 = vmatprep.subr.mxu0 0.0
        %3260 = vmatpush1.msra.mxu0 0.0
        %3261 = vmatprep.subr.mxu0 0.0
        %3262 = vmatpush1.msra.mxu0 0.0
        %3263 = vmatprep.subr.mxu0 0.0
        %3264 = vmatpush1.msra.mxu0 0.0
        %3265 = vmatprep.subr.mxu0 0.0
        %3266 = vmatpush1.msra.mxu0 0.0
        %3267 = vmatprep.subr.mxu0 0.0
        %3268 = vmatpush1.msra.mxu0 %v3237
        %3269 = vmatprep.subr.mxu0 0.0
        %3270 = vmatpush1.msra.mxu0 %v3230
        %3271 = vmatprep.subr.mxu0 0.0
        %3272 = vmatpush2.msra.mxu0 0.0
        %3273 = vmatprep.subr.mxu0 0.0
        %3274 = vmatpush2.msra.mxu0 0.0
        %3275 = vmatprep.subr.mxu0 0.0
        %3276 = vmatpush2.msra.mxu0 0.0
        %3277 = vmatprep.subr.mxu0 0.0
        %3278 = vmatpush2.msra.mxu0 0.0
        %3279 = vmatprep.subr.mxu0 0.0
        %3280 = vmatpush2.msra.mxu0 0.0
        %3281 = vmatprep.subr.mxu0 0.0
        %3282 = vmatpush2.msra.mxu0 0.0
        %3283 = vmatprep.subr.mxu0 0.0
        %3284 = vmatpush2.msra.mxu0 0.0
        %3285 = vmatprep.subr.mxu0 0.0
        %3286 = vmatpush2.msra.mxu0 0.0
        %3287 = vmatprep.subr.mxu0 0.0
        %3288 = vmatpush2.msra.mxu0 0.0
        %3289 = vmatprep.subr.mxu0 0.0
        %3290 = vmatpush2.msra.mxu0 0.0
        %3291 = vmatprep.subr.mxu0 0.0
        %3292 = vmatpush2.msra.mxu0 0.0
        %3293 = vmatprep.subr.mxu0 0.0
        %3294 = vmatpush2.msra.mxu0 0.0
        %3295 = vmatprep.subr.mxu0 0.0
        %3296 = vmatpush2.msra.mxu0 0.0
        %3297 = vmatprep.subr.mxu0 0.0
        %3298 = vmatpush2.msra.mxu0 0.0
        %3299 = vmatprep.subr.mxu0 0.0
        %3300 = vmatpush2.msra.mxu0 0.0
        %3301 = vmatprep.subr.mxu0 0.0
        %3302 = vmatpush2.msra.mxu0 0.0
        %3303 = vmatprep.mubr.f32.mxu0 0.0
        %3304 = vmatmul.mubr.f32.gmra.mxu0 %v3235
        %v3305 = vpop.f32.mrf.mxu0
        %v3306 = vadd.f32 0.0, %v3305
        %v3307 = vpop.f32.mrf.mxu0
        %3308 = vdwg.mxu0
        %3309 = vrot.lane.b32.xlu0 %v2240, 32
        %v3310 = vpop.permute.xlu0 %3309
        %v3313 = vsel %vm495, %v3226, 0
        %v3316 = vsel %vm495, %v3306, 0
        %3318 = vmatprep.subr.mxu0 0.0
        %3319 = vmatpush1.msra.mxu0 0.0
        %3320 = vmatprep.subr.mxu0 0.0
        %3321 = vmatpush1.msra.mxu0 0.0
        %3322 = vmatprep.subr.mxu0 0.0
        %3323 = vmatpush1.msra.mxu0 0.0
        %3324 = vmatprep.subr.mxu0 0.0
        %3325 = vmatpush1.msra.mxu0 0.0
        %3326 = vmatprep.subr.mxu0 0.0
        %3327 = vmatpush1.msra.mxu0 0.0
        %3328 = vmatprep.subr.mxu0 0.0
        %3329 = vmatpush1.msra.mxu0 0.0
        %3330 = vmatprep.subr.mxu0 0.0
        %3331 = vmatpush1.msra.mxu0 0.0
        %3332 = vmatprep.subr.mxu0 0.0
        %3333 = vmatpush1.msra.mxu0 0.0
        %3334 = vmatprep.subr.mxu0 0.0
        %3335 = vmatpush1.msra.mxu0 0.0
        %3336 = vmatprep.subr.mxu0 0.0
        %3337 = vmatpush1.msra.mxu0 0.0
        %3338 = vmatprep.subr.mxu0 0.0
        %3339 = vmatpush1.msra.mxu0 0.0
        %3340 = vmatprep.subr.mxu0 0.0
        %3341 = vmatpush1.msra.mxu0 0.0
        %3342 = vmatprep.subr.mxu0 0.0
        %3343 = vmatpush1.msra.mxu0 0.0
        %3344 = vmatprep.subr.mxu0 0.0
        %3345 = vmatpush1.msra.mxu0 0.0
        %3346 = vmatprep.subr.mxu0 0.0
        %3347 = vmatpush1.msra.mxu0 0.0
        %3348 = vmatprep.subr.mxu0 0.0
        %3349 = vmatpush1.msra.mxu0 %v3310
        %3350 = vmatprep.subr.mxu0 0.0
        %3351 = vmatpush2.msra.mxu0 0.0
        %3352 = vmatprep.subr.mxu0 0.0
        %3353 = vmatpush2.msra.mxu0 0.0
        %3354 = vmatprep.subr.mxu0 0.0
        %3355 = vmatpush2.msra.mxu0 0.0
        %3356 = vmatprep.subr.mxu0 0.0
        %3357 = vmatpush2.msra.mxu0 0.0
        %3358 = vmatprep.subr.mxu0 0.0
        %3359 = vmatpush2.msra.mxu0 0.0
        %3360 = vmatprep.subr.mxu0 0.0
        %3361 = vmatpush2.msra.mxu0 0.0
        %3362 = vmatprep.subr.mxu0 0.0
        %3363 = vmatpush2.msra.mxu0 0.0
        %3364 = vmatprep.subr.mxu0 0.0
        %3365 = vmatpush2.msra.mxu0 0.0
        %3366 = vmatprep.subr.mxu0 0.0
        %3367 = vmatpush2.msra.mxu0 0.0
        %3368 = vmatprep.subr.mxu0 0.0
        %3369 = vmatpush2.msra.mxu0 0.0
        %3370 = vmatprep.subr.mxu0 0.0
        %3371 = vmatpush2.msra.mxu0 0.0
        %3372 = vmatprep.subr.mxu0 0.0
        %3373 = vmatpush2.msra.mxu0 0.0
        %3374 = vmatprep.subr.mxu0 0.0
        %3375 = vmatpush2.msra.mxu0 0.0
        %3376 = vmatprep.subr.mxu0 0.0
        %3377 = vmatpush2.msra.mxu0 0.0
        %3378 = vmatprep.subr.mxu0 0.0
        %3379 = vmatpush2.msra.mxu0 0.0
        %3380 = vmatprep.subr.mxu0 0.0
        %3381 = vmatpush2.msra.mxu0 0.0
        %3382 = vmatprep.mubr.f32.mxu0 0.0
        %3383 = vmatmul.mubr.f32.gmra.mxu0 %v3313
        %v3384 = vpop.f32.mrf.mxu0
        %v3385 = vadd.f32 0.0, %v3384
        %v3386 = vpop.f32.mrf.mxu0
        %3387 = vmatprep.mubr.f32.mxu0 0.0
        %3388 = vmatmul.mubr.f32.gmra.mxu0 %v3316
        %v3389 = vpop.f32.mrf.mxu0
        %v3390 = vadd.f32 0.0, %v3389
        %v3391 = vpop.f32.mrf.mxu0
        %3392 = vdwg.mxu0
        %3393 = vrot.lane.b32.xlu0 %v2239, 32
        %v3394 = vpop.permute.xlu0 %3393
        %v3397 = vsel %vm495, %v2878, 0
        %v3400 = vsel %vm495, %v2958, 0
        %3402 = vmatprep.subr.mxu0 0.0
        %3403 = vmatpush1.msra.mxu0 0.0
        %3404 = vmatprep.subr.mxu0 0.0
        %3405 = vmatpush1.msra.mxu0 0.0
        %3406 = vmatprep.subr.mxu0 0.0
        %3407 = vmatpush1.msra.mxu0 0.0
        %3408 = vmatprep.subr.mxu0 0.0
        %3409 = vmatpush1.msra.mxu0 0.0
        %3410 = vmatprep.subr.mxu0 0.0
        %3411 = vmatpush1.msra.mxu0 0.0
        %3412 = vmatprep.subr.mxu0 0.0
        %3413 = vmatpush1.msra.mxu0 0.0
        %3414 = vmatprep.subr.mxu0 0.0
        %3415 = vmatpush1.msra.mxu0 0.0
        %3416 = vmatprep.subr.mxu0 0.0
        %3417 = vmatpush1.msra.mxu0 0.0
        %3418 = vmatprep.subr.mxu0 0.0
        %3419 = vmatpush1.msra.mxu0 0.0
        %3420 = vmatprep.subr.mxu0 0.0
        %3421 = vmatpush1.msra.mxu0 0.0
        %3422 = vmatprep.subr.mxu0 0.0
        %3423 = vmatpush1.msra.mxu0 0.0
        %3424 = vmatprep.subr.mxu0 0.0
        %3425 = vmatpush1.msra.mxu0 0.0
        %3426 = vmatprep.subr.mxu0 0.0
        %3427 = vmatpush1.msra.mxu0 0.0
        %3428 = vmatprep.subr.mxu0 0.0
        %3429 = vmatpush1.msra.mxu0 0.0
        %3430 = vmatprep.subr.mxu0 0.0
        %3431 = vmatpush1.msra.mxu0 0.0
        %3432 = vmatprep.subr.mxu0 0.0
        %3433 = vmatpush1.msra.mxu0 %v3394
        %3434 = vmatprep.subr.mxu0 0.0
        %3435 = vmatpush2.msra.mxu0 0.0
        %3436 = vmatprep.subr.mxu0 0.0
        %3437 = vmatpush2.msra.mxu0 0.0
        %3438 = vmatprep.subr.mxu0 0.0
        %3439 = vmatpush2.msra.mxu0 0.0
        %3440 = vmatprep.subr.mxu0 0.0
        %3441 = vmatpush2.msra.mxu0 0.0
        %3442 = vmatprep.subr.mxu0 0.0
        %3443 = vmatpush2.msra.mxu0 0.0
        %3444 = vmatprep.subr.mxu0 0.0
        %3445 = vmatpush2.msra.mxu0 0.0
        %3446 = vmatprep.subr.mxu0 0.0
        %3447 = vmatpush2.msra.mxu0 0.0
        %3448 = vmatprep.subr.mxu0 0.0
        %3449 = vmatpush2.msra.mxu0 0.0
        %3450 = vmatprep.subr.mxu0 0.0
        %3451 = vmatpush2.msra.mxu0 0.0
        %3452 = vmatprep.subr.mxu0 0.0
        %3453 = vmatpush2.msra.mxu0 0.0
        %3454 = vmatprep.subr.mxu0 0.0
        %3455 = vmatpush2.msra.mxu0 0.0
        %3456 = vmatprep.subr.mxu0 0.0
        %3457 = vmatpush2.msra.mxu0 0.0
        %3458 = vmatprep.subr.mxu0 0.0
        %3459 = vmatpush2.msra.mxu0 0.0
        %3460 = vmatprep.subr.mxu0 0.0
        %3461 = vmatpush2.msra.mxu0 0.0
        %3462 = vmatprep.subr.mxu0 0.0
        %3463 = vmatpush2.msra.mxu0 0.0
        %3464 = vmatprep.subr.mxu0 0.0
        %3465 = vmatpush2.msra.mxu0 0.0
        %3466 = vmatprep.mubr.f32.mxu0 0.0
        %3467 = vmatmul.mubr.f32.gmra.mxu0 %v3397
        %v3468 = vpop.f32.mrf.mxu0
        %v3469 = vadd.f32 %v3385, %v3468
        %v3470 = vpop.f32.mrf.mxu0
        %3471 = vmatprep.mubr.f32.mxu0 0.0
        %3472 = vmatmul.mubr.f32.gmra.mxu0 %v3400
        %v3473 = vpop.f32.mrf.mxu0
        %v3474 = vadd.f32 %v3390, %v3473
        %v3475 = vpop.f32.mrf.mxu0
        %3476 = vdwg.mxu0
        %3477 = vrot.lane.b32.xlu0 %v2372, 112
        %v3478 = vpop.permute.xlu0 %3477
        %3479 = vrot.lane.b32.xlu0 %v2589, 112
        %v3480 = vpop.permute.xlu0 %3479
        %3481 = vrot.lane.b32.xlu0 %v2596, 112
        %v3482 = vpop.permute.xlu0 %3481
        %v3483 = vsel %vm495, %v3478, 0
        %v3485 = vsel %vm495, %v3480, 0
        %v3487 = vsel %vm495, %v3482, 0
        %3489 = vmatprep.subr.mxu0 0.0
        %3490 = vmatpush1.xpose.msra.mxu0 0.0
        %3491 = vmatprep.subr.mxu0 0.0
        %3492 = vmatpush1.xpose.msra.mxu0 0.0
        %3493 = vmatprep.subr.mxu0 0.0
        %3494 = vmatpush1.xpose.msra.mxu0 0.0
        %3495 = vmatprep.subr.mxu0 0.0
        %3496 = vmatpush1.xpose.msra.mxu0 0.0
        %3497 = vmatprep.subr.mxu0 0.0
        %3498 = vmatpush1.xpose.msra.mxu0 0.0
        %3499 = vmatprep.subr.mxu0 0.0
        %3500 = vmatpush1.xpose.msra.mxu0 0.0
        %3501 = vmatprep.subr.mxu0 0.0
        %3502 = vmatpush1.xpose.msra.mxu0 0.0
        %3503 = vmatprep.subr.mxu0 0.0
        %3504 = vmatpush1.xpose.msra.mxu0 0.0
        %3505 = vmatprep.subr.mxu0 0.0
        %3506 = vmatpush1.xpose.msra.mxu0 0.0
        %3507 = vmatprep.subr.mxu0 0.0
        %3508 = vmatpush1.xpose.msra.mxu0 0.0
        %3509 = vmatprep.subr.mxu0 0.0
        %3510 = vmatpush1.xpose.msra.mxu0 0.0
        %3511 = vmatprep.subr.mxu0 0.0
        %3512 = vmatpush1.xpose.msra.mxu0 0.0
        %3513 = vmatprep.subr.mxu0 0.0
        %3514 = vmatpush1.xpose.msra.mxu0 0.0
        %3515 = vmatprep.subr.mxu0 0.0
        %3516 = vmatpush1.xpose.msra.mxu0 0.0
        %3517 = vmatprep.subr.mxu0 0.0
        %3518 = vmatpush1.xpose.msra.mxu0 %v3487
        %3519 = vmatprep.subr.mxu0 0.0
        %3520 = vmatpush1.xpose.msra.mxu0 %v3485
        %3521 = vmatprep.subr.mxu0 0.0
        %3522 = vmatpush2.xpose.msra.mxu0 0.0
        %3523 = vmatprep.subr.mxu0 0.0
        %3524 = vmatpush2.xpose.msra.mxu0 0.0
        %3525 = vmatprep.subr.mxu0 0.0
        %3526 = vmatpush2.xpose.msra.mxu0 0.0
        %3527 = vmatprep.subr.mxu0 0.0
        %3528 = vmatpush2.xpose.msra.mxu0 0.0
        %3529 = vmatprep.subr.mxu0 0.0
        %3530 = vmatpush2.xpose.msra.mxu0 0.0
        %3531 = vmatprep.subr.mxu0 0.0
        %3532 = vmatpush2.xpose.msra.mxu0 0.0
        %3533 = vmatprep.subr.mxu0 0.0
        %3534 = vmatpush2.xpose.msra.mxu0 0.0
        %3535 = vmatprep.subr.mxu0 0.0
        %3536 = vmatpush2.xpose.msra.mxu0 0.0
        %3537 = vmatprep.subr.mxu0 0.0
        %3538 = vmatpush2.xpose.msra.mxu0 0.0
        %3539 = vmatprep.subr.mxu0 0.0
        %3540 = vmatpush2.xpose.msra.mxu0 0.0
        %3541 = vmatprep.subr.mxu0 0.0
        %3542 = vmatpush2.xpose.msra.mxu0 0.0
        %3543 = vmatprep.subr.mxu0 0.0
        %3544 = vmatpush2.xpose.msra.mxu0 0.0
        %3545 = vmatprep.subr.mxu0 0.0
        %3546 = vmatpush2.xpose.msra.mxu0 0.0
        %3547 = vmatprep.subr.mxu0 0.0
        %3548 = vmatpush2.xpose.msra.mxu0 0.0
        %3549 = vmatprep.subr.mxu0 0.0
        %3550 = vmatpush2.xpose.msra.mxu0 0.0
        %3551 = vmatprep.subr.mxu0 0.0
        %3552 = vmatpush2.xpose.msra.mxu0 0.0
        %3553 = vmatprep.mubr.f32.mxu0 0.0
        %3554 = vmatmul.mubr.f32.gmra.mxu0 %v3483
        %v3555 = vpop.f32.mrf.mxu0
        %v3556 = vadd.f32 0.0, %v3555
        %v3557 = vpop.f32.mrf.mxu0
        %3558 = vdwg.mxu0
        %3559 = vrot.lane.b32.xlu0 %v2377, 112
        %v3560 = vpop.permute.xlu0 %3559
        %3561 = vrot.lane.b32.xlu0 %v2690, 112
        %v3562 = vpop.permute.xlu0 %3561
        %3563 = vrot.lane.b32.xlu0 %v2697, 112
        %v3564 = vpop.permute.xlu0 %3563
        %v3565 = vsel %vm495, %v3560, 0
        %v3567 = vsel %vm495, %v3562, 0
        %v3569 = vsel %vm495, %v3564, 0
        %3571 = vmatprep.subr.mxu0 0.0
        %3572 = vmatpush1.xpose.msra.mxu0 0.0
        %3573 = vmatprep.subr.mxu0 0.0
        %3574 = vmatpush1.xpose.msra.mxu0 0.0
        %3575 = vmatprep.subr.mxu0 0.0
        %3576 = vmatpush1.xpose.msra.mxu0 0.0
        %3577 = vmatprep.subr.mxu0 0.0
        %3578 = vmatpush1.xpose.msra.mxu0 0.0
        %3579 = vmatprep.subr.mxu0 0.0
        %3580 = vmatpush1.xpose.msra.mxu0 0.0
        %3581 = vmatprep.subr.mxu0 0.0
        %3582 = vmatpush1.xpose.msra.mxu0 0.0
        %3583 = vmatprep.subr.mxu0 0.0
        %3584 = vmatpush1.xpose.msra.mxu0 0.0
        %3585 = vmatprep.subr.mxu0 0.0
        %3586 = vmatpush1.xpose.msra.mxu0 0.0
        %3587 = vmatprep.subr.mxu0 0.0
        %3588 = vmatpush1.xpose.msra.mxu0 0.0
        %3589 = vmatprep.subr.mxu0 0.0
        %3590 = vmatpush1.xpose.msra.mxu0 0.0
        %3591 = vmatprep.subr.mxu0 0.0
        %3592 = vmatpush1.xpose.msra.mxu0 0.0
        %3593 = vmatprep.subr.mxu0 0.0
        %3594 = vmatpush1.xpose.msra.mxu0 0.0
        %3595 = vmatprep.subr.mxu0 0.0
        %3596 = vmatpush1.xpose.msra.mxu0 0.0
        %3597 = vmatprep.subr.mxu0 0.0
        %3598 = vmatpush1.xpose.msra.mxu0 0.0
        %3599 = vmatprep.subr.mxu0 0.0
        %3600 = vmatpush1.xpose.msra.mxu0 %v3569
        %3601 = vmatprep.subr.mxu0 0.0
        %3602 = vmatpush1.xpose.msra.mxu0 %v3567
        %3603 = vmatprep.subr.mxu0 0.0
        %3604 = vmatpush2.xpose.msra.mxu0 0.0
        %3605 = vmatprep.subr.mxu0 0.0
        %3606 = vmatpush2.xpose.msra.mxu0 0.0
        %3607 = vmatprep.subr.mxu0 0.0
        %3608 = vmatpush2.xpose.msra.mxu0 0.0
        %3609 = vmatprep.subr.mxu0 0.0
        %3610 = vmatpush2.xpose.msra.mxu0 0.0
        %3611 = vmatprep.subr.mxu0 0.0
        %3612 = vmatpush2.xpose.msra.mxu0 0.0
        %3613 = vmatprep.subr.mxu0 0.0
        %3614 = vmatpush2.xpose.msra.mxu0 0.0
        %3615 = vmatprep.subr.mxu0 0.0
        %3616 = vmatpush2.xpose.msra.mxu0 0.0
        %3617 = vmatprep.subr.mxu0 0.0
        %3618 = vmatpush2.xpose.msra.mxu0 0.0
        %3619 = vmatprep.subr.mxu0 0.0
        %3620 = vmatpush2.xpose.msra.mxu0 0.0
        %3621 = vmatprep.subr.mxu0 0.0
        %3622 = vmatpush2.xpose.msra.mxu0 0.0
        %3623 = vmatprep.subr.mxu0 0.0
        %3624 = vmatpush2.xpose.msra.mxu0 0.0
        %3625 = vmatprep.subr.mxu0 0.0
        %3626 = vmatpush2.xpose.msra.mxu0 0.0
        %3627 = vmatprep.subr.mxu0 0.0
        %3628 = vmatpush2.xpose.msra.mxu0 0.0
        %3629 = vmatprep.subr.mxu0 0.0
        %3630 = vmatpush2.xpose.msra.mxu0 0.0
        %3631 = vmatprep.subr.mxu0 0.0
        %3632 = vmatpush2.xpose.msra.mxu0 0.0
        %3633 = vmatprep.subr.mxu0 0.0
        %3634 = vmatpush2.xpose.msra.mxu0 0.0
        %3635 = vmatprep.mubr.f32.mxu0 0.0
        %3636 = vmatmul.mubr.f32.gmra.mxu0 %v3565
        %v3637 = vpop.f32.mrf.mxu0
        %v3638 = vadd.f32 0.0, %v3637
        %v3639 = vpop.f32.mrf.mxu0
        %3640 = vdwg.mxu0
        %v3641 = vmul.f32 %v3556, 0.35355338
        %v3642 = vmul.f32 %v3638, 0.35355338
        %v3643 = vsel %vm2777, %v3641, -inf
        %3644 = vmax.xlane.f32.xlu0 %v3643
        %v3645 = vpop.xlane.xlu0 %3644
        %v3646 = vsel %vm2777, %v3642, -inf
        %3647 = vmax.xlane.f32.xlu0 %v3646
        %v3648 = vpop.xlane.xlu0 %3647
        %v3649 = vsub.f32 %v3641, %v3645
        %v3650 = vsub.f32 %v3642, %v3648
        %v3651 = vmul.f32 %v3649, 1.442695
        %v3652 = vpow.pop %v3651
        %v3653 = vmul.f32 %v3650, 1.442695
        %v3654 = vpow.pop %v3653
        %v3655 = vsel %vm2777, %v3652, 0.0
        %3656 = vadd.xlane.f32.xlu0 %v3655
        %v3657 = vpop.xlane.xlu0 %3656
        %v3658 = vsel %vm2777, %v3654, 0.0
        %3659 = vadd.xlane.f32.xlu0 %v3658
        %v3660 = vpop.xlane.xlu0 %3659
        %v3661 = vrcp.pop %v3657
        %v3662 = vmul.f32 %v3652, %v3661
        %v3663 = vrcp.pop %v3660
        %v3664 = vmul.f32 %v3654, %v3663
        %3665 = vrot.lane.b32.xlu0 %v2589, 80
        %v3666 = vpop.permute.xlu0 %3665
        %3667 = vrot.lane.b32.xlu0 %v2596, 80
        %v3668 = vpop.permute.xlu0 %3667
        %v3671 = vsel %vm2777, %v3662, 0
        %v3673 = vsel %vm2808, %v3668, 0
        %3675 = vmatprep.subr.mxu0 0.0
        %3676 = vmatpush1.msra.mxu0 0.0
        %3677 = vmatprep.subr.mxu0 0.0
        %3678 = vmatpush1.msra.mxu0 0.0
        %3679 = vmatprep.subr.mxu0 0.0
        %3680 = vmatpush1.msra.mxu0 0.0
        %3681 = vmatprep.subr.mxu0 0.0
        %3682 = vmatpush1.msra.mxu0 0.0
        %3683 = vmatprep.subr.mxu0 0.0
        %3684 = vmatpush1.msra.mxu0 0.0
        %3685 = vmatprep.subr.mxu0 0.0
        %3686 = vmatpush1.msra.mxu0 0.0
        %3687 = vmatprep.subr.mxu0 0.0
        %3688 = vmatpush1.msra.mxu0 0.0
        %3689 = vmatprep.subr.mxu0 0.0
        %3690 = vmatpush1.msra.mxu0 0.0
        %3691 = vmatprep.subr.mxu0 0.0
        %3692 = vmatpush1.msra.mxu0 0.0
        %3693 = vmatprep.subr.mxu0 0.0
        %3694 = vmatpush1.msra.mxu0 0.0
        %3695 = vmatprep.subr.mxu0 0.0
        %3696 = vmatpush1.msra.mxu0 0.0
        %3697 = vmatprep.subr.mxu0 0.0
        %3698 = vmatpush1.msra.mxu0 0.0
        %3699 = vmatprep.subr.mxu0 0.0
        %3700 = vmatpush1.msra.mxu0 0.0
        %3701 = vmatprep.subr.mxu0 0.0
        %3702 = vmatpush1.msra.mxu0 0.0
        %3703 = vmatprep.subr.mxu0 0.0
        %3704 = vmatpush1.msra.mxu0 %v3673
        %3705 = vmatprep.subr.mxu0 0.0
        %3706 = vmatpush1.msra.mxu0 %v3666
        %3707 = vmatprep.subr.mxu0 0.0
        %3708 = vmatpush2.msra.mxu0 0.0
        %3709 = vmatprep.subr.mxu0 0.0
        %3710 = vmatpush2.msra.mxu0 0.0
        %3711 = vmatprep.subr.mxu0 0.0
        %3712 = vmatpush2.msra.mxu0 0.0
        %3713 = vmatprep.subr.mxu0 0.0
        %3714 = vmatpush2.msra.mxu0 0.0
        %3715 = vmatprep.subr.mxu0 0.0
        %3716 = vmatpush2.msra.mxu0 0.0
        %3717 = vmatprep.subr.mxu0 0.0
        %3718 = vmatpush2.msra.mxu0 0.0
        %3719 = vmatprep.subr.mxu0 0.0
        %3720 = vmatpush2.msra.mxu0 0.0
        %3721 = vmatprep.subr.mxu0 0.0
        %3722 = vmatpush2.msra.mxu0 0.0
        %3723 = vmatprep.subr.mxu0 0.0
        %3724 = vmatpush2.msra.mxu0 0.0
        %3725 = vmatprep.subr.mxu0 0.0
        %3726 = vmatpush2.msra.mxu0 0.0
        %3727 = vmatprep.subr.mxu0 0.0
        %3728 = vmatpush2.msra.mxu0 0.0
        %3729 = vmatprep.subr.mxu0 0.0
        %3730 = vmatpush2.msra.mxu0 0.0
        %3731 = vmatprep.subr.mxu0 0.0
        %3732 = vmatpush2.msra.mxu0 0.0
        %3733 = vmatprep.subr.mxu0 0.0
        %3734 = vmatpush2.msra.mxu0 0.0
        %3735 = vmatprep.subr.mxu0 0.0
        %3736 = vmatpush2.msra.mxu0 0.0
        %3737 = vmatprep.subr.mxu0 0.0
        %3738 = vmatpush2.msra.mxu0 0.0
        %3739 = vmatprep.mubr.f32.mxu0 0.0
        %3740 = vmatmul.mubr.f32.gmra.mxu0 %v3671
        %v3741 = vpop.f32.mrf.mxu0
        %v3742 = vadd.f32 0.0, %v3741
        %v3743 = vpop.f32.mrf.mxu0
        %3744 = vdwg.mxu0
        %3745 = vrot.lane.b32.xlu0 %v2690, 80
        %v3746 = vpop.permute.xlu0 %3745
        %3747 = vrot.lane.b32.xlu0 %v2697, 80
        %v3748 = vpop.permute.xlu0 %3747
        %v3751 = vsel %vm2777, %v3664, 0
        %v3753 = vsel %vm2808, %v3748, 0
        %3755 = vmatprep.subr.mxu0 0.0
        %3756 = vmatpush1.msra.mxu0 0.0
        %3757 = vmatprep.subr.mxu0 0.0
        %3758 = vmatpush1.msra.mxu0 0.0
        %3759 = vmatprep.subr.mxu0 0.0
        %3760 = vmatpush1.msra.mxu0 0.0
        %3761 = vmatprep.subr.mxu0 0.0
        %3762 = vmatpush1.msra.mxu0 0.0
        %3763 = vmatprep.subr.mxu0 0.0
        %3764 = vmatpush1.msra.mxu0 0.0
        %3765 = vmatprep.subr.mxu0 0.0
        %3766 = vmatpush1.msra.mxu0 0.0
        %3767 = vmatprep.subr.mxu0 0.0
        %3768 = vmatpush1.msra.mxu0 0.0
        %3769 = vmatprep.subr.mxu0 0.0
        %3770 = vmatpush1.msra.mxu0 0.0
        %3771 = vmatprep.subr.mxu0 0.0
        %3772 = vmatpush1.msra.mxu0 0.0
        %3773 = vmatprep.subr.mxu0 0.0
        %3774 = vmatpush1.msra.mxu0 0.0
        %3775 = vmatprep.subr.mxu0 0.0
        %3776 = vmatpush1.msra.mxu0 0.0
        %3777 = vmatprep.subr.mxu0 0.0
        %3778 = vmatpush1.msra.mxu0 0.0
        %3779 = vmatprep.subr.mxu0 0.0
        %3780 = vmatpush1.msra.mxu0 0.0
        %3781 = vmatprep.subr.mxu0 0.0
        %3782 = vmatpush1.msra.mxu0 0.0
        %3783 = vmatprep.subr.mxu0 0.0
        %3784 = vmatpush1.msra.mxu0 %v3753
        %3785 = vmatprep.subr.mxu0 0.0
        %3786 = vmatpush1.msra.mxu0 %v3746
        %3787 = vmatprep.subr.mxu0 0.0
        %3788 = vmatpush2.msra.mxu0 0.0
        %3789 = vmatprep.subr.mxu0 0.0
        %3790 = vmatpush2.msra.mxu0 0.0
        %3791 = vmatprep.subr.mxu0 0.0
        %3792 = vmatpush2.msra.mxu0 0.0
        %3793 = vmatprep.subr.mxu0 0.0
        %3794 = vmatpush2.msra.mxu0 0.0
        %3795 = vmatprep.subr.mxu0 0.0
        %3796 = vmatpush2.msra.mxu0 0.0
        %3797 = vmatprep.subr.mxu0 0.0
        %3798 = vmatpush2.msra.mxu0 0.0
        %3799 = vmatprep.subr.mxu0 0.0
        %3800 = vmatpush2.msra.mxu0 0.0
        %3801 = vmatprep.subr.mxu0 0.0
        %3802 = vmatpush2.msra.mxu0 0.0
        %3803 = vmatprep.subr.mxu0 0.0
        %3804 = vmatpush2.msra.mxu0 0.0
        %3805 = vmatprep.subr.mxu0 0.0
        %3806 = vmatpush2.msra.mxu0 0.0
        %3807 = vmatprep.subr.mxu0 0.0
        %3808 = vmatpush2.msra.mxu0 0.0
        %3809 = vmatprep.subr.mxu0 0.0
        %3810 = vmatpush2.msra.mxu0 0.0
        %3811 = vmatprep.subr.mxu0 0.0
        %3812 = vmatpush2.msra.mxu0 0.0
        %3813 = vmatprep.subr.mxu0 0.0
        %3814 = vmatpush2.msra.mxu0 0.0
        %3815 = vmatprep.subr.mxu0 0.0
        %3816 = vmatpush2.msra.mxu0 0.0
        %3817 = vmatprep.subr.mxu0 0.0
        %3818 = vmatpush2.msra.mxu0 0.0
        %3819 = vmatprep.mubr.f32.mxu0 0.0
        %3820 = vmatmul.mubr.f32.gmra.mxu0 %v3751
        %v3821 = vpop.f32.mrf.mxu0
        %v3822 = vadd.f32 0.0, %v3821
        %v3823 = vpop.f32.mrf.mxu0
        %3824 = vdwg.mxu0
        %3825 = vrot.lane.b32.xlu0 %v2241, 32
        %v3826 = vpop.permute.xlu0 %3825
        %v3829 = vsel %vm495, %v3742, 0
        %v3832 = vsel %vm495, %v3822, 0
        %3834 = vmatprep.subr.mxu0 0.0
        %3835 = vmatpush1.msra.mxu0 0.0
        %3836 = vmatprep.subr.mxu0 0.0
        %3837 = vmatpush1.msra.mxu0 0.0
        %3838 = vmatprep.subr.mxu0 0.0
        %3839 = vmatpush1.msra.mxu0 0.0
        %3840 = vmatprep.subr.mxu0 0.0
        %3841 = vmatpush1.msra.mxu0 0.0
        %3842 = vmatprep.subr.mxu0 0.0
        %3843 = vmatpush1.msra.mxu0 0.0
        %3844 = vmatprep.subr.mxu0 0.0
        %3845 = vmatpush1.msra.mxu0 0.0
        %3846 = vmatprep.subr.mxu0 0.0
        %3847 = vmatpush1.msra.mxu0 0.0
        %3848 = vmatprep.subr.mxu0 0.0
        %3849 = vmatpush1.msra.mxu0 0.0
        %3850 = vmatprep.subr.mxu0 0.0
        %3851 = vmatpush1.msra.mxu0 0.0
        %3852 = vmatprep.subr.mxu0 0.0
        %3853 = vmatpush1.msra.mxu0 0.0
        %3854 = vmatprep.subr.mxu0 0.0
        %3855 = vmatpush1.msra.mxu0 0.0
        %3856 = vmatprep.subr.mxu0 0.0
        %3857 = vmatpush1.msra.mxu0 0.0
        %3858 = vmatprep.subr.mxu0 0.0
        %3859 = vmatpush1.msra.mxu0 0.0
        %3860 = vmatprep.subr.mxu0 0.0
        %3861 = vmatpush1.msra.mxu0 0.0
        %3862 = vmatprep.subr.mxu0 0.0
        %3863 = vmatpush1.msra.mxu0 0.0
        %3864 = vmatprep.subr.mxu0 0.0
        %3865 = vmatpush1.msra.mxu0 %v3826
        %3866 = vmatprep.subr.mxu0 0.0
        %3867 = vmatpush2.msra.mxu0 0.0
        %3868 = vmatprep.subr.mxu0 0.0
        %3869 = vmatpush2.msra.mxu0 0.0
        %3870 = vmatprep.subr.mxu0 0.0
        %3871 = vmatpush2.msra.mxu0 0.0
        %3872 = vmatprep.subr.mxu0 0.0
        %3873 = vmatpush2.msra.mxu0 0.0
        %3874 = vmatprep.subr.mxu0 0.0
        %3875 = vmatpush2.msra.mxu0 0.0
        %3876 = vmatprep.subr.mxu0 0.0
        %3877 = vmatpush2.msra.mxu0 0.0
        %3878 = vmatprep.subr.mxu0 0.0
        %3879 = vmatpush2.msra.mxu0 0.0
        %3880 = vmatprep.subr.mxu0 0.0
        %3881 = vmatpush2.msra.mxu0 0.0
        %3882 = vmatprep.subr.mxu0 0.0
        %3883 = vmatpush2.msra.mxu0 0.0
        %3884 = vmatprep.subr.mxu0 0.0
        %3885 = vmatpush2.msra.mxu0 0.0
        %3886 = vmatprep.subr.mxu0 0.0
        %3887 = vmatpush2.msra.mxu0 0.0
        %3888 = vmatprep.subr.mxu0 0.0
        %3889 = vmatpush2.msra.mxu0 0.0
        %3890 = vmatprep.subr.mxu0 0.0
        %3891 = vmatpush2.msra.mxu0 0.0
        %3892 = vmatprep.subr.mxu0 0.0
        %3893 = vmatpush2.msra.mxu0 0.0
        %3894 = vmatprep.subr.mxu0 0.0
        %3895 = vmatpush2.msra.mxu0 0.0
        %3896 = vmatprep.subr.mxu0 0.0
        %3897 = vmatpush2.msra.mxu0 0.0
        %3898 = vmatprep.mubr.f32.mxu0 0.0
        %3899 = vmatmul.mubr.f32.gmra.mxu0 %v3829
        %v3900 = vpop.f32.mrf.mxu0
        %v3901 = vadd.f32 0.0, %v3900
        %v3902 = vpop.f32.mrf.mxu0
        %3903 = vmatprep.mubr.f32.mxu0 0.0
        %3904 = vmatmul.mubr.f32.gmra.mxu0 %v3832
        %v3905 = vpop.f32.mrf.mxu0
        %v3906 = vadd.f32 0.0, %v3905
        %v3907 = vpop.f32.mrf.mxu0
        %3908 = vdwg.mxu0
        %v3909 = vadd.f32 %v3469, %v3901
        %v3910 = vadd.f32 %v3474, %v3906
        %3911 = vrot.lane.b32.xlu0 %v2372, 104
        %v3912 = vpop.permute.xlu0 %3911
        %3913 = vrot.lane.b32.xlu0 %v2589, 104
        %v3914 = vpop.permute.xlu0 %3913
        %3915 = vrot.lane.b32.xlu0 %v2596, 104
        %v3916 = vpop.permute.xlu0 %3915
        %v3917 = vsel %vm495, %v3912, 0
        %v3919 = vsel %vm495, %v3914, 0
        %v3921 = vsel %vm495, %v3916, 0
        %3923 = vmatprep.subr.mxu0 0.0
        %3924 = vmatpush1.xpose.msra.mxu0 0.0
        %3925 = vmatprep.subr.mxu0 0.0
        %3926 = vmatpush1.xpose.msra.mxu0 0.0
        %3927 = vmatprep.subr.mxu0 0.0
        %3928 = vmatpush1.xpose.msra.mxu0 0.0
        %3929 = vmatprep.subr.mxu0 0.0
        %3930 = vmatpush1.xpose.msra.mxu0 0.0
        %3931 = vmatprep.subr.mxu0 0.0
        %3932 = vmatpush1.xpose.msra.mxu0 0.0
        %3933 = vmatprep.subr.mxu0 0.0
        %3934 = vmatpush1.xpose.msra.mxu0 0.0
        %3935 = vmatprep.subr.mxu0 0.0
        %3936 = vmatpush1.xpose.msra.mxu0 0.0
        %3937 = vmatprep.subr.mxu0 0.0
        %3938 = vmatpush1.xpose.msra.mxu0 0.0
        %3939 = vmatprep.subr.mxu0 0.0
        %3940 = vmatpush1.xpose.msra.mxu0 0.0
        %3941 = vmatprep.subr.mxu0 0.0
        %3942 = vmatpush1.xpose.msra.mxu0 0.0
        %3943 = vmatprep.subr.mxu0 0.0
        %3944 = vmatpush1.xpose.msra.mxu0 0.0
        %3945 = vmatprep.subr.mxu0 0.0
        %3946 = vmatpush1.xpose.msra.mxu0 0.0
        %3947 = vmatprep.subr.mxu0 0.0
        %3948 = vmatpush1.xpose.msra.mxu0 0.0
        %3949 = vmatprep.subr.mxu0 0.0
        %3950 = vmatpush1.xpose.msra.mxu0 0.0
        %3951 = vmatprep.subr.mxu0 0.0
        %3952 = vmatpush1.xpose.msra.mxu0 %v3921
        %3953 = vmatprep.subr.mxu0 0.0
        %3954 = vmatpush1.xpose.msra.mxu0 %v3919
        %3955 = vmatprep.subr.mxu0 0.0
        %3956 = vmatpush2.xpose.msra.mxu0 0.0
        %3957 = vmatprep.subr.mxu0 0.0
        %3958 = vmatpush2.xpose.msra.mxu0 0.0
        %3959 = vmatprep.subr.mxu0 0.0
        %3960 = vmatpush2.xpose.msra.mxu0 0.0
        %3961 = vmatprep.subr.mxu0 0.0
        %3962 = vmatpush2.xpose.msra.mxu0 0.0
        %3963 = vmatprep.subr.mxu0 0.0
        %3964 = vmatpush2.xpose.msra.mxu0 0.0
        %3965 = vmatprep.subr.mxu0 0.0
        %3966 = vmatpush2.xpose.msra.mxu0 0.0
        %3967 = vmatprep.subr.mxu0 0.0
        %3968 = vmatpush2.xpose.msra.mxu0 0.0
        %3969 = vmatprep.subr.mxu0 0.0
        %3970 = vmatpush2.xpose.msra.mxu0 0.0
        %3971 = vmatprep.subr.mxu0 0.0
        %3972 = vmatpush2.xpose.msra.mxu0 0.0
        %3973 = vmatprep.subr.mxu0 0.0
        %3974 = vmatpush2.xpose.msra.mxu0 0.0
        %3975 = vmatprep.subr.mxu0 0.0
        %3976 = vmatpush2.xpose.msra.mxu0 0.0
        %3977 = vmatprep.subr.mxu0 0.0
        %3978 = vmatpush2.xpose.msra.mxu0 0.0
        %3979 = vmatprep.subr.mxu0 0.0
        %3980 = vmatpush2.xpose.msra.mxu0 0.0
        %3981 = vmatprep.subr.mxu0 0.0
        %3982 = vmatpush2.xpose.msra.mxu0 0.0
        %3983 = vmatprep.subr.mxu0 0.0
        %3984 = vmatpush2.xpose.msra.mxu0 0.0
        %3985 = vmatprep.subr.mxu0 0.0
        %3986 = vmatpush2.xpose.msra.mxu0 0.0
        %3987 = vmatprep.mubr.f32.mxu0 0.0
        %3988 = vmatmul.mubr.f32.gmra.mxu0 %v3917
        %v3989 = vpop.f32.mrf.mxu0
        %v3990 = vadd.f32 0.0, %v3989
        %v3991 = vpop.f32.mrf.mxu0
        %3992 = vdwg.mxu0
        %3993 = vrot.lane.b32.xlu0 %v2377, 104
        %v3994 = vpop.permute.xlu0 %3993
        %3995 = vrot.lane.b32.xlu0 %v2690, 104
        %v3996 = vpop.permute.xlu0 %3995
        %3997 = vrot.lane.b32.xlu0 %v2697, 104
        %v3998 = vpop.permute.xlu0 %3997
        %v3999 = vsel %vm495, %v3994, 0
        %v4001 = vsel %vm495, %v3996, 0
        %v4003 = vsel %vm495, %v3998, 0
        %4005 = vmatprep.subr.mxu0 0.0
        %4006 = vmatpush1.xpose.msra.mxu0 0.0
        %4007 = vmatprep.subr.mxu0 0.0
        %4008 = vmatpush1.xpose.msra.mxu0 0.0
        %4009 = vmatprep.subr.mxu0 0.0
        %4010 = vmatpush1.xpose.msra.mxu0 0.0
        %4011 = vmatprep.subr.mxu0 0.0
        %4012 = vmatpush1.xpose.msra.mxu0 0.0
        %4013 = vmatprep.subr.mxu0 0.0
        %4014 = vmatpush1.xpose.msra.mxu0 0.0
        %4015 = vmatprep.subr.mxu0 0.0
        %4016 = vmatpush1.xpose.msra.mxu0 0.0
        %4017 = vmatprep.subr.mxu0 0.0
        %4018 = vmatpush1.xpose.msra.mxu0 0.0
        %4019 = vmatprep.subr.mxu0 0.0
        %4020 = vmatpush1.xpose.msra.mxu0 0.0
        %4021 = vmatprep.subr.mxu0 0.0
        %4022 = vmatpush1.xpose.msra.mxu0 0.0
        %4023 = vmatprep.subr.mxu0 0.0
        %4024 = vmatpush1.xpose.msra.mxu0 0.0
        %4025 = vmatprep.subr.mxu0 0.0
        %4026 = vmatpush1.xpose.msra.mxu0 0.0
        %4027 = vmatprep.subr.mxu0 0.0
        %4028 = vmatpush1.xpose.msra.mxu0 0.0
        %4029 = vmatprep.subr.mxu0 0.0
        %4030 = vmatpush1.xpose.msra.mxu0 0.0
        %4031 = vmatprep.subr.mxu0 0.0
        %4032 = vmatpush1.xpose.msra.mxu0 0.0
        %4033 = vmatprep.subr.mxu0 0.0
        %4034 = vmatpush1.xpose.msra.mxu0 %v4003
        %4035 = vmatprep.subr.mxu0 0.0
        %4036 = vmatpush1.xpose.msra.mxu0 %v4001
        %4037 = vmatprep.subr.mxu0 0.0
        %4038 = vmatpush2.xpose.msra.mxu0 0.0
        %4039 = vmatprep.subr.mxu0 0.0
        %4040 = vmatpush2.xpose.msra.mxu0 0.0
        %4041 = vmatprep.subr.mxu0 0.0
        %4042 = vmatpush2.xpose.msra.mxu0 0.0
        %4043 = vmatprep.subr.mxu0 0.0
        %4044 = vmatpush2.xpose.msra.mxu0 0.0
        %4045 = vmatprep.subr.mxu0 0.0
        %4046 = vmatpush2.xpose.msra.mxu0 0.0
        %4047 = vmatprep.subr.mxu0 0.0
        %4048 = vmatpush2.xpose.msra.mxu0 0.0
        %4049 = vmatprep.subr.mxu0 0.0
        %4050 = vmatpush2.xpose.msra.mxu0 0.0
        %4051 = vmatprep.subr.mxu0 0.0
        %4052 = vmatpush2.xpose.msra.mxu0 0.0
        %4053 = vmatprep.subr.mxu0 0.0
        %4054 = vmatpush2.xpose.msra.mxu0 0.0
        %4055 = vmatprep.subr.mxu0 0.0
        %4056 = vmatpush2.xpose.msra.mxu0 0.0
        %4057 = vmatprep.subr.mxu0 0.0
        %4058 = vmatpush2.xpose.msra.mxu0 0.0
        %4059 = vmatprep.subr.mxu0 0.0
        %4060 = vmatpush2.xpose.msra.mxu0 0.0
        %4061 = vmatprep.subr.mxu0 0.0
        %4062 = vmatpush2.xpose.msra.mxu0 0.0
        %4063 = vmatprep.subr.mxu0 0.0
        %4064 = vmatpush2.xpose.msra.mxu0 0.0
        %4065 = vmatprep.subr.mxu0 0.0
        %4066 = vmatpush2.xpose.msra.mxu0 0.0
        %4067 = vmatprep.subr.mxu0 0.0
        %4068 = vmatpush2.xpose.msra.mxu0 0.0
        %4069 = vmatprep.mubr.f32.mxu0 0.0
        %4070 = vmatmul.mubr.f32.gmra.mxu0 %v3999
        %v4071 = vpop.f32.mrf.mxu0
        %v4072 = vadd.f32 0.0, %v4071
        %v4073 = vpop.f32.mrf.mxu0
        %4074 = vdwg.mxu0
        %v4075 = vmul.f32 %v3990, 0.35355338
        %v4076 = vmul.f32 %v4072, 0.35355338
        %v4077 = vsel %vm2777, %v4075, -inf
        %4078 = vmax.xlane.f32.xlu0 %v4077
        %v4079 = vpop.xlane.xlu0 %4078
        %v4080 = vsel %vm2777, %v4076, -inf
        %4081 = vmax.xlane.f32.xlu0 %v4080
        %v4082 = vpop.xlane.xlu0 %4081
        %v4083 = vsub.f32 %v4075, %v4079
        %v4084 = vsub.f32 %v4076, %v4082
        %v4085 = vmul.f32 %v4083, 1.442695
        %v4086 = vpow.pop %v4085
        %v4087 = vmul.f32 %v4084, 1.442695
        %v4088 = vpow.pop %v4087
        %v4089 = vsel %vm2777, %v4086, 0.0
        %4090 = vadd.xlane.f32.xlu0 %v4089
        %v4091 = vpop.xlane.xlu0 %4090
        %v4092 = vsel %vm2777, %v4088, 0.0
        %4093 = vadd.xlane.f32.xlu0 %v4092
        %v4094 = vpop.xlane.xlu0 %4093
        %v4095 = vrcp.pop %v4091
        %v4096 = vmul.f32 %v4086, %v4095
        %v4097 = vrcp.pop %v4094
        %v4098 = vmul.f32 %v4088, %v4097
        %4099 = vrot.lane.b32.xlu0 %v2589, 72
        %v4100 = vpop.permute.xlu0 %4099
        %4101 = vrot.lane.b32.xlu0 %v2596, 72
        %v4102 = vpop.permute.xlu0 %4101
        %v4105 = vsel %vm2777, %v4096, 0
        %v4107 = vsel %vm2808, %v4102, 0
        %4109 = vmatprep.subr.mxu0 0.0
        %4110 = vmatpush1.msra.mxu0 0.0
        %4111 = vmatprep.subr.mxu0 0.0
        %4112 = vmatpush1.msra.mxu0 0.0
        %4113 = vmatprep.subr.mxu0 0.0
        %4114 = vmatpush1.msra.mxu0 0.0
        %4115 = vmatprep.subr.mxu0 0.0
        %4116 = vmatpush1.msra.mxu0 0.0
        %4117 = vmatprep.subr.mxu0 0.0
        %4118 = vmatpush1.msra.mxu0 0.0
        %4119 = vmatprep.subr.mxu0 0.0
        %4120 = vmatpush1.msra.mxu0 0.0
        %4121 = vmatprep.subr.mxu0 0.0
        %4122 = vmatpush1.msra.mxu0 0.0
        %4123 = vmatprep.subr.mxu0 0.0
        %4124 = vmatpush1.msra.mxu0 0.0
        %4125 = vmatprep.subr.mxu0 0.0
        %4126 = vmatpush1.msra.mxu0 0.0
        %4127 = vmatprep.subr.mxu0 0.0
        %4128 = vmatpush1.msra.mxu0 0.0
        %4129 = vmatprep.subr.mxu0 0.0
        %4130 = vmatpush1.msra.mxu0 0.0
        %4131 = vmatprep.subr.mxu0 0.0
        %4132 = vmatpush1.msra.mxu0 0.0
        %4133 = vmatprep.subr.mxu0 0.0
        %4134 = vmatpush1.msra.mxu0 0.0
        %4135 = vmatprep.subr.mxu0 0.0
        %4136 = vmatpush1.msra.mxu0 0.0
        %4137 = vmatprep.subr.mxu0 0.0
        %4138 = vmatpush1.msra.mxu0 %v4107
        %4139 = vmatprep.subr.mxu0 0.0
        %4140 = vmatpush1.msra.mxu0 %v4100
        %4141 = vmatprep.subr.mxu0 0.0
        %4142 = vmatpush2.msra.mxu0 0.0
        %4143 = vmatprep.subr.mxu0 0.0
        %4144 = vmatpush2.msra.mxu0 0.0
        %4145 = vmatprep.subr.mxu0 0.0
        %4146 = vmatpush2.msra.mxu0 0.0
        %4147 = vmatprep.subr.mxu0 0.0
        %4148 = vmatpush2.msra.mxu0 0.0
        %4149 = vmatprep.subr.mxu0 0.0
        %4150 = vmatpush2.msra.mxu0 0.0
        %4151 = vmatprep.subr.mxu0 0.0
        %4152 = vmatpush2.msra.mxu0 0.0
        %4153 = vmatprep.subr.mxu0 0.0
        %4154 = vmatpush2.msra.mxu0 0.0
        %4155 = vmatprep.subr.mxu0 0.0
        %4156 = vmatpush2.msra.mxu0 0.0
        %4157 = vmatprep.subr.mxu0 0.0
        %4158 = vmatpush2.msra.mxu0 0.0
        %4159 = vmatprep.subr.mxu0 0.0
        %4160 = vmatpush2.msra.mxu0 0.0
        %4161 = vmatprep.subr.mxu0 0.0
        %4162 = vmatpush2.msra.mxu0 0.0
        %4163 = vmatprep.subr.mxu0 0.0
        %4164 = vmatpush2.msra.mxu0 0.0
        %4165 = vmatprep.subr.mxu0 0.0
        %4166 = vmatpush2.msra.mxu0 0.0
        %4167 = vmatprep.subr.mxu0 0.0
        %4168 = vmatpush2.msra.mxu0 0.0
        %4169 = vmatprep.subr.mxu0 0.0
        %4170 = vmatpush2.msra.mxu0 0.0
        %4171 = vmatprep.subr.mxu0 0.0
        %4172 = vmatpush2.msra.mxu0 0.0
        %4173 = vmatprep.mubr.f32.mxu0 0.0
        %4174 = vmatmul.mubr.f32.gmra.mxu0 %v4105
        %v4175 = vpop.f32.mrf.mxu0
        %v4176 = vadd.f32 0.0, %v4175
        %v4177 = vpop.f32.mrf.mxu0
        %4178 = vdwg.mxu0
        %4179 = vrot.lane.b32.xlu0 %v2690, 72
        %v4180 = vpop.permute.xlu0 %4179
        %4181 = vrot.lane.b32.xlu0 %v2697, 72
        %v4182 = vpop.permute.xlu0 %4181
        %v4185 = vsel %vm2777, %v4098, 0
        %v4187 = vsel %vm2808, %v4182, 0
        %4189 = vmatprep.subr.mxu0 0.0
        %4190 = vmatpush1.msra.mxu0 0.0
        %4191 = vmatprep.subr.mxu0 0.0
        %4192 = vmatpush1.msra.mxu0 0.0
        %4193 = vmatprep.subr.mxu0 0.0
        %4194 = vmatpush1.msra.mxu0 0.0
        %4195 = vmatprep.subr.mxu0 0.0
        %4196 = vmatpush1.msra.mxu0 0.0
        %4197 = vmatprep.subr.mxu0 0.0
        %4198 = vmatpush1.msra.mxu0 0.0
        %4199 = vmatprep.subr.mxu0 0.0
        %4200 = vmatpush1.msra.mxu0 0.0
        %4201 = vmatprep.subr.mxu0 0.0
        %4202 = vmatpush1.msra.mxu0 0.0
        %4203 = vmatprep.subr.mxu0 0.0
        %4204 = vmatpush1.msra.mxu0 0.0
        %4205 = vmatprep.subr.mxu0 0.0
        %4206 = vmatpush1.msra.mxu0 0.0
        %4207 = vmatprep.subr.mxu0 0.0
        %4208 = vmatpush1.msra.mxu0 0.0
        %4209 = vmatprep.subr.mxu0 0.0
        %4210 = vmatpush1.msra.mxu0 0.0
        %4211 = vmatprep.subr.mxu0 0.0
        %4212 = vmatpush1.msra.mxu0 0.0
        %4213 = vmatprep.subr.mxu0 0.0
        %4214 = vmatpush1.msra.mxu0 0.0
        %4215 = vmatprep.subr.mxu0 0.0
        %4216 = vmatpush1.msra.mxu0 0.0
        %4217 = vmatprep.subr.mxu0 0.0
        %4218 = vmatpush1.msra.mxu0 %v4187
        %4219 = vmatprep.subr.mxu0 0.0
        %4220 = vmatpush1.msra.mxu0 %v4180
        %4221 = vmatprep.subr.mxu0 0.0
        %4222 = vmatpush2.msra.mxu0 0.0
        %4223 = vmatprep.subr.mxu0 0.0
        %4224 = vmatpush2.msra.mxu0 0.0
        %4225 = vmatprep.subr.mxu0 0.0
        %4226 = vmatpush2.msra.mxu0 0.0
        %4227 = vmatprep.subr.mxu0 0.0
        %4228 = vmatpush2.msra.mxu0 0.0
        %4229 = vmatprep.subr.mxu0 0.0
        %4230 = vmatpush2.msra.mxu0 0.0
        %4231 = vmatprep.subr.mxu0 0.0
        %4232 = vmatpush2.msra.mxu0 0.0
        %4233 = vmatprep.subr.mxu0 0.0
        %4234 = vmatpush2.msra.mxu0 0.0
        %4235 = vmatprep.subr.mxu0 0.0
        %4236 = vmatpush2.msra.mxu0 0.0
        %4237 = vmatprep.subr.mxu0 0.0
        %4238 = vmatpush2.msra.mxu0 0.0
        %4239 = vmatprep.subr.mxu0 0.0
        %4240 = vmatpush2.msra.mxu0 0.0
        %4241 = vmatprep.subr.mxu0 0.0
        %4242 = vmatpush2.msra.mxu0 0.0
        %4243 = vmatprep.subr.mxu0 0.0
        %4244 = vmatpush2.msra.mxu0 0.0
        %4245 = vmatprep.subr.mxu0 0.0
        %4246 = vmatpush2.msra.mxu0 0.0
        %4247 = vmatprep.subr.mxu0 0.0
        %4248 = vmatpush2.msra.mxu0 0.0
        %4249 = vmatprep.subr.mxu0 0.0
        %4250 = vmatpush2.msra.mxu0 0.0
        %4251 = vmatprep.subr.mxu0 0.0
        %4252 = vmatpush2.msra.mxu0 0.0
        %4253 = vmatprep.mubr.f32.mxu0 0.0
        %4254 = vmatmul.mubr.f32.gmra.mxu0 %v4185
        %v4255 = vpop.f32.mrf.mxu0
        %v4256 = vadd.f32 0.0, %v4255
        %v4257 = vpop.f32.mrf.mxu0
        %4258 = vdwg.mxu0
        %4259 = vrot.lane.b32.xlu0 %v2242, 32
        %v4260 = vpop.permute.xlu0 %4259
        %v4263 = vsel %vm495, %v4176, 0
        %v4266 = vsel %vm495, %v4256, 0
        %4268 = vmatprep.subr.mxu0 0.0
        %4269 = vmatpush1.msra.mxu0 0.0
        %4270 = vmatprep.subr.mxu0 0.0
        %4271 = vmatpush1.msra.mxu0 0.0
        %4272 = vmatprep.subr.mxu0 0.0
        %4273 = vmatpush1.msra.mxu0 0.0
        %4274 = vmatprep.subr.mxu0 0.0
        %4275 = vmatpush1.msra.mxu0 0.0
        %4276 = vmatprep.subr.mxu0 0.0
        %4277 = vmatpush1.msra.mxu0 0.0
        %4278 = vmatprep.subr.mxu0 0.0
        %4279 = vmatpush1.msra.mxu0 0.0
        %4280 = vmatprep.subr.mxu0 0.0
        %4281 = vmatpush1.msra.mxu0 0.0
        %4282 = vmatprep.subr.mxu0 0.0
        %4283 = vmatpush1.msra.mxu0 0.0
        %4284 = vmatprep.subr.mxu0 0.0
        %4285 = vmatpush1.msra.mxu0 0.0
        %4286 = vmatprep.subr.mxu0 0.0
        %4287 = vmatpush1.msra.mxu0 0.0
        %4288 = vmatprep.subr.mxu0 0.0
        %4289 = vmatpush1.msra.mxu0 0.0
        %4290 = vmatprep.subr.mxu0 0.0
        %4291 = vmatpush1.msra.mxu0 0.0
        %4292 = vmatprep.subr.mxu0 0.0
        %4293 = vmatpush1.msra.mxu0 0.0
        %4294 = vmatprep.subr.mxu0 0.0
        %4295 = vmatpush1.msra.mxu0 0.0
        %4296 = vmatprep.subr.mxu0 0.0
        %4297 = vmatpush1.msra.mxu0 0.0
        %4298 = vmatprep.subr.mxu0 0.0
        %4299 = vmatpush1.msra.mxu0 %v4260
        %4300 = vmatprep.subr.mxu0 0.0
        %4301 = vmatpush2.msra.mxu0 0.0
        %4302 = vmatprep.subr.mxu0 0.0
        %4303 = vmatpush2.msra.mxu0 0.0
        %4304 = vmatprep.subr.mxu0 0.0
        %4305 = vmatpush2.msra.mxu0 0.0
        %4306 = vmatprep.subr.mxu0 0.0
        %4307 = vmatpush2.msra.mxu0 0.0
        %4308 = vmatprep.subr.mxu0 0.0
        %4309 = vmatpush2.msra.mxu0 0.0
        %4310 = vmatprep.subr.mxu0 0.0
        %4311 = vmatpush2.msra.mxu0 0.0
        %4312 = vmatprep.subr.mxu0 0.0
        %4313 = vmatpush2.msra.mxu0 0.0
        %4314 = vmatprep.subr.mxu0 0.0
        %4315 = vmatpush2.msra.mxu0 0.0
        %4316 = vmatprep.subr.mxu0 0.0
        %4317 = vmatpush2.msra.mxu0 0.0
        %4318 = vmatprep.subr.mxu0 0.0
        %4319 = vmatpush2.msra.mxu0 0.0
        %4320 = vmatprep.subr.mxu0 0.0
        %4321 = vmatpush2.msra.mxu0 0.0
        %4322 = vmatprep.subr.mxu0 0.0
        %4323 = vmatpush2.msra.mxu0 0.0
        %4324 = vmatprep.subr.mxu0 0.0
        %4325 = vmatpush2.msra.mxu0 0.0
        %4326 = vmatprep.subr.mxu0 0.0
        %4327 = vmatpush2.msra.mxu0 0.0
        %4328 = vmatprep.subr.mxu0 0.0
        %4329 = vmatpush2.msra.mxu0 0.0
        %4330 = vmatprep.subr.mxu0 0.0
        %4331 = vmatpush2.msra.mxu0 0.0
        %4332 = vmatprep.mubr.f32.mxu0 0.0
        %4333 = vmatmul.mubr.f32.gmra.mxu0 %v4263
        %v4334 = vpop.f32.mrf.mxu0
        %v4335 = vadd.f32 0.0, %v4334
        %v4336 = vpop.f32.mrf.mxu0
        %4337 = vmatprep.mubr.f32.mxu0 0.0
        %4338 = vmatmul.mubr.f32.gmra.mxu0 %v4266
        %v4339 = vpop.f32.mrf.mxu0
        %v4340 = vadd.f32 0.0, %v4339
        %v4341 = vpop.f32.mrf.mxu0
        %4342 = vdwg.mxu0
        %v4343 = vadd.f32 %v3909, %v4335
        %v4344 = vadd.f32 %v3910, %v4340
        %4345 = vrot.lane.b32.xlu0 %v2298, 32
        %v4346 = vpop.permute.xlu0 %4345
        %v4348 = vadd.f32 %v4343, %v4346
        %v4349 = vadd.f32 %v4344, %v4346
        %4350 = vrot.lane.b32.xlu0 %v3146, 10
        %v4351 = vpop.permute.xlu0 %4350
        %4352 = vrot.lane.b32.xlu0 %v3148, 10
        %v4353 = vpop.permute.xlu0 %4352
        %4356 = vrot.lane.b32.xlu0 %v3662, 20
        %v4357 = vpop.permute.xlu0 %4356
        %4358 = vrot.lane.b32.xlu0 %v3664, 20
        %v4359 = vpop.permute.xlu0 %4358
        %4362 = vrot.lane.b32.xlu0 %v4096, 30
        %v4363 = vpop.permute.xlu0 %4362
        %4364 = vrot.lane.b32.xlu0 %v4098, 30
        %v4365 = vpop.permute.xlu0 %4364
        %v4368 = vsel %vm2777, %v2797, %v4351
        %v4369 = vsel %vm2777, %v2799, %v4353
        %vm4370 = vcmask 162816
        %v4371 = vsel %vm4370, %v4368, %v4357
        %v4372 = vsel %vm4370, %v4369, %v4359
        %vm4373 = vcmask 244736
        %v4374 = vsel %vm4373, %v4371, %v4363
        %v4375 = vsel %vm4373, %v4372, %v4365
        %vm4376 = vcmask 326656
        %4377 = vst.msk [vmem:[%s364] sm:$0xff] %vm4376, %v4374
        %4378 = vst.msk [vmem:[%s364 + $0x8] sm:$0xff] %vm4376, %v4375
        %v4379 = vadd.f32 %v2236, %v4348
        %v4380 = vadd.f32 %v2237, %v4349
        %v4381 = vsel %vm410, %v4379, 0.0
        %4382 = vadd.xlane.f32.xlu0 %v4381
        %v4383 = vpop.xlane.xlu0 %4382
        %v4384 = vsel %vm410, %v4380, 0.0
        %4385 = vadd.xlane.f32.xlu0 %v4384
        %v4386 = vpop.xlane.xlu0 %4385
        %v4387 = vmul.f32 %v4383, %v2205
        %v4388 = vmul.f32 %v4386, %v2205
        %v4389 = vsub.f32 %v4379, %v4387
        %v4390 = vsub.f32 %v4380, %v4388
        %v4391 = vmul.f32 %v4389, %v4389
        %v4392 = vmul.f32 %v4390, %v4390
        %v4393 = vsel %vm410, %v4391, 0.0
        %4394 = vadd.xlane.f32.xlu0 %v4393
        %v4395 = vpop.xlane.xlu0 %4394
        %v4396 = vsel %vm410, %v4392, 0.0
        %4397 = vadd.xlane.f32.xlu0 %v4396
        %v4398 = vpop.xlane.xlu0 %4397
        %v4399 = vmul.f32 %v4395, %v2205
        %v4400 = vmul.f32 %v4398, %v2205
        %v4401 = vadd.f32 %v4399, 1e-12
        %v4402 = vadd.f32 %v4400, 1e-12
        %v4403 = vrsqrt.pop %v4401
        %v4404 = vrsqrt.pop %v4402
        %v4405 = vmul.f32 %v4389, %v4403
        %v4406 = vmul.f32 %v4390, %v4404
        %v4407 = vlaneseq
        %v4408 = vshrl.u32 %v4407, 7
        %v4409 = vsub.s32 6, %v4408
        %v4410 = vrot.slane %v400, %v4409
        %v4411 = vmul.f32 %v4405, %v4410
        %v4412 = vmul.f32 %v4406, %v4410
        %v4413 = vlaneseq
        %v4414 = vshrl.u32 %v4413, 7
        %v4415 = vsub.s32 7, %v4414
        %v4416 = vrot.slane %v400, %v4415
        %v4417 = vadd.f32 %v4411, %v4416
        %v4418 = vadd.f32 %v4412, %v4416
        %v4419 = vld [vmem:[%s374] sm:$0xff]
        %v4420 = vld [vmem:[%s374 + $0x8] sm:$0xff]
        %v4421 = vld [vmem:[%s374 + $0x10] sm:$0xff]
        %v4422 = vld [vmem:[%s374 + $0x18] sm:$0xff]
        %v4423 = vlaneseq
        %v4424 = vshrl.u32 %v4423, 7
        %v4425 = vsub.s32 2, %v4424
        %v4426 = vrot.slane %v400, %v4425
        %v4428 = vsel %vm410, %v4417, 0
        %v4431 = vsel %vm410, %v4418, 0
        %4433 = vmatprep.subr.mxu0 0.0
        %4434 = vmatpush1.msra.mxu0 0.0
        %4435 = vmatprep.subr.mxu0 0.0
        %4436 = vmatpush1.msra.mxu0 0.0
        %4437 = vmatprep.subr.mxu0 0.0
        %4438 = vmatpush1.msra.mxu0 0.0
        %4439 = vmatprep.subr.mxu0 0.0
        %4440 = vmatpush1.msra.mxu0 0.0
        %4441 = vmatprep.subr.mxu0 0.0
        %4442 = vmatpush1.msra.mxu0 0.0
        %4443 = vmatprep.subr.mxu0 0.0
        %4444 = vmatpush1.msra.mxu0 0.0
        %4445 = vmatprep.subr.mxu0 0.0
        %4446 = vmatpush1.msra.mxu0 0.0
        %4447 = vmatprep.subr.mxu0 0.0
        %4448 = vmatpush1.msra.mxu0 0.0
        %4449 = vmatprep.subr.mxu0 0.0
        %4450 = vmatpush1.msra.mxu0 0.0
        %4451 = vmatprep.subr.mxu0 0.0
        %4452 = vmatpush1.msra.mxu0 0.0
        %4453 = vmatprep.subr.mxu0 0.0
        %4454 = vmatpush1.msra.mxu0 0.0
        %4455 = vmatprep.subr.mxu0 0.0
        %4456 = vmatpush1.msra.mxu0 0.0
        %4457 = vmatprep.subr.mxu0 0.0
        %4458 = vmatpush1.msra.mxu0 %v4422
        %4459 = vmatprep.subr.mxu0 0.0
        %4460 = vmatpush1.msra.mxu0 %v4421
        %4461 = vmatprep.subr.mxu0 0.0
        %4462 = vmatpush1.msra.mxu0 %v4420
        %4463 = vmatprep.subr.mxu0 0.0
        %4464 = vmatpush1.msra.mxu0 %v4419
        %4465 = vmatprep.subr.mxu0 0.0
        %4466 = vmatpush2.msra.mxu0 0.0
        %4467 = vmatprep.subr.mxu0 0.0
        %4468 = vmatpush2.msra.mxu0 0.0
        %4469 = vmatprep.subr.mxu0 0.0
        %4470 = vmatpush2.msra.mxu0 0.0
        %4471 = vmatprep.subr.mxu0 0.0
        %4472 = vmatpush2.msra.mxu0 0.0
        %4473 = vmatprep.subr.mxu0 0.0
        %4474 = vmatpush2.msra.mxu0 0.0
        %4475 = vmatprep.subr.mxu0 0.0
        %4476 = vmatpush2.msra.mxu0 0.0
        %4477 = vmatprep.subr.mxu0 0.0
        %4478 = vmatpush2.msra.mxu0 0.0
        %4479 = vmatprep.subr.mxu0 0.0
        %4480 = vmatpush2.msra.mxu0 0.0
        %4481 = vmatprep.subr.mxu0 0.0
        %4482 = vmatpush2.msra.mxu0 0.0
        %4483 = vmatprep.subr.mxu0 0.0
        %4484 = vmatpush2.msra.mxu0 0.0
        %4485 = vmatprep.subr.mxu0 0.0
        %4486 = vmatpush2.msra.mxu0 0.0
        %4487 = vmatprep.subr.mxu0 0.0
        %4488 = vmatpush2.msra.mxu0 0.0
        %4489 = vmatprep.subr.mxu0 0.0
        %4490 = vmatpush2.msra.mxu0 0.0
        %4491 = vmatprep.subr.mxu0 0.0
        %4492 = vmatpush2.msra.mxu0 0.0
        %4493 = vmatprep.subr.mxu0 0.0
        %4494 = vmatpush2.msra.mxu0 0.0
        %4495 = vmatprep.subr.mxu0 0.0
        %4496 = vmatpush2.msra.mxu0 0.0
        %4497 = vmatprep.mubr.f32.mxu0 0.0
        %4498 = vmatmul.mubr.f32.gmra.mxu0 %v4428
        %v4499 = vpop.f32.mrf.mxu0
        %v4500 = vadd.f32 %v4426, %v4499
        %v4501 = vpop.f32.mrf.mxu0
        %4502 = vmatprep.mubr.f32.mxu0 0.0
        %4503 = vmatmul.mubr.f32.gmra.mxu0 %v4431
        %v4504 = vpop.f32.mrf.mxu0
        %v4505 = vadd.f32 %v4426, %v4504
        %v4506 = vpop.f32.mrf.mxu0
        %4507 = vdwg.mxu0
        %v4508 = vmul.f32 %v4500, 0.5
        %v4509 = vmul.f32 %v4505, 0.5
        %v4510 = vrcp.pop 1.4142135
        %v4511 = vmul.f32 %v4500, %v4510
        %v4512 = vmul.f32 %v4505, %v4510
        %vm4513 = vcmp.ge.f32.partialorder %v4511, 0.0
        %vm4514 = vcmp.ge.f32.partialorder %v4512, 0.0
        %v4515 = vsel %vm4513, 1.0, -1.0
        %v4516 = vsel %vm4514, 1.0, -1.0
        %v4517 = vand.u32 2147483647, %v4511
        %v4518 = vand.u32 2147483647, %v4512
        %v4519 = vmul.f32 %v4517, 0.3275911
        %v4520 = vmul.f32 %v4518, 0.3275911
        %v4521 = vadd.f32 %v4519, 1.0
        %v4522 = vadd.f32 %v4520, 1.0
        %v4523 = vrcp.pop %v4521
        %v4524 = vmul.f32 1.0, %v4523
        %v4525 = vrcp.pop %v4522
        %v4526 = vmul.f32 1.0, %v4525
        %v4527 = vmul.f32 %v4524, 1.0614054
        %v4528 = vmul.f32 %v4526, 1.0614054
        %v4529 = vsub.f32 %v4527, 1.4531521
        %v4530 = vsub.f32 %v4528, 1.4531521
        %v4531 = vmul.f32 %v4529, %v4524
        %v4532 = vmul.f32 %v4530, %v4526
        %v4533 = vadd.f32 %v4531, 1.4214138
        %v4534 = vadd.f32 %v4532, 1.4214138
        %v4535 = vmul.f32 %v4533, %v4524
        %v4536 = vmul.f32 %v4534, %v4526
        %v4537 = vsub.f32 %v4535, 0.28449672
        %v4538 = vsub.f32 %v4536, 0.28449672
        %v4539 = vmul.f32 %v4537, %v4524
        %v4540 = vmul.f32 %v4538, %v4526
        %v4541 = vadd.f32 %v4539, 0.2548296
        %v4542 = vadd.f32 %v4540, 0.2548296
        %v4543 = vmul.f32 %v4541, %v4524
        %v4544 = vmul.f32 %v4542, %v4526
        %v4545 = vsub.f32 0.0, %v4517
        %v4546 = vsub.f32 0.0, %v4518
        %v4547 = vmul.f32 %v4545, %v4517
        %v4548 = vmul.f32 %v4546, %v4518
        %v4549 = vmul.f32 %v4547, 1.442695
        %v4550 = vpow.pop %v4549
        %v4551 = vmul.f32 %v4548, 1.442695
        %v4552 = vpow.pop %v4551
        %v4553 = vmul.f32 %v4543, %v4550
        %v4554 = vmul.f32 %v4544, %v4552
        %v4555 = vsub.f32 1.0, %v4553
        %v4556 = vsub.f32 1.0, %v4554
        %v4557 = vmul.f32 %v4515, %v4555
        %v4558 = vmul.f32 %v4516, %v4556
        %v4559 = vadd.f32 %v4557, 1.0
        %v4560 = vadd.f32 %v4558, 1.0
        %v4561 = vmul.f32 %v4508, %v4559
        %v4562 = vmul.f32 %v4509, %v4560
        %v4563 = vld [vmem:[%s379] sm:$0xff]
        %v4564 = vld [vmem:[%s379 + $0x8] sm:$0xff]
        %v4565 = vld [vmem:[%s379 + $0x10] sm:$0xff]
        %v4566 = vld [vmem:[%s379 + $0x18] sm:$0xff]
        %v4567 = vld [vmem:[%s379 + $0x20] sm:$0xff]
        %v4568 = vld [vmem:[%s379 + $0x28] sm:$0xff]
        %v4569 = vld [vmem:[%s379 + $0x30] sm:$0xff]
        %v4570 = vld [vmem:[%s379 + $0x38] sm:$0xff]
        %v4571 = vld [vmem:[%s379 + $0x40] sm:$0xff]
        %v4572 = vld [vmem:[%s379 + $0x48] sm:$0xff]
        %v4573 = vld [vmem:[%s379 + $0x50] sm:$0xff]
        %v4574 = vld [vmem:[%s379 + $0x58] sm:$0xff]
        %v4575 = vld [vmem:[%s379 + $0x60] sm:$0xff]
        %v4576 = vld [vmem:[%s379 + $0x68] sm:$0xff]
        %v4577 = vld [vmem:[%s379 + $0x70] sm:$0xff]
        %v4578 = vld [vmem:[%s379 + $0x78] sm:$0xff]
        %v4579 = vlaneseq
        %v4580 = vshrl.u32 %v4579, 7
        %v4581 = vsub.s32 3, %v4580
        %v4582 = vrot.slane %v400, %v4581
        %4583 = vmatprep.subr.mxu0 0.0
        %4584 = vmatpush1.msra.mxu0 %v4578
        %4585 = vmatprep.subr.mxu0 0.0
        %4586 = vmatpush1.msra.mxu0 %v4577
        %4587 = vmatprep.subr.mxu0 0.0
        %4588 = vmatpush1.msra.mxu0 %v4576
        %4589 = vmatprep.subr.mxu0 0.0
        %4590 = vmatpush1.msra.mxu0 %v4575
        %4591 = vmatprep.subr.mxu0 0.0
        %4592 = vmatpush1.msra.mxu0 %v4574
        %4593 = vmatprep.subr.mxu0 0.0
        %4594 = vmatpush1.msra.mxu0 %v4573
        %4595 = vmatprep.subr.mxu0 0.0
        %4596 = vmatpush1.msra.mxu0 %v4572
        %4597 = vmatprep.subr.mxu0 0.0
        %4598 = vmatpush1.msra.mxu0 %v4571
        %4599 = vmatprep.subr.mxu0 0.0
        %4600 = vmatpush1.msra.mxu0 %v4570
        %4601 = vmatprep.subr.mxu0 0.0
        %4602 = vmatpush1.msra.mxu0 %v4569
        %4603 = vmatprep.subr.mxu0 0.0
        %4604 = vmatpush1.msra.mxu0 %v4568
        %4605 = vmatprep.subr.mxu0 0.0
        %4606 = vmatpush1.msra.mxu0 %v4567
        %4607 = vmatprep.subr.mxu0 0.0
        %4608 = vmatpush1.msra.mxu0 %v4566
        %4609 = vmatprep.subr.mxu0 0.0
        %4610 = vmatpush1.msra.mxu0 %v4565
        %4611 = vmatprep.subr.mxu0 0.0
        %4612 = vmatpush1.msra.mxu0 %v4564
        %4613 = vmatprep.subr.mxu0 0.0
        %4614 = vmatpush1.msra.mxu0 %v4563
        %4615 = vmatprep.subr.mxu0 0.0
        %4616 = vmatpush2.msra.mxu0 0.0
        %4617 = vmatprep.subr.mxu0 0.0
        %4618 = vmatpush2.msra.mxu0 0.0
        %4619 = vmatprep.subr.mxu0 0.0
        %4620 = vmatpush2.msra.mxu0 0.0
        %4621 = vmatprep.subr.mxu0 0.0
        %4622 = vmatpush2.msra.mxu0 0.0
        %4623 = vmatprep.subr.mxu0 0.0
        %4624 = vmatpush2.msra.mxu0 0.0
        %4625 = vmatprep.subr.mxu0 0.0
        %4626 = vmatpush2.msra.mxu0 0.0
        %4627 = vmatprep.subr.mxu0 0.0
        %4628 = vmatpush2.msra.mxu0 0.0
        %4629 = vmatprep.subr.mxu0 0.0
        %4630 = vmatpush2.msra.mxu0 0.0
        %4631 = vmatprep.subr.mxu0 0.0
        %4632 = vmatpush2.msra.mxu0 0.0
        %4633 = vmatprep.subr.mxu0 0.0
        %4634 = vmatpush2.msra.mxu0 0.0
        %4635 = vmatprep.subr.mxu0 0.0
        %4636 = vmatpush2.msra.mxu0 0.0
        %4637 = vmatprep.subr.mxu0 0.0
        %4638 = vmatpush2.msra.mxu0 0.0
        %4639 = vmatprep.subr.mxu0 0.0
        %4640 = vmatpush2.msra.mxu0 0.0
        %4641 = vmatprep.subr.mxu0 0.0
        %4642 = vmatpush2.msra.mxu0 0.0
        %4643 = vmatprep.subr.mxu0 0.0
        %4644 = vmatpush2.msra.mxu0 0.0
        %4645 = vmatprep.subr.mxu0 0.0
        %4646 = vmatpush2.msra.mxu0 0.0
        %4647 = vmatprep.mubr.f32.mxu0 0.0
        %4648 = vmatmul.mubr.f32.gmra.mxu0 %v4561
        %v4649 = vpop.f32.mrf.mxu0
        %v4650 = vadd.f32 %v4582, %v4649
        %v4651 = vpop.f32.mrf.mxu0
        %4652 = vmatprep.mubr.f32.mxu0 0.0
        %4653 = vmatmul.mubr.f32.gmra.mxu0 %v4562
        %v4654 = vpop.f32.mrf.mxu0
        %v4655 = vadd.f32 %v4582, %v4654
        %v4656 = vpop.f32.mrf.mxu0
        %4657 = vdwg.mxu0
        %v4658 = vadd.f32 %v4417, %v4650
        %v4659 = vadd.f32 %v4418, %v4655
        %v4660 = vsel %vm410, %v4658, 0.0
        %4661 = vadd.xlane.f32.xlu0 %v4660
        %v4662 = vpop.xlane.xlu0 %4661
        %v4663 = vsel %vm410, %v4659, 0.0
        %4664 = vadd.xlane.f32.xlu0 %v4663
        %v4665 = vpop.xlane.xlu0 %4664
        %v4666 = vmul.f32 %v4662, %v2205
        %v4667 = vmul.f32 %v4665, %v2205
        %v4668 = vsub.f32 %v4658, %v4666
        %v4669 = vsub.f32 %v4659, %v4667
        %v4670 = vmul.f32 %v4668, %v4668
        %v4671 = vmul.f32 %v4669, %v4669
        %v4672 = vsel %vm410, %v4670, 0.0
        %4673 = vadd.xlane.f32.xlu0 %v4672
        %v4674 = vpop.xlane.xlu0 %4673
        %v4675 = vsel %vm410, %v4671, 0.0
        %4676 = vadd.xlane.f32.xlu0 %v4675
        %v4677 = vpop.xlane.xlu0 %4676
        %v4678 = vmul.f32 %v4674, %v2205
        %v4679 = vmul.f32 %v4677, %v2205
        %v4680 = vadd.f32 %v4678, 1e-12
        %v4681 = vadd.f32 %v4679, 1e-12
        %v4682 = vrsqrt.pop %v4680
        %v4683 = vrsqrt.pop %v4681
        %v4684 = vmul.f32 %v4668, %v4682
        %v4685 = vmul.f32 %v4669, %v4683
        %v4686 = vlaneseq
        %v4687 = vshrl.u32 %v4686, 7
        %v4688 = vsub.s32 0, %v4687
        %v4689 = vrot.slane %v401, %v4688
        %v4690 = vmul.f32 %v4684, %v4689
        %v4691 = vmul.f32 %v4685, %v4689
        %v4692 = vlaneseq
        %v4693 = vshrl.u32 %v4692, 7
        %v4694 = vsub.s32 1, %v4693
        %v4695 = vrot.slane %v401, %v4694
        %v4696 = vadd.f32 %v4690, %v4695
        %v4697 = vadd.f32 %v4691, %v4695
        %4698 = vst.msk [vmem:[#allocation5] sm:$0xff] %vm410, %v4696
        %4699 = vst.msk [vmem:[#allocation5 + $0x8] sm:$0xff] %vm410, %v4697
        %s4700 = sand.u32 %s25, 1
        %s4701 = scalar_lea.sflag [#allocation7], %s4700
        %s4702 = sand.u32 %s200, 1
        %s4703 = smul.addr %s4702, 16
        %s4704 = scalar_lea.vmem [#allocation6], %s4703
        %s4705 = sand.u32 %s25, 1
        %s4706 = scalar_lea.sflag [#allocation7], %s4705
        %s4707 = sand.u32 %s226, 1
        %s4708 = smul.addr %s4707, 16
        %s4709 = scalar_lea.vmem [#allocation8], %s4708
        // Predicated region
        $region53: #{tpu_custom_call.1} parent=43 // pred_check
          %p4710 = pneg %p184
        $region54: #{tpu_custom_call.1} parent=43 // pred_check_branch
          %4712 = sbr.rel (%p4710) target = $region56
        $region55: #{tpu_custom_call.1} parent=43 // pred_region
          %s4714 = ssub.s32 256, 256
          %4715 = vsyncadd [#allocation4], %s4714
          %s4716 = sshll.u32 [#allocation5], 4
          %s4717 = int_to_ptr.vmem [resolvable:$true] %s4716
          %4722 = dma.vmem_to_hbm [thread:$0]  %s4717, 256, %s6, [#allocation4], 128, 128, 8
        $region56: #{tpu_custom_call.1} parent=43 // pred_fallthru
          _
        // Predicated region
        $region57: #{tpu_custom_call.1} parent=43 // pred_check
          %p4723 = pneg %p210
        $region58: #{tpu_custom_call.1} parent=43 // pred_check_branch
          %4725 = sbr.rel (%p4723) target = $region60
        $region59: #{tpu_custom_call.1} parent=43 // pred_region
          %s4727 = ssub.s32 256, 256
          %4728 = vsyncadd %s4701, %s4727
          %s4729 = smul.addr %s25, 2
          %s4730 = smul.addr %s4729, 128
          %s4731 = scalar_lea.hbm %s7, %s4730
          %s4732 = sshll.u32 %s4704, 4
          %s4733 = int_to_ptr.vmem [resolvable:$true] %s4732
          %4738 = dma.vmem_to_hbm [thread:$0]  %s4733, 256, %s4731, %s4701, 128, 128, 8
        $region60: #{tpu_custom_call.1} parent=43 // pred_fallthru
          _
        // Predicated region
        $region61: #{tpu_custom_call.1} parent=43 // pred_check
          %p4739 = pneg %p236
        $region62: #{tpu_custom_call.1} parent=43 // pred_check_branch
          %4741 = sbr.rel (%p4739) target = $region64
        $region63: #{tpu_custom_call.1} parent=43 // pred_region
          %s4743 = ssub.s32 256, 256
          %4744 = vsyncadd %s4706, %s4743
          %s4745 = smul.addr %s25, 2
          %s4746 = smul.addr %s4745, 128
          %s4747 = scalar_lea.hbm %s8, %s4746
          %s4748 = sshll.u32 %s4709, 4
          %s4749 = int_to_ptr.vmem [resolvable:$true] %s4748
          %4754 = dma.vmem_to_hbm [thread:$0]  %s4749, 256, %s4747, %s4706, 128, 128, 8
        $region64: #{tpu_custom_call.1} parent=43 // pred_fallthru
          _
        // Predicated region
        $region65: #{tpu_custom_call.1} parent=43 // pred_check
          %p4755 = pneg %p184
        $region66: #{tpu_custom_call.1} parent=43 // pred_check_branch
          %4757 = sbr.rel (%p4755) target = $region68
        $region67: #{tpu_custom_call.1} parent=43 // pred_region
          %4758 = dma.done [#allocation4], 256
        $region68: #{tpu_custom_call.1} parent=43 // pred_fallthru
          _
      $region44: #{tpu_custom_call.1} parent=5 // pred_fallthru
        _
      %p4759 = scmp.le.s32.totalorder 2, %s20
      // Predicated region
      $region69: #{tpu_custom_call.1} parent=5 // pred_check
        %p4760 = pneg %p4759
      $region70: #{tpu_custom_call.1} parent=5 // pred_check_branch
        %4762 = sbr.rel (%p4760) target = $region72
      $region71: #{tpu_custom_call.1} parent=5 // pred_region
        %s4763 = ssub.s32 %s20, 2
        // Predicated region
        $region73: #{tpu_custom_call.1} parent=71 // pred_check
          %p4764 = pneg %p216
        $region74: #{tpu_custom_call.1} parent=71 // pred_check_branch
          %4766 = sbr.rel (%p4764) target = $region76
        $region75: #{tpu_custom_call.1} parent=71 // pred_region
          %s4767 = sand.u32 %s26, 1
          %s4768 = scalar_lea.sflag [#allocation7], %s4767
          %s4769 = sand.u32 %s201, 1
          %s4770 = smul.addr %s4769, 16
          %s4771 = scalar_lea.vmem [#allocation6], %s4770
          %4772 = dma.done %s4768, 256
        $region76: #{tpu_custom_call.1} parent=71 // pred_fallthru
          _
        // Predicated region
        $region77: #{tpu_custom_call.1} parent=71 // pred_check
          %p4773 = pneg %p242
        $region78: #{tpu_custom_call.1} parent=71 // pred_check_branch
          %4775 = sbr.rel (%p4773) target = $region80
        $region79: #{tpu_custom_call.1} parent=71 // pred_region
          %s4776 = sand.u32 %s26, 1
          %s4777 = scalar_lea.sflag [#allocation7], %s4776
          %s4778 = sand.u32 %s227, 1
          %s4779 = smul.addr %s4778, 16
          %s4780 = scalar_lea.vmem [#allocation8], %s4779
          %4781 = dma.done %s4777, 256
        $region80: #{tpu_custom_call.1} parent=71 // pred_fallthru
          _
      $region72: #{tpu_custom_call.1} parent=5 // pred_fallthru
        _
    $region6: #{tpu_custom_call.1} parent=1 // loop_footer
      %s24 = sadd.s32 1, %s20
    $region7: #{tpu_custom_call.1} parent=1 // loop_footer_branch
      %19 = sbr.rel target = $region3
    $region8: #{tpu_custom_call.1} parent=1 // loop_exit
      _
    %4782 = vsyncpa [#allocation3], 1
    %s4783 = scalar_lea.sflag [#allocation3], 1
    %4784 = vsyncpa %s4783, 1
    %4785 = vsyncpa [#allocation4], 1
    %s4786 = scalar_lea.sflag [#allocation4], 1
    %4787 = vsyncpa %s4786, 1
    %4788 = vsyncpa [#allocation7], 1
    %s4789 = scalar_lea.sflag [#allocation7], 1
    %4790 = vsyncpa %s4789, 1

</llo_original>
